<compile_context>
chip_gen: v7x
topology: tpu7x:2x2x1
jax: 0.10.0
libtpu: 0.0.40
codegen_flags: <defaults>
</compile_context>

<pallas_src>
import functools

import jax
import jax.numpy as jnp
from jax.experimental import pallas as pl
from jax.experimental.pallas import tpu as pltpu


def _round_up(v, m):
    return ((v + m - 1) // m) * m


def _pick_tile(dim, max_tile):
    """Largest tile <= max_tile that divides `dim` (multiple of 128, else full)."""
    if dim <= max_tile:
        return dim
    t = (max_tile // 128) * 128
    while t >= 128:
        if dim % t == 0:
            return t
        t -= 128
    return dim


def _layernorm(x, g, b, eps=1e-5):
    mu = jnp.mean(x, axis=-1, keepdims=True)
    var = jnp.mean((x - mu) ** 2, axis=-1, keepdims=True)
    return (x - mu) * jax.lax.rsqrt(var + eps) * g + b


# --------------------------------------------------------------------------
# kernel 1: streamed input projection + 1-layer transformer encoder -> cls(B,1,E)
# --------------------------------------------------------------------------
def _proj_encoder_kernel(num_heads, N,
                         x_ref, wp_ref, bp_ref,
                         wq_ref, bq_ref, wk_ref, bk_ref, wv_ref, bv_ref,
                         wo_ref, bo_ref, g1_ref, be1_ref,
                         w1_ref, b1_ref, w2_ref, b2_ref, g2_ref, be2_ref,
                         cls_ref,
                         seq_acc, head_buf):
    d = pl.program_id(1)
    num_d = pl.num_programs(1)
    TB, SP, E = seq_acc.shape
    S = N + 1
    hd = E // num_heads
    f32, bf16 = jnp.float32, jnp.bfloat16

    @pl.when(d == 0)
    def _init():
        seq_acc[...] = jnp.zeros_like(seq_acc)

    # ---- input projection, streamed over D (K) tiles; f32 accumulation ----
    xb = x_ref[...].astype(bf16)                                  # (TB*N, DK)
    upd = jnp.dot(xb, wp_ref[...], preferred_element_type=f32)    # (TB*N, E)
    seq_acc[:, 0:N, :] += upd.reshape(TB, N, E)

    @pl.when(d == num_d - 1)
    def _encoder():
        scale = 1.0 / float(hd) ** 0.5

        # projection bias on token rows only; class-token row (index N) and the
        # padding rows (N+1 .. SP-1) stay exactly zero.
        row = jax.lax.broadcasted_iota(jnp.int32, (1, SP, 1), 1)
        tok = (row < N).astype(f32)                               # (1, SP, 1)
        seq3 = seq_acc[...] + tok * bp_ref[...].reshape(1, 1, E)  # (TB, SP, E)
        seq = seq3.reshape(TB * SP, E)                            # SP % 8 == 0
        seq_bf = seq.astype(bf16)

        # ---- multi-head self attention (batch-fused, lane-dense QKV) ----
        q = (jnp.dot(seq_bf, wq_ref[...], preferred_element_type=f32)
             + bq_ref[...]).reshape(TB, SP, E)
        k = (jnp.dot(seq_bf, wk_ref[...], preferred_element_type=f32)
             + bk_ref[...]).reshape(TB, SP, E)
        v = (jnp.dot(seq_bf, wv_ref[...], preferred_element_type=f32)
             + bv_ref[...]).reshape(TB, SP, E)

        # mask padding rows as keys (they would alias the zero class token).
        kidx = jax.lax.broadcasted_iota(jnp.int32, (1, 1, SP), 2)
        kmask = jnp.where(kidx < S, 0.0, -1e30).astype(f32)

        # static unroll over heads; per-head hd-wide lane slices are the only
        # non-128-aligned accesses left (tiny tiles, acceptable relayout).
        for h in range(num_heads):
            sl = slice(h * hd, (h + 1) * hd)
            qh, kh, vh = q[:, :, sl], k[:, :, sl], v[:, :, sl]
            s = jnp.einsum("bqd,bkd->bqk", qh, kh,
                           preferred_element_type=f32) * scale + kmask
            s = s - jnp.max(s, axis=-1, keepdims=True)
            p = jnp.exp(s)
            p = p * pl.reciprocal(jnp.sum(p, axis=-1, keepdims=True), approx=True)
            head_buf[:, :, sl] = jnp.einsum("bqk,bkd->bqd", p, vh,
                                            preferred_element_type=f32)

        # single K=E matmul with Wo over the concatenated heads
        attn_cat = head_buf[...].reshape(TB * SP, E).astype(bf16)
        attn = jnp.dot(attn_cat, wo_ref[...],
                       preferred_element_type=f32) + bo_ref[...]

        # ---- residual + LN1, FFN (ReLU), residual + LN2 (all f32) ----
        x1 = _layernorm(seq + attn, g1_ref[...], be1_ref[...])
        hid = jnp.maximum(
            jnp.dot(x1.astype(bf16), w1_ref[...], preferred_element_type=f32)
            + b1_ref[...], 0.0)
        ff = jnp.dot(hid.astype(bf16), w2_ref[...],
                     preferred_element_type=f32) + b2_ref[...]
        x2 = _layernorm(x1 + ff, g2_ref[...], be2_ref[...])

        # class token sits at row N of each batch element.
        cls_ref[...] = x2.reshape(TB, SP, E)[:, N:N + 1, :]


# --------------------------------------------------------------------------
# kernel 2: class-token output projection, wout streamed over D-column tiles
# --------------------------------------------------------------------------
def _cls_outproj_kernel(cls_ref, wout_ref, bout_ref, o_ref):
    o_ref[...] = (jnp.dot(cls_ref[...].astype(jnp.bfloat16), wout_ref[...],
                          preferred_element_type=jnp.float32) + bout_ref[...])


# --------------------------------------------------------------------------
# wrapper
# --------------------------------------------------------------------------
def self_attention_class_token(x, params, *, num_heads, tb=None,
                               dk_max=2048, dn_max=2048):
    B, N, C, H, W = x.shape
    D = C * H * W
    E = params["wp"].shape[1]
    S = N + 1
    SP = _round_up(S, 8)
    assert E % num_heads == 0

    if tb is None:
        tb = next(t for t in (8, 4, 2, 1) if B % t == 0)
    assert B % tb == 0
    dk = _pick_tile(D, dk_max)   # K-tile of wp (streamed)
    dn = _pick_tile(D, dn_max)   # column tile of wout (streamed)

    f32, bf16 = jnp.float32, jnp.bfloat16
    # bf16 weights for the MXU (halves weight HBM/VMEM traffic); biases/LN in f32.
    wp, wq, wk, wv, wo, w1, w2, wout = (
        params[k].astype(bf16)
        for k in ("wp", "wq", "wk", "wv", "wo", "w1", "w2", "wout"))
    bp, bq, bk, bv, bo, g1, be1, b1, b2, g2, be2, bout = (
        params[k].astype(f32)
        for k in ("bp", "bq", "bk", "bv", "bo", "g1", "be1",
                  "b1", "b2", "g2", "be2", "bout"))

    # tokens flattened to 2D (B*N, D); NO HBM-side class-token concat.
    x2d = x.reshape(B * N, D)

    const2d = lambda b, d: (0, 0)
    in_specs = [
        pl.BlockSpec((tb * N, dk), lambda b, d: (b, d)),   # x  : D-streamed
        pl.BlockSpec((dk, E),      lambda b, d: (d, 0)),   # wp : D-streamed
    ] + [pl.BlockSpec(p.shape, const2d) for p in
         (bp, wq, bq, wk, bk, wv, bv, wo, bo, g1, be1, w1, b1, w2, b2, g2, be2)]

    cls = pl.pallas_call(
        functools.partial(_proj_encoder_kernel, num_heads, N),
        out_shape=jax.ShapeDtypeStruct((B, 1, E), f32),
        grid=(B // tb, D // dk),
        in_specs=in_specs,
        out_specs=pl.BlockSpec((tb, 1, E), lambda b, d: (b, 0, 0)),
        scratch_shapes=[pltpu.VMEM((tb, SP, E), f32),    # sequence accumulator
                        pltpu.VMEM((tb, SP, E), f32)],   # head concat buffer
        compiler_params=pltpu.CompilerParams(
            dimension_semantics=("parallel", "arbitrary"),
            vmem_limit_bytes=64 * 1024 * 1024),
    )(x2d, wp, bp, wq, bq, wk, bk, wv, bv, wo, bo,
      g1, be1, w1, b1, w2, b2, g2, be2)

    out = pl.pallas_call(
        _cls_outproj_kernel,
        out_shape=jax.ShapeDtypeStruct((B, D), f32),
        grid=(D // dn,),
        in_specs=[pl.BlockSpec((B, E), lambda j: (0, 0)),
                  pl.BlockSpec((E, dn), lambda j: (0, j)),
                  pl.BlockSpec((1, dn), lambda j: (0, j))],
        out_specs=pl.BlockSpec((B, dn), lambda j: (0, j)),
        compiler_params=pltpu.CompilerParams(
            dimension_semantics=("parallel",),
            vmem_limit_bytes=64 * 1024 * 1024),
    )(cls.reshape(B, E), wout, bout)

    return out.reshape(B, 1, C, H, W)


# --------------------------------------------------------------------------
# params + pure-JAX reference (mirrors nn.TransformerEncoderLayer, eval mode)
# --------------------------------------------------------------------------
def init_params(key, D, E, F_dim):
    ks = jax.random.split(key, 8)

    def lin(k, fan_in, fan_out):
        k1, k2 = jax.random.split(k)
        bound = 1.0 / (fan_in ** 0.5)
        w = jax.random.uniform(k1, (fan_in, fan_out), jnp.float32, -bound, bound)
        b = jax.random.uniform(k2, (1, fan_out), jnp.float32, -bound, bound)
        return w, b

    wp, bp = lin(ks[0], D, E)        # nn.Linear(input_dim, model_dim)
    wq, bq = lin(ks[1], E, E)        # MHA in_proj (q third)
    wk, bk = lin(ks[2], E, E)        # MHA in_proj (k third)
    wv, bv = lin(ks[3], E, E)        # MHA in_proj (v third)
    wo, bo = lin(ks[4], E, E)        # MHA out_proj
    w1, b1 = lin(ks[5], E, F_dim)    # FFN linear1
    w2, b2 = lin(ks[6], F_dim, E)    # FFN linear2
    wout, bout = lin(ks[7], E, D)    # nn.Linear(model_dim, input_dim)
    return dict(
        wp=wp, bp=bp, wq=wq, bq=bq, wk=wk, bk=bk, wv=wv, bv=bv, wo=wo, bo=bo,
        g1=jnp.ones((1, E), jnp.float32), be1=jnp.zeros((1, E), jnp.float32),
        w1=w1, b1=b1, w2=w2, b2=b2,
        g2=jnp.ones((1, E), jnp.float32), be2=jnp.zeros((1, E), jnp.float32),
        wout=wout, bout=bout,
    )


def reference(x, params, *, num_heads):
    B, N, C, H, W = x.shape
    D = C * H * W
    E = params["wp"].shape[1]
    hd = E // num_heads

    xf = x.reshape(B, N, D).astype(jnp.float32)
    proj = xf @ params["wp"] + params["bp"]
    seq = jnp.concatenate([jnp.zeros((B, 1, E), jnp.float32), proj], axis=1)

    q = seq @ params["wq"] + params["bq"]
    k = seq @ params["wk"] + params["bk"]
    v = seq @ params["wv"] + params["bv"]
    to_heads = lambda t: t.reshape(B, -1, num_heads, hd).transpose(0, 2, 1, 3)
    qh, kh, vh = to_heads(q), to_heads(k), to_heads(v)
    s = jnp.einsum("bhqd,bhkd->bhqk", qh, kh) / (hd ** 0.5)
    p = jax.nn.softmax(s, axis=-1)
    o = jnp.einsum("bhqk,bhkd->bhqd", p, vh).transpose(0, 2, 1, 3).reshape(B, -1, E)
    attn = o @ params["wo"] + params["bo"]

    x1 = _layernorm(seq + attn, params["g1"], params["be1"])
    ff = jnp.maximum(x1 @ params["w1"] + params["b1"], 0.0) @ params["w2"] + params["b2"]
    x2 = _layernorm(x1 + ff, params["g2"], params["be2"])
    cls = x2[:, 0, :]
    out = cls @ params["wout"] + params["bout"]
    return out.reshape(B, 1, C, H, W)


if __name__ == "__main__":
    # Small shapes consistent with the module's forward:
    #   x: (B, N, C, H, W), input_dim D = C*H*W, model_dim E, nhead heads.
    B, N, C, H, W = 8, 8, 4, 8, 8
    D = C * H * W        # 256 (stands in for 512*7*7)
    E = 64               # model_dim (stands in for 512)
    NUM_HEADS = 4        # must divide E (512/12 in the original spec is invalid)
    F_DIM = 128          # dim_feedforward (stands in for 2048)

    key = jax.random.PRNGKey(0)
    kx, kp = jax.random.split(key)
    x = jax.random.normal(kx, (B, N, C, H, W), jnp.float32)
    params = init_params(kp, D, E, F_DIM)

    # dk_max/dn_max forced small so the wp/wout streaming path is exercised
    # (2 D-tiles) even at these toy dims; batch grid has 2 parallel steps.
    out = self_attention_class_token(x, params, num_heads=NUM_HEADS, tb=4,
                                     dk_max=128, dn_max=128)
    out = jax.block_until_ready(out)

    ref = reference(x, params, num_heads=NUM_HEADS)
    assert out.shape == (B, 1, C, H, W), out.shape
    assert bool(jnp.all(jnp.isfinite(out)))
    err = float(jnp.max(jnp.abs(out - ref)))
    assert bool(jnp.allclose(out, ref, atol=5e-2, rtol=5e-2)), (
        f"mismatch vs reference: max abs err {err}")

    print("KERNEL_OK")
</pallas_src>

<mosaic_0001>
module attributes {stable_mosaic.version = 11 : i64} {
  func.func @_proj_encoder_kernel(%arg0: i32, %arg1: i32, %arg2: memref<32x128xf32, #tpu.memory_space<vmem>>, %arg3: memref<128x64xbf16, #tpu.memory_space<vmem>>, %arg4: memref<1x64xf32, #tpu.memory_space<vmem>>, %arg5: memref<64x64xbf16, #tpu.memory_space<vmem>>, %arg6: memref<1x64xf32, #tpu.memory_space<vmem>>, %arg7: memref<64x64xbf16, #tpu.memory_space<vmem>>, %arg8: memref<1x64xf32, #tpu.memory_space<vmem>>, %arg9: memref<64x64xbf16, #tpu.memory_space<vmem>>, %arg10: memref<1x64xf32, #tpu.memory_space<vmem>>, %arg11: memref<64x64xbf16, #tpu.memory_space<vmem>>, %arg12: memref<1x64xf32, #tpu.memory_space<vmem>>, %arg13: memref<1x64xf32, #tpu.memory_space<vmem>>, %arg14: memref<1x64xf32, #tpu.memory_space<vmem>>, %arg15: memref<64x128xbf16, #tpu.memory_space<vmem>>, %arg16: memref<1x128xf32, #tpu.memory_space<vmem>>, %arg17: memref<128x64xbf16, #tpu.memory_space<vmem>>, %arg18: memref<1x64xf32, #tpu.memory_space<vmem>>, %arg19: memref<1x64xf32, #tpu.memory_space<vmem>>, %arg20: memref<1x64xf32, #tpu.memory_space<vmem>>, %arg21: memref<4x1x64xf32, #tpu.memory_space<vmem>>, %arg22: memref<4x16x64xf32, #tpu.memory_space<vmem>>, %arg23: memref<4x16x64xf32, #tpu.memory_space<vmem>>) attributes {dimension_semantics = [#tpu.dimension_semantics<parallel>, #tpu.dimension_semantics<arbitrary>], iteration_bounds = array<i64: 2, 2>, scalar_prefetch = 0 : i64, scratch_operands = 2 : i64, tpu.core_type = #tpu.core_type<tc>, window_params = [{transform_indices = @transform_0, window_bounds = array<i64: 32, 128>}, {transform_indices = @transform_1, window_bounds = array<i64: 128, 64>}, {pipeline_mode = #tpu.pipeline_mode<synchronous>, transform_indices = @transform_2, window_bounds = array<i64: 1, 64>}, {pipeline_mode = #tpu.pipeline_mode<synchronous>, transform_indices = @transform_3, window_bounds = array<i64: 64, 64>}, {pipeline_mode = #tpu.pipeline_mode<synchronous>, transform_indices = @transform_4, window_bounds = array<i64: 1, 64>}, {pipeline_mode = #tpu.pipeline_mode<synchronous>, transform_indices = @transform_5, window_bounds = array<i64: 64, 64>}, {pipeline_mode = #tpu.pipeline_mode<synchronous>, transform_indices = @transform_6, window_bounds = array<i64: 1, 64>}, {pipeline_mode = #tpu.pipeline_mode<synchronous>, transform_indices = @transform_7, window_bounds = array<i64: 64, 64>}, {pipeline_mode = #tpu.pipeline_mode<synchronous>, transform_indices = @transform_8, window_bounds = array<i64: 1, 64>}, {pipeline_mode = #tpu.pipeline_mode<synchronous>, transform_indices = @transform_9, window_bounds = array<i64: 64, 64>}, {pipeline_mode = #tpu.pipeline_mode<synchronous>, transform_indices = @transform_10, window_bounds = array<i64: 1, 64>}, {pipeline_mode = #tpu.pipeline_mode<synchronous>, transform_indices = @transform_11, window_bounds = array<i64: 1, 64>}, {pipeline_mode = #tpu.pipeline_mode<synchronous>, transform_indices = @transform_12, window_bounds = array<i64: 1, 64>}, {pipeline_mode = #tpu.pipeline_mode<synchronous>, transform_indices = @transform_13, window_bounds = array<i64: 64, 128>}, {pipeline_mode = #tpu.pipeline_mode<synchronous>, transform_indices = @transform_14, window_bounds = array<i64: 1, 128>}, {pipeline_mode = #tpu.pipeline_mode<synchronous>, transform_indices = @transform_15, window_bounds = array<i64: 128, 64>}, {pipeline_mode = #tpu.pipeline_mode<synchronous>, transform_indices = @transform_16, window_bounds = array<i64: 1, 64>}, {pipeline_mode = #tpu.pipeline_mode<synchronous>, transform_indices = @transform_17, window_bounds = array<i64: 1, 64>}, {pipeline_mode = #tpu.pipeline_mode<synchronous>, transform_indices = @transform_18, window_bounds = array<i64: 1, 64>}, {transform_indices = @transform_19, window_bounds = array<i64: 4, 1, 64>}]} {
    %c0_i32 = arith.constant 0 : i32
    %0 = arith.cmpi eq, %arg1, %c0_i32 : i32
    %1 = arith.extui %0 : i1 to i32
    %c0_i32_0 = arith.constant 0 : i32
    %2 = arith.cmpi ne, %1, %c0_i32_0 : i32
    scf.if %2 {
      %cst_11 = arith.constant 0.000000e+00 : f32
      %14 = vector.broadcast %cst_11 : f32 to vector<4x16x64xf32>
      %c0_12 = arith.constant 0 : index
      %c0_13 = arith.constant 0 : index
      %c0_14 = arith.constant 0 : index
      %15 = vector.load %arg22[%c0_12, %c0_13, %c0_14] : memref<4x16x64xf32, #tpu.memory_space<vmem>>, vector<4x16x64xf32>
      tpu.vector_store %arg22[%c0_12, %c0_13, %c0_14], %14 {strides = array<i32>} : memref<4x16x64xf32, #tpu.memory_space<vmem>>, vector<4x16x64xf32>,
    } else {
    }
    %c0 = arith.constant 0 : index
    %c0_1 = arith.constant 0 : index
    %3 = vector.load %arg2[%c0, %c0_1] : memref<32x128xf32, #tpu.memory_space<vmem>>, vector<32x128xf32>
    %4 = arith.truncf %3 : vector<32x128xf32> to vector<32x128xbf16>
    %c0_2 = arith.constant 0 : index
    %c0_3 = arith.constant 0 : index
    %5 = vector.load %arg3[%c0_2, %c0_3] : memref<128x64xbf16, #tpu.memory_space<vmem>>, vector<128x64xbf16>
    %cst = arith.constant dense<0.000000e+00> : vector<32x64xf32>
    %6 = tpu.matmul %4, %5, %cst {dimension_numbers = #tpu.dot_dimension_numbers<[1], [0], [0], [1], [0, 0, 1, 1], [], []>} : vector<32x128xbf16>, vector<128x64xbf16>, vector<32x64xf32> -> vector<32x64xf32>
    %c0_4 = arith.constant 0 : index
    %c0_5 = arith.constant 0 : index
    %c0_6 = arith.constant 0 : index
    %7 = vector.load %arg22[%c0_4, %c0_5, %c0_6] : memref<4x16x64xf32, #tpu.memory_space<vmem>>, vector<4x8x64xf32>
    %8 = vector.shape_cast %6 : vector<32x64xf32> to vector<4x8x64xf32>
    %9 = arith.addf %7, %8 : vector<4x8x64xf32>
    %c0_7 = arith.constant 0 : index
    %c0_8 = arith.constant 0 : index
    %c0_9 = arith.constant 0 : index
    %10 = vector.load %arg22[%c0_7, %c0_8, %c0_9] : memref<4x16x64xf32, #tpu.memory_space<vmem>>, vector<4x8x64xf32>
    tpu.vector_store %arg22[%c0_7, %c0_8, %c0_9], %9 {strides = array<i32>} : memref<4x16x64xf32, #tpu.memory_space<vmem>>, vector<4x8x64xf32>,
    %c1_i32 = arith.constant 1 : i32
    %11 = arith.cmpi eq, %arg1, %c1_i32 : i32
    %12 = arith.extui %11 : i1 to i32
    %c0_i32_10 = arith.constant 0 : i32
    %13 = arith.cmpi ne, %12, %c0_i32_10 : i32
    scf.if %13 {
      %14 = tpu.iota {dimensions = array<i32: 1>} : vector<1x16x1xi32>
      %c8_i32 = arith.constant 8 : i32
      %15 = vector.broadcast %c8_i32 : i32 to vector<1x16x1xi32>
      %16 = arith.cmpi slt, %14, %15 : vector<1x16x1xi32>
      %17 = arith.extui %16 : vector<1x16x1xi1> to vector<1x16x1xi32>
      %18 = arith.sitofp %17 : vector<1x16x1xi32> to vector<1x16x1xf32>
      %c0_11 = arith.constant 0 : index
      %c0_12 = arith.constant 0 : index
      %c0_13 = arith.constant 0 : index
      %19 = vector.load %arg22[%c0_11, %c0_12, %c0_13] : memref<4x16x64xf32, #tpu.memory_space<vmem>>, vector<4x16x64xf32>
      %c0_14 = arith.constant 0 : index
      %c0_15 = arith.constant 0 : index
      %20 = vector.load %arg4[%c0_14, %c0_15] : memref<1x64xf32, #tpu.memory_space<vmem>>, vector<1x64xf32>
      %21 = vector.shape_cast %20 : vector<1x64xf32> to vector<1x1x64xf32>
      %22 = vector.broadcast %18 : vector<1x16x1xf32> to vector<1x16x64xf32>
      %23 = vector.broadcast %21 : vector<1x1x64xf32> to vector<1x16x64xf32>
      %24 = arith.mulf %22, %23 : vector<1x16x64xf32>
      %25 = vector.broadcast %24 : vector<1x16x64xf32> to vector<4x16x64xf32>
      %26 = arith.addf %19, %25 : vector<4x16x64xf32>
      %27 = vector.shape_cast %26 : vector<4x16x64xf32> to vector<64x64xf32>
      %28 = arith.truncf %27 : vector<64x64xf32> to vector<64x64xbf16>
      %c0_16 = arith.constant 0 : index
      %c0_17 = arith.constant 0 : index
      %29 = vector.load %arg5[%c0_16, %c0_17] : memref<64x64xbf16, #tpu.memory_space<vmem>>, vector<64x64xbf16>
      %cst_18 = arith.constant dense<0.000000e+00> : vector<64x64xf32>
      %30 = tpu.matmul %28, %29, %cst_18 {dimension_numbers = #tpu.dot_dimension_numbers<[1], [0], [0], [1], [0, 0, 1, 1], [], []>} : vector<64x64xbf16>, vector<64x64xbf16>, vector<64x64xf32> -> vector<64x64xf32>
      %c0_19 = arith.constant 0 : index
      %c0_20 = arith.constant 0 : index
      %31 = vector.load %arg6[%c0_19, %c0_20] : memref<1x64xf32, #tpu.memory_space<vmem>>, vector<1x64xf32>
      %32 = vector.broadcast %31 : vector<1x64xf32> to vector<64x64xf32>
      %33 = arith.addf %30, %32 : vector<64x64xf32>
      %34 = vector.shape_cast %33 : vector<64x64xf32> to vector<4x16x64xf32>
      %c0_21 = arith.constant 0 : index
      %c0_22 = arith.constant 0 : index
      %35 = vector.load %arg7[%c0_21, %c0_22] : memref<64x64xbf16, #tpu.memory_space<vmem>>, vector<64x64xbf16>
      %cst_23 = arith.constant dense<0.000000e+00> : vector<64x64xf32>
      %36 = tpu.matmul %28, %35, %cst_23 {dimension_numbers = #tpu.dot_dimension_numbers<[1], [0], [0], [1], [0, 0, 1, 1], [], []>} : vector<64x64xbf16>, vector<64x64xbf16>, vector<64x64xf32> -> vector<64x64xf32>
      %c0_24 = arith.constant 0 : index
      %c0_25 = arith.constant 0 : index
      %37 = vector.load %arg8[%c0_24, %c0_25] : memref<1x64xf32, #tpu.memory_space<vmem>>, vector<1x64xf32>
      %38 = vector.broadcast %37 : vector<1x64xf32> to vector<64x64xf32>
      %39 = arith.addf %36, %38 : vector<64x64xf32>
      %40 = vector.shape_cast %39 : vector<64x64xf32> to vector<4x16x64xf32>
      %c0_26 = arith.constant 0 : index
      %c0_27 = arith.constant 0 : index
      %41 = vector.load %arg9[%c0_26, %c0_27] : memref<64x64xbf16, #tpu.memory_space<vmem>>, vector<64x64xbf16>
      %cst_28 = arith.constant dense<0.000000e+00> : vector<64x64xf32>
      %42 = tpu.matmul %28, %41, %cst_28 {dimension_numbers = #tpu.dot_dimension_numbers<[1], [0], [0], [1], [0, 0, 1, 1], [], []>} : vector<64x64xbf16>, vector<64x64xbf16>, vector<64x64xf32> -> vector<64x64xf32>
      %c0_29 = arith.constant 0 : index
      %c0_30 = arith.constant 0 : index
      %43 = vector.load %arg10[%c0_29, %c0_30] : memref<1x64xf32, #tpu.memory_space<vmem>>, vector<1x64xf32>
      %44 = vector.broadcast %43 : vector<1x64xf32> to vector<64x64xf32>
      %45 = arith.addf %42, %44 : vector<64x64xf32>
      %46 = vector.shape_cast %45 : vector<64x64xf32> to vector<4x16x64xf32>
      %47 = tpu.iota {dimensions = array<i32: 2>} : vector<1x1x16xi32>
      %c9_i32 = arith.constant 9 : i32
      %48 = vector.broadcast %c9_i32 : i32 to vector<1x1x16xi32>
      %49 = arith.cmpi slt, %47, %48 : vector<1x1x16xi32>
      %cst_31 = arith.constant 0.000000e+00 : f32
      %cst_32 = arith.constant -1.000000e+30 : f32
      %50 = vector.broadcast %cst_31 : f32 to vector<1x1x16xf32>
      %51 = vector.broadcast %cst_32 : f32 to vector<1x1x16xf32>
      %52 = arith.select %49, %50, %51 : vector<1x1x16xi1>, vector<1x1x16xf32>
      %53 = vector.extract_strided_slice %34 {offsets = [0, 0, 0], sizes = [4, 16, 16], strides = [1, 1, 1]} : vector<4x16x64xf32> to vector<4x16x16xf32>
      %54 = vector.extract_strided_slice %40 {offsets = [0, 0, 0], sizes = [4, 16, 16], strides = [1, 1, 1]} : vector<4x16x64xf32> to vector<4x16x16xf32>
      %55 = vector.extract_strided_slice %46 {offsets = [0, 0, 0], sizes = [4, 16, 16], strides = [1, 1, 1]} : vector<4x16x64xf32> to vector<4x16x16xf32>
      "tpu.trace_start"() <{level = 10 : i32, message = "bqd,bkd->bqk"}> : () -> ()
      %cst_33 = arith.constant dense<0.000000e+00> : vector<4x16x16xf32>
      %56 = tpu.matmul %53, %54, %cst_33 {dimension_numbers = #tpu.dot_dimension_numbers<[2], [2], [1], [1], [0, 0, 0, 1, 1, 1], [0], [0]>} : vector<4x16x16xf32>, vector<4x16x16xf32>, vector<4x16x16xf32> -> vector<4x16x16xf32>
      "tpu.trace_stop"() : () -> ()
      %cst_34 = arith.constant 2.500000e-01 : f32
      %57 = vector.broadcast %cst_34 : f32 to vector<4x16x16xf32>
      %58 = arith.mulf %56, %57 : vector<4x16x16xf32>
      %59 = vector.broadcast %52 : vector<1x1x16xf32> to vector<4x16x16xf32>
      %60 = arith.addf %58, %59 : vector<4x16x16xf32>
      %cst_35 = arith.constant dense<0xFF800000> : vector<4x16xf32>
      %61 = vector.multi_reduction <maximumf>, %60, %cst_35 [2] : vector<4x16x16xf32> to vector<4x16xf32>
      %62 = vector.shape_cast %61 : vector<4x16xf32> to vector<4x16x1xf32>
      %63 = vector.broadcast %62 : vector<4x16x1xf32> to vector<4x16x16xf32>
      %64 = arith.subf %60, %63 : vector<4x16x16xf32>
      %65 = math.exp %64 : vector<4x16x16xf32>
      %cst_36 = arith.constant dense<0.000000e+00> : vector<4x16xf32>
      %66 = vector.multi_reduction <add>, %65, %cst_36 [2] : vector<4x16x16xf32> to vector<4x16xf32>
      %67 = vector.shape_cast %66 : vector<4x16xf32> to vector<4x16x1xf32>
      %68 = tpu.reciprocal %67 {approx = true} : vector<4x16x1xf32> -> vector<4x16x1xf32>
      %69 = vector.broadcast %68 : vector<4x16x1xf32> to vector<4x16x16xf32>
      %70 = arith.mulf %65, %69 : vector<4x16x16xf32>
      "tpu.trace_start"() <{level = 10 : i32, message = "bqk,bkd->bqd"}> : () -> ()
      %cst_37 = arith.constant dense<0.000000e+00> : vector<4x16x16xf32>
      %71 = tpu.matmul %70, %55, %cst_37 {dimension_numbers = #tpu.dot_dimension_numbers<[2], [1], [1], [2], [0, 0, 0, 1, 1, 2], [0], [0]>} : vector<4x16x16xf32>, vector<4x16x16xf32>, vector<4x16x16xf32> -> vector<4x16x16xf32>
      "tpu.trace_stop"() : () -> ()
      %c0_38 = arith.constant 0 : index
      %c0_39 = arith.constant 0 : index
      %c0_40 = arith.constant 0 : index
      %72 = vector.load %arg23[%c0_38, %c0_39, %c0_40] : memref<4x16x64xf32, #tpu.memory_space<vmem>>, vector<4x16x16xf32>
      tpu.vector_store %arg23[%c0_38, %c0_39, %c0_40], %71 {strides = array<i32>} : memref<4x16x64xf32, #tpu.memory_space<vmem>>, vector<4x16x16xf32>,
      %73 = vector.extract_strided_slice %34 {offsets = [0, 0, 16], sizes = [4, 16, 16], strides = [1, 1, 1]} : vector<4x16x64xf32> to vector<4x16x16xf32>
      %74 = vector.extract_strided_slice %40 {offsets = [0, 0, 16], sizes = [4, 16, 16], strides = [1, 1, 1]} : vector<4x16x64xf32> to vector<4x16x16xf32>
      %75 = vector.extract_strided_slice %46 {offsets = [0, 0, 16], sizes = [4, 16, 16], strides = [1, 1, 1]} : vector<4x16x64xf32> to vector<4x16x16xf32>
      "tpu.trace_start"() <{level = 10 : i32, message = "bqd,bkd->bqk"}> : () -> ()
      %cst_41 = arith.constant dense<0.000000e+00> : vector<4x16x16xf32>
      %76 = tpu.matmul %73, %74, %cst_41 {dimension_numbers = #tpu.dot_dimension_numbers<[2], [2], [1], [1], [0, 0, 0, 1, 1, 1], [0], [0]>} : vector<4x16x16xf32>, vector<4x16x16xf32>, vector<4x16x16xf32> -> vector<4x16x16xf32>
      "tpu.trace_stop"() : () -> ()
      %cst_42 = arith.constant 2.500000e-01 : f32
      %77 = vector.broadcast %cst_42 : f32 to vector<4x16x16xf32>
      %78 = arith.mulf %76, %77 : vector<4x16x16xf32>
      %79 = vector.broadcast %52 : vector<1x1x16xf32> to vector<4x16x16xf32>
      %80 = arith.addf %78, %79 : vector<4x16x16xf32>
      %cst_43 = arith.constant dense<0xFF800000> : vector<4x16xf32>
      %81 = vector.multi_reduction <maximumf>, %80, %cst_43 [2] : vector<4x16x16xf32> to vector<4x16xf32>
      %82 = vector.shape_cast %81 : vector<4x16xf32> to vector<4x16x1xf32>
      %83 = vector.broadcast %82 : vector<4x16x1xf32> to vector<4x16x16xf32>
      %84 = arith.subf %80, %83 : vector<4x16x16xf32>
      %85 = math.exp %84 : vector<4x16x16xf32>
      %cst_44 = arith.constant dense<0.000000e+00> : vector<4x16xf32>
      %86 = vector.multi_reduction <add>, %85, %cst_44 [2] : vector<4x16x16xf32> to vector<4x16xf32>
      %87 = vector.shape_cast %86 : vector<4x16xf32> to vector<4x16x1xf32>
      %88 = tpu.reciprocal %87 {approx = true} : vector<4x16x1xf32> -> vector<4x16x1xf32>
      %89 = vector.broadcast %88 : vector<4x16x1xf32> to vector<4x16x16xf32>
      %90 = arith.mulf %85, %89 : vector<4x16x16xf32>
      "tpu.trace_start"() <{level = 10 : i32, message = "bqk,bkd->bqd"}> : () -> ()
      %cst_45 = arith.constant dense<0.000000e+00> : vector<4x16x16xf32>
      %91 = tpu.matmul %90, %75, %cst_45 {dimension_numbers = #tpu.dot_dimension_numbers<[2], [1], [1], [2], [0, 0, 0, 1, 1, 2], [0], [0]>} : vector<4x16x16xf32>, vector<4x16x16xf32>, vector<4x16x16xf32> -> vector<4x16x16xf32>
      "tpu.trace_stop"() : () -> ()
      %c0_46 = arith.constant 0 : index
      %c0_47 = arith.constant 0 : index
      %c16 = arith.constant 16 : index
      %92 = vector.load %arg23[%c0_46, %c0_47, %c16] : memref<4x16x64xf32, #tpu.memory_space<vmem>>, vector<4x16x16xf32>
      tpu.vector_store %arg23[%c0_46, %c0_47, %c16], %91 {strides = array<i32>} : memref<4x16x64xf32, #tpu.memory_space<vmem>>, vector<4x16x16xf32>,
      %93 = vector.extract_strided_slice %34 {offsets = [0, 0, 32], sizes = [4, 16, 16], strides = [1, 1, 1]} : vector<4x16x64xf32> to vector<4x16x16xf32>
      %94 = vector.extract_strided_slice %40 {offsets = [0, 0, 32], sizes = [4, 16, 16], strides = [1, 1, 1]} : vector<4x16x64xf32> to vector<4x16x16xf32>
      %95 = vector.extract_strided_slice %46 {offsets = [0, 0, 32], sizes = [4, 16, 16], strides = [1, 1, 1]} : vector<4x16x64xf32> to vector<4x16x16xf32>
      "tpu.trace_start"() <{level = 10 : i32, message = "bqd,bkd->bqk"}> : () -> ()
      %cst_48 = arith.constant dense<0.000000e+00> : vector<4x16x16xf32>
      %96 = tpu.matmul %93, %94, %cst_48 {dimension_numbers = #tpu.dot_dimension_numbers<[2], [2], [1], [1], [0, 0, 0, 1, 1, 1], [0], [0]>} : vector<4x16x16xf32>, vector<4x16x16xf32>, vector<4x16x16xf32> -> vector<4x16x16xf32>
      "tpu.trace_stop"() : () -> ()
      %cst_49 = arith.constant 2.500000e-01 : f32
      %97 = vector.broadcast %cst_49 : f32 to vector<4x16x16xf32>
      %98 = arith.mulf %96, %97 : vector<4x16x16xf32>
      %99 = vector.broadcast %52 : vector<1x1x16xf32> to vector<4x16x16xf32>
      %100 = arith.addf %98, %99 : vector<4x16x16xf32>
      %cst_50 = arith.constant dense<0xFF800000> : vector<4x16xf32>
      %101 = vector.multi_reduction <maximumf>, %100, %cst_50 [2] : vector<4x16x16xf32> to vector<4x16xf32>
      %102 = vector.shape_cast %101 : vector<4x16xf32> to vector<4x16x1xf32>
      %103 = vector.broadcast %102 : vector<4x16x1xf32> to vector<4x16x16xf32>
      %104 = arith.subf %100, %103 : vector<4x16x16xf32>
      %105 = math.exp %104 : vector<4x16x16xf32>
      %cst_51 = arith.constant dense<0.000000e+00> : vector<4x16xf32>
      %106 = vector.multi_reduction <add>, %105, %cst_51 [2] : vector<4x16x16xf32> to vector<4x16xf32>
      %107 = vector.shape_cast %106 : vector<4x16xf32> to vector<4x16x1xf32>
      %108 = tpu.reciprocal %107 {approx = true} : vector<4x16x1xf32> -> vector<4x16x1xf32>
      %109 = vector.broadcast %108 : vector<4x16x1xf32> to vector<4x16x16xf32>
      %110 = arith.mulf %105, %109 : vector<4x16x16xf32>
      "tpu.trace_start"() <{level = 10 : i32, message = "bqk,bkd->bqd"}> : () -> ()
      %cst_52 = arith.constant dense<0.000000e+00> : vector<4x16x16xf32>
      %111 = tpu.matmul %110, %95, %cst_52 {dimension_numbers = #tpu.dot_dimension_numbers<[2], [1], [1], [2], [0, 0, 0, 1, 1, 2], [0], [0]>} : vector<4x16x16xf32>, vector<4x16x16xf32>, vector<4x16x16xf32> -> vector<4x16x16xf32>
      "tpu.trace_stop"() : () -> ()
      %c0_53 = arith.constant 0 : index
      %c0_54 = arith.constant 0 : index
      %c32 = arith.constant 32 : index
      %112 = vector.load %arg23[%c0_53, %c0_54, %c32] : memref<4x16x64xf32, #tpu.memory_space<vmem>>, vector<4x16x16xf32>
      tpu.vector_store %arg23[%c0_53, %c0_54, %c32], %111 {strides = array<i32>} : memref<4x16x64xf32, #tpu.memory_space<vmem>>, vector<4x16x16xf32>,
      %113 = vector.extract_strided_slice %34 {offsets = [0, 0, 48], sizes = [4, 16, 16], strides = [1, 1, 1]} : vector<4x16x64xf32> to vector<4x16x16xf32>
      %114 = vector.extract_strided_slice %40 {offsets = [0, 0, 48], sizes = [4, 16, 16], strides = [1, 1, 1]} : vector<4x16x64xf32> to vector<4x16x16xf32>
      %115 = vector.extract_strided_slice %46 {offsets = [0, 0, 48], sizes = [4, 16, 16], strides = [1, 1, 1]} : vector<4x16x64xf32> to vector<4x16x16xf32>
      "tpu.trace_start"() <{level = 10 : i32, message = "bqd,bkd->bqk"}> : () -> ()
      %cst_55 = arith.constant dense<0.000000e+00> : vector<4x16x16xf32>
      %116 = tpu.matmul %113, %114, %cst_55 {dimension_numbers = #tpu.dot_dimension_numbers<[2], [2], [1], [1], [0, 0, 0, 1, 1, 1], [0], [0]>} : vector<4x16x16xf32>, vector<4x16x16xf32>, vector<4x16x16xf32> -> vector<4x16x16xf32>
      "tpu.trace_stop"() : () -> ()
      %cst_56 = arith.constant 2.500000e-01 : f32
      %117 = vector.broadcast %cst_56 : f32 to vector<4x16x16xf32>
      %118 = arith.mulf %116, %117 : vector<4x16x16xf32>
      %119 = vector.broadcast %52 : vector<1x1x16xf32> to vector<4x16x16xf32>
      %120 = arith.addf %118, %119 : vector<4x16x16xf32>
      %cst_57 = arith.constant dense<0xFF800000> : vector<4x16xf32>
      %121 = vector.multi_reduction <maximumf>, %120, %cst_57 [2] : vector<4x16x16xf32> to vector<4x16xf32>
      %122 = vector.shape_cast %121 : vector<4x16xf32> to vector<4x16x1xf32>
      %123 = vector.broadcast %122 : vector<4x16x1xf32> to vector<4x16x16xf32>
      %124 = arith.subf %120, %123 : vector<4x16x16xf32>
      %125 = math.exp %124 : vector<4x16x16xf32>
      %cst_58 = arith.constant dense<0.000000e+00> : vector<4x16xf32>
      %126 = vector.multi_reduction <add>, %125, %cst_58 [2] : vector<4x16x16xf32> to vector<4x16xf32>
      %127 = vector.shape_cast %126 : vector<4x16xf32> to vector<4x16x1xf32>
      %128 = tpu.reciprocal %127 {approx = true} : vector<4x16x1xf32> -> vector<4x16x1xf32>
      %129 = vector.broadcast %128 : vector<4x16x1xf32> to vector<4x16x16xf32>
      %130 = arith.mulf %125, %129 : vector<4x16x16xf32>
      "tpu.trace_start"() <{level = 10 : i32, message = "bqk,bkd->bqd"}> : () -> ()
      %cst_59 = arith.constant dense<0.000000e+00> : vector<4x16x16xf32>
      %131 = tpu.matmul %130, %115, %cst_59 {dimension_numbers = #tpu.dot_dimension_numbers<[2], [1], [1], [2], [0, 0, 0, 1, 1, 2], [0], [0]>} : vector<4x16x16xf32>, vector<4x16x16xf32>, vector<4x16x16xf32> -> vector<4x16x16xf32>
      "tpu.trace_stop"() : () -> ()
      %c0_60 = arith.constant 0 : index
      %c0_61 = arith.constant 0 : index
      %c48 = arith.constant 48 : index
      %132 = vector.load %arg23[%c0_60, %c0_61, %c48] : memref<4x16x64xf32, #tpu.memory_space<vmem>>, vector<4x16x16xf32>
      tpu.vector_store %arg23[%c0_60, %c0_61, %c48], %131 {strides = array<i32>} : memref<4x16x64xf32, #tpu.memory_space<vmem>>, vector<4x16x16xf32>,
      %c0_62 = arith.constant 0 : index
      %c0_63 = arith.constant 0 : index
      %c0_64 = arith.constant 0 : index
      %133 = vector.load %arg23[%c0_62, %c0_63, %c0_64] : memref<4x16x64xf32, #tpu.memory_space<vmem>>, vector<4x16x64xf32>
      %134 = vector.shape_cast %133 : vector<4x16x64xf32> to vector<64x64xf32>
      %135 = arith.truncf %134 : vector<64x64xf32> to vector<64x64xbf16>
      %c0_65 = arith.constant 0 : index
      %c0_66 = arith.constant 0 : index
      %136 = vector.load %arg11[%c0_65, %c0_66] : memref<64x64xbf16, #tpu.memory_space<vmem>>, vector<64x64xbf16>
      %cst_67 = arith.constant dense<0.000000e+00> : vector<64x64xf32>
      %137 = tpu.matmul %135, %136, %cst_67 {dimension_numbers = #tpu.dot_dimension_numbers<[1], [0], [0], [1], [0, 0, 1, 1], [], []>} : vector<64x64xbf16>, vector<64x64xbf16>, vector<64x64xf32> -> vector<64x64xf32>
      %c0_68 = arith.constant 0 : index
      %c0_69 = arith.constant 0 : index
      %138 = vector.load %arg12[%c0_68, %c0_69] : memref<1x64xf32, #tpu.memory_space<vmem>>, vector<1x64xf32>
      %139 = vector.broadcast %138 : vector<1x64xf32> to vector<64x64xf32>
      %140 = arith.addf %137, %139 : vector<64x64xf32>
      %141 = arith.addf %27, %140 : vector<64x64xf32>
      %c0_70 = arith.constant 0 : index
      %c0_71 = arith.constant 0 : index
      %142 = vector.load %arg13[%c0_70, %c0_71] : memref<1x64xf32, #tpu.memory_space<vmem>>, vector<1x64xf32>
      %c0_72 = arith.constant 0 : index
      %c0_73 = arith.constant 0 : index
      %143 = vector.load %arg14[%c0_72, %c0_73] : memref<1x64xf32, #tpu.memory_space<vmem>>, vector<1x64xf32>
      %cst_74 = arith.constant dense<0.000000e+00> : vector<64xf32>
      %144 = vector.multi_reduction <add>, %141, %cst_74 [1] : vector<64x64xf32> to vector<64xf32>
      %145 = vector.shape_cast %144 : vector<64xf32> to vector<64x1xf32>
      %cst_75 = arith.constant 6.400000e+01 : f32
      %146 = vector.broadcast %cst_75 : f32 to vector<64x1xf32>
      %147 = arith.divf %145, %146 : vector<64x1xf32>
      %148 = vector.broadcast %147 : vector<64x1xf32> to vector<64x64xf32>
      %149 = arith.subf %141, %148 : vector<64x64xf32>
      %150 = arith.mulf %149, %149 : vector<64x64xf32>
      %cst_76 = arith.constant dense<0.000000e+00> : vector<64xf32>
      %151 = vector.multi_reduction <add>, %150, %cst_76 [1] : vector<64x64xf32> to vector<64xf32>
      %152 = vector.shape_cast %151 : vector<64xf32> to vector<64x1xf32>
      %cst_77 = arith.constant 6.400000e+01 : f32
      %153 = vector.broadcast %cst_77 : f32 to vector<64x1xf32>
      %154 = arith.divf %152, %153 : vector<64x1xf32>
      %155 = vector.broadcast %147 : vector<64x1xf32> to vector<64x64xf32>
      %156 = arith.subf %141, %155 : vector<64x64xf32>
      %cst_78 = arith.constant 9.99999974E-6 : f32
      %157 = vector.broadcast %cst_78 : f32 to vector<64x1xf32>
      %158 = arith.addf %154, %157 : vector<64x1xf32>
      %159 = math.rsqrt %158 : vector<64x1xf32>
      %160 = vector.broadcast %159 : vector<64x1xf32> to vector<64x64xf32>
      %161 = arith.mulf %156, %160 : vector<64x64xf32>
      %162 = vector.broadcast %142 : vector<1x64xf32> to vector<64x64xf32>
      %163 = arith.mulf %161, %162 : vector<64x64xf32>
      %164 = vector.broadcast %143 : vector<1x64xf32> to vector<64x64xf32>
      %165 = arith.addf %163, %164 : vector<64x64xf32>
      %166 = arith.truncf %165 : vector<64x64xf32> to vector<64x64xbf16>
      %c0_79 = arith.constant 0 : index
      %c0_80 = arith.constant 0 : index
      %167 = vector.load %arg15[%c0_79, %c0_80] : memref<64x128xbf16, #tpu.memory_space<vmem>>, vector<64x128xbf16>
      %cst_81 = arith.constant dense<0.000000e+00> : vector<64x128xf32>
      %168 = tpu.matmul %166, %167, %cst_81 {dimension_numbers = #tpu.dot_dimension_numbers<[1], [0], [0], [1], [0, 0, 1, 1], [], []>} : vector<64x64xbf16>, vector<64x128xbf16>, vector<64x128xf32> -> vector<64x128xf32>
      %c0_82 = arith.constant 0 : index
      %c0_83 = arith.constant 0 : index
      %169 = vector.load %arg16[%c0_82, %c0_83] : memref<1x128xf32, #tpu.memory_space<vmem>>, vector<1x128xf32>
      %170 = vector.broadcast %169 : vector<1x128xf32> to vector<64x128xf32>
      %171 = arith.addf %168, %170 : vector<64x128xf32>
      %cst_84 = arith.constant 0.000000e+00 : f32
      %172 = vector.broadcast %cst_84 : f32 to vector<64x128xf32>
      %173 = arith.maximumf %171, %172 : vector<64x128xf32>
      %174 = arith.truncf %173 : vector<64x128xf32> to vector<64x128xbf16>
      %c0_85 = arith.constant 0 : index
      %c0_86 = arith.constant 0 : index
      %175 = vector.load %arg17[%c0_85, %c0_86] : memref<128x64xbf16, #tpu.memory_space<vmem>>, vector<128x64xbf16>
      %cst_87 = arith.constant dense<0.000000e+00> : vector<64x64xf32>
      %176 = tpu.matmul %174, %175, %cst_87 {dimension_numbers = #tpu.dot_dimension_numbers<[1], [0], [0], [1], [0, 0, 1, 1], [], []>} : vector<64x128xbf16>, vector<128x64xbf16>, vector<64x64xf32> -> vector<64x64xf32>
      %c0_88 = arith.constant 0 : index
      %c0_89 = arith.constant 0 : index
      %177 = vector.load %arg18[%c0_88, %c0_89] : memref<1x64xf32, #tpu.memory_space<vmem>>, vector<1x64xf32>
      %178 = vector.broadcast %177 : vector<1x64xf32> to vector<64x64xf32>
      %179 = arith.addf %176, %178 : vector<64x64xf32>
      %180 = arith.addf %165, %179 : vector<64x64xf32>
      %c0_90 = arith.constant 0 : index
      %c0_91 = arith.constant 0 : index
      %181 = vector.load %arg19[%c0_90, %c0_91] : memref<1x64xf32, #tpu.memory_space<vmem>>, vector<1x64xf32>
      %c0_92 = arith.constant 0 : index
      %c0_93 = arith.constant 0 : index
      %182 = vector.load %arg20[%c0_92, %c0_93] : memref<1x64xf32, #tpu.memory_space<vmem>>, vector<1x64xf32>
      %cst_94 = arith.constant dense<0.000000e+00> : vector<64xf32>
      %183 = vector.multi_reduction <add>, %180, %cst_94 [1] : vector<64x64xf32> to vector<64xf32>
      %184 = vector.shape_cast %183 : vector<64xf32> to vector<64x1xf32>
      %cst_95 = arith.constant 6.400000e+01 : f32
      %185 = vector.broadcast %cst_95 : f32 to vector<64x1xf32>
      %186 = arith.divf %184, %185 : vector<64x1xf32>
      %187 = vector.broadcast %186 : vector<64x1xf32> to vector<64x64xf32>
      %188 = arith.subf %180, %187 : vector<64x64xf32>
      %189 = arith.mulf %188, %188 : vector<64x64xf32>
      %cst_96 = arith.constant dense<0.000000e+00> : vector<64xf32>
      %190 = vector.multi_reduction <add>, %189, %cst_96 [1] : vector<64x64xf32> to vector<64xf32>
      %191 = vector.shape_cast %190 : vector<64xf32> to vector<64x1xf32>
      %cst_97 = arith.constant 6.400000e+01 : f32
      %192 = vector.broadcast %cst_97 : f32 to vector<64x1xf32>
      %193 = arith.divf %191, %192 : vector<64x1xf32>
      %194 = vector.broadcast %186 : vector<64x1xf32> to vector<64x64xf32>
      %195 = arith.subf %180, %194 : vector<64x64xf32>
      %cst_98 = arith.constant 9.99999974E-6 : f32
      %196 = vector.broadcast %cst_98 : f32 to vector<64x1xf32>
      %197 = arith.addf %193, %196 : vector<64x1xf32>
      %198 = math.rsqrt %197 : vector<64x1xf32>
      %199 = vector.broadcast %198 : vector<64x1xf32> to vector<64x64xf32>
      %200 = arith.mulf %195, %199 : vector<64x64xf32>
      %201 = vector.broadcast %181 : vector<1x64xf32> to vector<64x64xf32>
      %202 = arith.mulf %200, %201 : vector<64x64xf32>
      %203 = vector.broadcast %182 : vector<1x64xf32> to vector<64x64xf32>
      %204 = arith.addf %202, %203 : vector<64x64xf32>
      %205 = vector.shape_cast %204 : vector<64x64xf32> to vector<4x16x64xf32>
      %206 = vector.extract_strided_slice %205 {offsets = [0, 8, 0], sizes = [4, 1, 64], strides = [1, 1, 1]} : vector<4x16x64xf32> to vector<4x1x64xf32>
      %c0_99 = arith.constant 0 : index
      %c0_100 = arith.constant 0 : index
      %c0_101 = arith.constant 0 : index
      %207 = vector.load %arg21[%c0_99, %c0_100, %c0_101] : memref<4x1x64xf32, #tpu.memory_space<vmem>>, vector<4x1x64xf32>
      tpu.vector_store %arg21[%c0_99, %c0_100, %c0_101], %206 {strides = array<i32>} : memref<4x1x64xf32, #tpu.memory_space<vmem>>, vector<4x1x64xf32>,
    } else {
    }
    return
  }
  func.func @transform_0(%arg0: i32, %arg1: i32) -> (i32, i32) {
    %c0_i32 = arith.constant 0 : i32
    return %arg0, %arg1 : i32, i32
  }
  func.func @transform_1(%arg0: i32, %arg1: i32) -> (i32, i32) {
    %c0_i32 = arith.constant 0 : i32
    %c0_i32_0 = arith.constant 0 : i32
    return %arg1, %c0_i32 : i32, i32
  }
  func.func @transform_2(%arg0: i32, %arg1: i32) -> (i32, i32) {
    %c0_i32 = arith.constant 0 : i32
    %c0_i32_0 = arith.constant 0 : i32
    %c0_i32_1 = arith.constant 0 : i32
    return %c0_i32, %c0_i32_0 : i32, i32
  }
  func.func @transform_3(%arg0: i32, %arg1: i32) -> (i32, i32) {
    %c0_i32 = arith.constant 0 : i32
    %c0_i32_0 = arith.constant 0 : i32
    %c0_i32_1 = arith.constant 0 : i32
    return %c0_i32, %c0_i32_0 : i32, i32
  }
  func.func @transform_4(%arg0: i32, %arg1: i32) -> (i32, i32) {
    %c0_i32 = arith.constant 0 : i32
    %c0_i32_0 = arith.constant 0 : i32
    %c0_i32_1 = arith.constant 0 : i32
    return %c0_i32, %c0_i32_0 : i32, i32
  }
  func.func @transform_5(%arg0: i32, %arg1: i32) -> (i32, i32) {
    %c0_i32 = arith.constant 0 : i32
    %c0_i32_0 = arith.constant 0 : i32
    %c0_i32_1 = arith.constant 0 : i32
    return %c0_i32, %c0_i32_0 : i32, i32
  }
  func.func @transform_6(%arg0: i32, %arg1: i32) -> (i32, i32) {
    %c0_i32 = arith.constant 0 : i32
    %c0_i32_0 = arith.constant 0 : i32
    %c0_i32_1 = arith.constant 0 : i32
    return %c0_i32, %c0_i32_0 : i32, i32
  }
  func.func @transform_7(%arg0: i32, %arg1: i32) -> (i32, i32) {
    %c0_i32 = arith.constant 0 : i32
    %c0_i32_0 = arith.constant 0 : i32
    %c0_i32_1 = arith.constant 0 : i32
    return %c0_i32, %c0_i32_0 : i32, i32
  }
  func.func @transform_8(%arg0: i32, %arg1: i32) -> (i32, i32) {
    %c0_i32 = arith.constant 0 : i32
    %c0_i32_0 = arith.constant 0 : i32
    %c0_i32_1 = arith.constant 0 : i32
    return %c0_i32, %c0_i32_0 : i32, i32
  }
  func.func @transform_9(%arg0: i32, %arg1: i32) -> (i32, i32) {
    %c0_i32 = arith.constant 0 : i32
    %c0_i32_0 = arith.constant 0 : i32
    %c0_i32_1 = arith.constant 0 : i32
    return %c0_i32, %c0_i32_0 : i32, i32
  }
  func.func @transform_10(%arg0: i32, %arg1: i32) -> (i32, i32) {
    %c0_i32 = arith.constant 0 : i32
    %c0_i32_0 = arith.constant 0 : i32
    %c0_i32_1 = arith.constant 0 : i32
    return %c0_i32, %c0_i32_0 : i32, i32
  }
  func.func @transform_11(%arg0: i32, %arg1: i32) -> (i32, i32) {
    %c0_i32 = arith.constant 0 : i32
    %c0_i32_0 = arith.constant 0 : i32
    %c0_i32_1 = arith.constant 0 : i32
    return %c0_i32, %c0_i32_0 : i32, i32
  }
  func.func @transform_12(%arg0: i32, %arg1: i32) -> (i32, i32) {
    %c0_i32 = arith.constant 0 : i32
    %c0_i32_0 = arith.constant 0 : i32
    %c0_i32_1 = arith.constant 0 : i32
    return %c0_i32, %c0_i32_0 : i32, i32
  }
  func.func @transform_13(%arg0: i32, %arg1: i32) -> (i32, i32) {
    %c0_i32 = arith.constant 0 : i32
    %c0_i32_0 = arith.constant 0 : i32
    %c0_i32_1 = arith.constant 0 : i32
    return %c0_i32, %c0_i32_0 : i32, i32
  }
  func.func @transform_14(%arg0: i32, %arg1: i32) -> (i32, i32) {
    %c0_i32 = arith.constant 0 : i32
    %c0_i32_0 = arith.constant 0 : i32
    %c0_i32_1 = arith.constant 0 : i32
    return %c0_i32, %c0_i32_0 : i32, i32
  }
  func.func @transform_15(%arg0: i32, %arg1: i32) -> (i32, i32) {
    %c0_i32 = arith.constant 0 : i32
    %c0_i32_0 = arith.constant 0 : i32
    %c0_i32_1 = arith.constant 0 : i32
    return %c0_i32, %c0_i32_0 : i32, i32
  }
  func.func @transform_16(%arg0: i32, %arg1: i32) -> (i32, i32) {
    %c0_i32 = arith.constant 0 : i32
    %c0_i32_0 = arith.constant 0 : i32
    %c0_i32_1 = arith.constant 0 : i32
    return %c0_i32, %c0_i32_0 : i32, i32
  }
  func.func @transform_17(%arg0: i32, %arg1: i32) -> (i32, i32) {
    %c0_i32 = arith.constant 0 : i32
    %c0_i32_0 = arith.constant 0 : i32
    %c0_i32_1 = arith.constant 0 : i32
    return %c0_i32, %c0_i32_0 : i32, i32
  }
  func.func @transform_18(%arg0: i32, %arg1: i32) -> (i32, i32) {
    %c0_i32 = arith.constant 0 : i32
    %c0_i32_0 = arith.constant 0 : i32
    %c0_i32_1 = arith.constant 0 : i32
    return %c0_i32, %c0_i32_0 : i32, i32
  }
  func.func @transform_19(%arg0: i32, %arg1: i32) -> (i32, i32, i32) {
    %c0_i32 = arith.constant 0 : i32
    %c0_i32_0 = arith.constant 0 : i32
    %c0_i32_1 = arith.constant 0 : i32
    return %arg0, %c0_i32, %c0_i32_0 : i32, i32, i32
  }
}

</mosaic_0001>

<llo_original>
// kernel: tpu_custom_call.1
$region0: #{tpu_custom_call.1}
  #allocation0 [shape = 'u32[]', space=smem, size = 0x4, offset = 0x4, fixed_abs, tag = 'smem constant byte address 0x4 - core index']
  #allocation1 [shape = 'u32[144,128]{1,0:T(1,128)}', space=vmem, size = 0x12000, scoped, tag = 'internal scratch']
  #allocation2 [shape = 'f32[4,16,64]{2,1,0:T(8,128)}', space=vmem, size = 0x8000, scoped, tag = 'scratch operand']
  #allocation3 [shape = 'f32[4,16,64]{2,1,0:T(8,128)}', space=vmem, size = 0x8000, scoped, tag = 'scratch operand']
  %s0 = inlined_call_operand.hbm [shape: f32[64,256], index: 0, kind: input, shape index: {}]
  %s1 = inlined_call_operand.hbm [shape: bf16[256,64], index: 1, kind: input, shape index: {}]
  %s2 = inlined_call_operand.hbm [shape: f32[1,64], index: 2, kind: input, shape index: {}]
  %s3 = inlined_call_operand.hbm [shape: bf16[64,64], index: 3, kind: input, shape index: {}]
  %s4 = inlined_call_operand.hbm [shape: f32[1,64], index: 4, kind: input, shape index: {}]
  %s5 = inlined_call_operand.hbm [shape: bf16[64,64], index: 5, kind: input, shape index: {}]
  %s6 = inlined_call_operand.hbm [shape: f32[1,64], index: 6, kind: input, shape index: {}]
  %s7 = inlined_call_operand.hbm [shape: bf16[64,64], index: 7, kind: input, shape index: {}]
  %s8 = inlined_call_operand.hbm [shape: f32[1,64], index: 8, kind: input, shape index: {}]
  %s9 = inlined_call_operand.hbm [shape: bf16[64,64], index: 9, kind: input, shape index: {}]
  %s10 = inlined_call_operand.hbm [shape: f32[1,64], index: 10, kind: input, shape index: {}]
  %s11 = inlined_call_operand.hbm [shape: f32[1,64], index: 11, kind: input, shape index: {}]
  %s12 = inlined_call_operand.hbm [shape: f32[1,64], index: 12, kind: input, shape index: {}]
  %s13 = inlined_call_operand.hbm [shape: bf16[64,128], index: 13, kind: input, shape index: {}]
  %s14 = inlined_call_operand.hbm [shape: f32[1,128], index: 14, kind: input, shape index: {}]
  %s15 = inlined_call_operand.hbm [shape: bf16[128,64], index: 15, kind: input, shape index: {}]
  %s16 = inlined_call_operand.hbm [shape: f32[1,64], index: 16, kind: input, shape index: {}]
  %s17 = inlined_call_operand.hbm [shape: f32[1,64], index: 17, kind: input, shape index: {}]
  %s18 = inlined_call_operand.hbm [shape: f32[1,64], index: 18, kind: input, shape index: {}]
  %s19 = inlined_call_operand.hbm [shape: f32[8,1,64], index: 19, kind: output, shape index: {}]
  %s20 = sld [smem:[#allocation0]]
  $region193: #{tpu_custom_call.1} parent=0
    _
  %s22 = ssub.s32 1, %s20
  %s23 = scalar_select 0, %s22, %s20
  $region1: #{tpu_custom_call.1} parent=0
    #allocation4 [shape = 'u8[32768]{0}', space=vmem, size = 0x8000, scoped, tag = 'input window, operand 0']
    #allocation5 [shape = 's32[2]{0}', space=sflag, size = 0x8, scoped, tag = 'scoped memory for tpu_custom_call.1']
    #allocation6 [shape = 's32[2]{0}', space=sflag, size = 0x8, scoped, tag = 'scoped memory for tpu_custom_call.1']
    #allocation7 [shape = 'u8[65536]{0}', space=vmem, size = 0x10000, scoped, tag = 'input window, operand 1']
    #allocation8 [shape = 's32[2]{0}', space=sflag, size = 0x8, scoped, tag = 'scoped memory for tpu_custom_call.1']
    #allocation9 [shape = 'u8[512]{0}', space=vmem, size = 0x400, scoped, tag = 'input window, operand 2, single buffered']
    #allocation10 [shape = 'u8[16384]{0}', space=vmem, size = 0x4000, scoped, tag = 'input window, operand 3, single buffered']
    #allocation11 [shape = 's32[1]{0}', space=sflag, size = 0x4, scoped, tag = 'scoped memory for tpu_custom_call.1']
    #allocation12 [shape = 'u8[512]{0}', space=vmem, size = 0x400, scoped, tag = 'input window, operand 4, single buffered']
    #allocation13 [shape = 'u8[16384]{0}', space=vmem, size = 0x4000, scoped, tag = 'input window, operand 5, single buffered']
    #allocation14 [shape = 's32[1]{0}', space=sflag, size = 0x4, scoped, tag = 'scoped memory for tpu_custom_call.1']
    #allocation15 [shape = 'u8[512]{0}', space=vmem, size = 0x400, scoped, tag = 'input window, operand 6, single buffered']
    #allocation16 [shape = 'u8[16384]{0}', space=vmem, size = 0x4000, scoped, tag = 'input window, operand 7, single buffered']
    #allocation17 [shape = 's32[1]{0}', space=sflag, size = 0x4, scoped, tag = 'scoped memory for tpu_custom_call.1']
    #allocation18 [shape = 'u8[512]{0}', space=vmem, size = 0x400, scoped, tag = 'input window, operand 8, single buffered']
    #allocation19 [shape = 'u8[16384]{0}', space=vmem, size = 0x4000, scoped, tag = 'input window, operand 9, single buffered']
    #allocation20 [shape = 's32[1]{0}', space=sflag, size = 0x4, scoped, tag = 'scoped memory for tpu_custom_call.1']
    #allocation21 [shape = 'u8[512]{0}', space=vmem, size = 0x400, scoped, tag = 'input window, operand 10, single buffered']
    #allocation22 [shape = 'u8[512]{0}', space=vmem, size = 0x400, scoped, tag = 'input window, operand 11, single buffered']
    #allocation23 [shape = 's32[1]{0}', space=sflag, size = 0x4, scoped, tag = 'scoped memory for tpu_custom_call.1']
    #allocation24 [shape = 'u8[512]{0}', space=vmem, size = 0x400, scoped, tag = 'input window, operand 12, single buffered']
    #allocation25 [shape = 'u8[16384]{0}', space=vmem, size = 0x4000, scoped, tag = 'input window, operand 13, single buffered']
    #allocation26 [shape = 's32[1]{0}', space=sflag, size = 0x4, scoped, tag = 'scoped memory for tpu_custom_call.1']
    #allocation27 [shape = 'u8[512]{0}', space=vmem, size = 0x400, scoped, tag = 'input window, operand 14, single buffered']
    #allocation28 [shape = 'u8[32768]{0}', space=vmem, size = 0x8000, scoped, tag = 'input window, operand 15, single buffered']
    #allocation29 [shape = 's32[1]{0}', space=sflag, size = 0x4, scoped, tag = 'scoped memory for tpu_custom_call.1']
    #allocation30 [shape = 'u8[512]{0}', space=vmem, size = 0x400, scoped, tag = 'input window, operand 16, single buffered']
    #allocation31 [shape = 'u8[512]{0}', space=vmem, size = 0x400, scoped, tag = 'input window, operand 17, single buffered']
    #allocation32 [shape = 's32[1]{0}', space=sflag, size = 0x4, scoped, tag = 'scoped memory for tpu_custom_call.1']
    #allocation33 [shape = 'u8[512]{0}', space=vmem, size = 0x400, scoped, tag = 'input window, operand 18, single buffered']
    #allocation34 [shape = 'u8[4096]{0}', space=vmem, size = 0x1000, scoped, tag = 'output window, operand 0']
    %24 = vsyncpa [#allocation5], 0
    %s25 = scalar_lea.sflag [#allocation5], 1
    %26 = vsyncpa %s25, 0
    %27 = vsyncpa [#allocation8], 0
    %s28 = scalar_lea.sflag [#allocation8], 1
    %29 = vsyncpa %s28, 0
    %30 = vsyncpa [#allocation11], 0
    %31 = vsyncpa [#allocation14], 0
    %32 = vsyncpa [#allocation17], 0
    %33 = vsyncpa [#allocation20], 0
    %34 = vsyncpa [#allocation23], 0
    %35 = vsyncpa [#allocation26], 0
    %36 = vsyncpa [#allocation29], 0
    %37 = vsyncpa [#allocation32], 0
    %38 = vsyncpa [#allocation6], 0
    %s39 = scalar_lea.sflag [#allocation6], 1
    %40 = vsyncpa %s39, 0
    loop: start=0, step=1, limit=6
    $region2: #{tpu_custom_call.1} parent=1 // loop_pre_header
      _
    $region3: #{tpu_custom_call.1} parent=1 // loop_header
      %s42 = sphi 0, %s46
      %p43 = scmp.ge.s32.totalorder %s42, 6
      %s49 = sphi 0, %s61
      %s50 = sphi 0, %s57
      %s51 = sphi 0, %s49
      %s52 = sphi 0, %s50
      %s53 = sphi 0, %s51
      %s54 = sphi 0, %s52
      %s66 = sphi 0, %s68
      %s69 = sphi 0, %s66
      %s70 = sphi 0, %s69
      %s86 = sphi 0, %s70
      %s92 = sphi 0, %s94
      %s95 = sphi 0, %s92
      %s96 = sphi 0, %s95
      %s112 = sphi 0, %s96
      %s116 = sphi 0, %s116
      %s118 = sphi 0, %s116
      %s119 = sphi 0, %s118
      %s133 = sphi 0, %s119
      %s137 = sphi 0, %s137
      %s139 = sphi 0, %s137
      %s140 = sphi 0, %s139
      %s154 = sphi 0, %s140
      %s158 = sphi 0, %s158
      %s160 = sphi 0, %s158
      %s161 = sphi 0, %s160
      %s175 = sphi 0, %s161
      %s179 = sphi 0, %s179
      %s181 = sphi 0, %s179
      %s182 = sphi 0, %s181
      %s196 = sphi 0, %s182
      %s200 = sphi 0, %s200
      %s202 = sphi 0, %s200
      %s203 = sphi 0, %s202
      %s217 = sphi 0, %s203
      %s221 = sphi 0, %s221
      %s223 = sphi 0, %s221
      %s224 = sphi 0, %s223
      %s238 = sphi 0, %s224
      %s242 = sphi 0, %s242
      %s244 = sphi 0, %s242
      %s245 = sphi 0, %s244
      %s259 = sphi 0, %s245
      %s263 = sphi 0, %s263
      %s265 = sphi 0, %s263
      %s266 = sphi 0, %s265
      %s280 = sphi 0, %s266
      %s284 = sphi 0, %s284
      %s286 = sphi 0, %s284
      %s287 = sphi 0, %s286
      %s301 = sphi 0, %s287
      %s305 = sphi 0, %s305
      %s307 = sphi 0, %s305
      %s308 = sphi 0, %s307
      %s322 = sphi 0, %s308
      %s326 = sphi 0, %s326
      %s328 = sphi 0, %s326
      %s329 = sphi 0, %s328
      %s343 = sphi 0, %s329
      %s347 = sphi 0, %s347
      %s349 = sphi 0, %s347
      %s350 = sphi 0, %s349
      %s364 = sphi 0, %s350
      %s368 = sphi 0, %s368
      %s370 = sphi 0, %s368
      %s371 = sphi 0, %s370
      %s385 = sphi 0, %s371
      %s389 = sphi 0, %s389
      %s391 = sphi 0, %s389
      %s392 = sphi 0, %s391
      %s406 = sphi 0, %s392
      %s410 = sphi 0, %s410
      %s412 = sphi 0, %s410
      %s413 = sphi 0, %s412
      %s427 = sphi 0, %s413
      %s431 = sphi 0, %s431
      %s433 = sphi 0, %s431
      %s434 = sphi 0, %s433
      %s448 = sphi 0, %s434
      %s452 = sphi 0, %s452
      %s454 = sphi 0, %s452
      %s455 = sphi 0, %s454
      %s469 = sphi 0, %s455
      %s475 = sphi 0, %s477
      %s478 = sphi 0, %s475
      %s479 = sphi 0, %s478
      %s495 = sphi 0, %s479
    $region4: #{tpu_custom_call.1} parent=1 // loop_header_branch
      %45 = sbr.rel (%p43) target = $region8
    $region5: #{tpu_custom_call.1} parent=1 // loop_body
      %s47 = ssub.s32 %s42, 1
      %s48 = ssub.s32 %s42, 2
      %s55 = sadd.s32 1, %s50
      %p56 = scmp.ge.s32.totalorder %s55, 2
      %s57 = scalar_select %p56, 0, %s55
      %s58 = sadd.s32 1, %s49
      %s59 = scalar_select %p56, %s58, %s49
      %p60 = scmp.ge.s32.totalorder %s59, 2
      %s61 = scalar_select %p60, 0, %s59
      %s62 = ssub.s32 %s49, %s61
      %s63 = ssub.s32 %s50, %s57
      %s64 = sor.u32 %s62, %s63
      %p65 = scmp.eq.s32.totalorder %s64, 0
      %s67 = sadd.s32 %s66, 1
      %s68 = scalar_select %p65, %s66, %s67
      %p71 = pneg %p65
      %p72 = scmp.eq.s32.totalorder %s42, 3
      %p73 = por %p71, %p72
      %p74 = scmp.ne.s32.totalorder %s66, %s69
      %p75 = scmp.eq.s32.totalorder %s42, 0
      %p76 = por %p74, %p75
      %p77 = scmp.ne.s32.totalorder %s66, %s69
      %p78 = scmp.eq.s32.totalorder %s47, 3
      %p79 = por %p77, %p78
      %p80 = scmp.ne.s32.totalorder %s69, %s70
      %p81 = scmp.eq.s32.totalorder %s47, 0
      %p82 = por %p80, %p81
      %p83 = scmp.ne.s32.totalorder %s69, %s70
      %p84 = scmp.eq.s32.totalorder %s48, 3
      %p85 = por %p83, %p84
      %p87 = scmp.ne.s32.totalorder %s70, %s86
      %p88 = scmp.eq.s32.totalorder %s48, 0
      %p89 = por %p87, %p88
      %s90 = ssub.s32 %s50, %s57
      %p91 = scmp.eq.s32.totalorder %s90, 0
      %s93 = sadd.s32 %s92, 1
      %s94 = scalar_select %p91, %s92, %s93
      %p97 = pneg %p91
      %p98 = scmp.eq.s32.totalorder %s42, 3
      %p99 = por %p97, %p98
      %p100 = scmp.ne.s32.totalorder %s92, %s95
      %p101 = scmp.eq.s32.totalorder %s42, 0
      %p102 = por %p100, %p101
      %p103 = scmp.ne.s32.totalorder %s92, %s95
      %p104 = scmp.eq.s32.totalorder %s47, 3
      %p105 = por %p103, %p104
      %p106 = scmp.ne.s32.totalorder %s95, %s96
      %p107 = scmp.eq.s32.totalorder %s47, 0
      %p108 = por %p106, %p107
      %p109 = scmp.ne.s32.totalorder %s95, %s96
      %p110 = scmp.eq.s32.totalorder %s48, 3
      %p111 = por %p109, %p110
      %p113 = scmp.ne.s32.totalorder %s96, %s112
      %p114 = scmp.eq.s32.totalorder %s48, 0
      %p115 = por %p113, %p114
      %s117 = sadd.s32 %s116, 1
      %p120 = scmp.eq.s32.totalorder %s42, 3
      %p121 = scmp.ne.s32.totalorder %s116, %s118
      %p122 = scmp.eq.s32.totalorder %s42, 0
      %p123 = por %p121, %p122
      %p124 = scmp.ne.s32.totalorder %s116, %s118
      %p125 = scmp.eq.s32.totalorder %s47, 3
      %p126 = por %p124, %p125
      %p127 = scmp.ne.s32.totalorder %s118, %s119
      %p128 = scmp.eq.s32.totalorder %s47, 0
      %p129 = por %p127, %p128
      %p130 = scmp.ne.s32.totalorder %s118, %s119
      %p131 = scmp.eq.s32.totalorder %s48, 3
      %p132 = por %p130, %p131
      %p134 = scmp.ne.s32.totalorder %s119, %s133
      %p135 = scmp.eq.s32.totalorder %s48, 0
      %p136 = por %p134, %p135
      %s138 = sadd.s32 %s137, 1
      %p141 = scmp.eq.s32.totalorder %s42, 3
      %p142 = scmp.ne.s32.totalorder %s137, %s139
      %p143 = scmp.eq.s32.totalorder %s42, 0
      %p144 = por %p142, %p143
      %p145 = scmp.ne.s32.totalorder %s137, %s139
      %p146 = scmp.eq.s32.totalorder %s47, 3
      %p147 = por %p145, %p146
      %p148 = scmp.ne.s32.totalorder %s139, %s140
      %p149 = scmp.eq.s32.totalorder %s47, 0
      %p150 = por %p148, %p149
      %p151 = scmp.ne.s32.totalorder %s139, %s140
      %p152 = scmp.eq.s32.totalorder %s48, 3
      %p153 = por %p151, %p152
      %p155 = scmp.ne.s32.totalorder %s140, %s154
      %p156 = scmp.eq.s32.totalorder %s48, 0
      %p157 = por %p155, %p156
      %s159 = sadd.s32 %s158, 1
      %p162 = scmp.eq.s32.totalorder %s42, 3
      %p163 = scmp.ne.s32.totalorder %s158, %s160
      %p164 = scmp.eq.s32.totalorder %s42, 0
      %p165 = por %p163, %p164
      %p166 = scmp.ne.s32.totalorder %s158, %s160
      %p167 = scmp.eq.s32.totalorder %s47, 3
      %p168 = por %p166, %p167
      %p169 = scmp.ne.s32.totalorder %s160, %s161
      %p170 = scmp.eq.s32.totalorder %s47, 0
      %p171 = por %p169, %p170
      %p172 = scmp.ne.s32.totalorder %s160, %s161
      %p173 = scmp.eq.s32.totalorder %s48, 3
      %p174 = por %p172, %p173
      %p176 = scmp.ne.s32.totalorder %s161, %s175
      %p177 = scmp.eq.s32.totalorder %s48, 0
      %p178 = por %p176, %p177
      %s180 = sadd.s32 %s179, 1
      %p183 = scmp.eq.s32.totalorder %s42, 3
      %p184 = scmp.ne.s32.totalorder %s179, %s181
      %p185 = scmp.eq.s32.totalorder %s42, 0
      %p186 = por %p184, %p185
      %p187 = scmp.ne.s32.totalorder %s179, %s181
      %p188 = scmp.eq.s32.totalorder %s47, 3
      %p189 = por %p187, %p188
      %p190 = scmp.ne.s32.totalorder %s181, %s182
      %p191 = scmp.eq.s32.totalorder %s47, 0
      %p192 = por %p190, %p191
      %p193 = scmp.ne.s32.totalorder %s181, %s182
      %p194 = scmp.eq.s32.totalorder %s48, 3
      %p195 = por %p193, %p194
      %p197 = scmp.ne.s32.totalorder %s182, %s196
      %p198 = scmp.eq.s32.totalorder %s48, 0
      %p199 = por %p197, %p198
      %s201 = sadd.s32 %s200, 1
      %p204 = scmp.eq.s32.totalorder %s42, 3
      %p205 = scmp.ne.s32.totalorder %s200, %s202
      %p206 = scmp.eq.s32.totalorder %s42, 0
      %p207 = por %p205, %p206
      %p208 = scmp.ne.s32.totalorder %s200, %s202
      %p209 = scmp.eq.s32.totalorder %s47, 3
      %p210 = por %p208, %p209
      %p211 = scmp.ne.s32.totalorder %s202, %s203
      %p212 = scmp.eq.s32.totalorder %s47, 0
      %p213 = por %p211, %p212
      %p214 = scmp.ne.s32.totalorder %s202, %s203
      %p215 = scmp.eq.s32.totalorder %s48, 3
      %p216 = por %p214, %p215
      %p218 = scmp.ne.s32.totalorder %s203, %s217
      %p219 = scmp.eq.s32.totalorder %s48, 0
      %p220 = por %p218, %p219
      %s222 = sadd.s32 %s221, 1
      %p225 = scmp.eq.s32.totalorder %s42, 3
      %p226 = scmp.ne.s32.totalorder %s221, %s223
      %p227 = scmp.eq.s32.totalorder %s42, 0
      %p228 = por %p226, %p227
      %p229 = scmp.ne.s32.totalorder %s221, %s223
      %p230 = scmp.eq.s32.totalorder %s47, 3
      %p231 = por %p229, %p230
      %p232 = scmp.ne.s32.totalorder %s223, %s224
      %p233 = scmp.eq.s32.totalorder %s47, 0
      %p234 = por %p232, %p233
      %p235 = scmp.ne.s32.totalorder %s223, %s224
      %p236 = scmp.eq.s32.totalorder %s48, 3
      %p237 = por %p235, %p236
      %p239 = scmp.ne.s32.totalorder %s224, %s238
      %p240 = scmp.eq.s32.totalorder %s48, 0
      %p241 = por %p239, %p240
      %s243 = sadd.s32 %s242, 1
      %p246 = scmp.eq.s32.totalorder %s42, 3
      %p247 = scmp.ne.s32.totalorder %s242, %s244
      %p248 = scmp.eq.s32.totalorder %s42, 0
      %p249 = por %p247, %p248
      %p250 = scmp.ne.s32.totalorder %s242, %s244
      %p251 = scmp.eq.s32.totalorder %s47, 3
      %p252 = por %p250, %p251
      %p253 = scmp.ne.s32.totalorder %s244, %s245
      %p254 = scmp.eq.s32.totalorder %s47, 0
      %p255 = por %p253, %p254
      %p256 = scmp.ne.s32.totalorder %s244, %s245
      %p257 = scmp.eq.s32.totalorder %s48, 3
      %p258 = por %p256, %p257
      %p260 = scmp.ne.s32.totalorder %s245, %s259
      %p261 = scmp.eq.s32.totalorder %s48, 0
      %p262 = por %p260, %p261
      %s264 = sadd.s32 %s263, 1
      %p267 = scmp.eq.s32.totalorder %s42, 3
      %p268 = scmp.ne.s32.totalorder %s263, %s265
      %p269 = scmp.eq.s32.totalorder %s42, 0
      %p270 = por %p268, %p269
      %p271 = scmp.ne.s32.totalorder %s263, %s265
      %p272 = scmp.eq.s32.totalorder %s47, 3
      %p273 = por %p271, %p272
      %p274 = scmp.ne.s32.totalorder %s265, %s266
      %p275 = scmp.eq.s32.totalorder %s47, 0
      %p276 = por %p274, %p275
      %p277 = scmp.ne.s32.totalorder %s265, %s266
      %p278 = scmp.eq.s32.totalorder %s48, 3
      %p279 = por %p277, %p278
      %p281 = scmp.ne.s32.totalorder %s266, %s280
      %p282 = scmp.eq.s32.totalorder %s48, 0
      %p283 = por %p281, %p282
      %s285 = sadd.s32 %s284, 1
      %p288 = scmp.eq.s32.totalorder %s42, 3
      %p289 = scmp.ne.s32.totalorder %s284, %s286
      %p290 = scmp.eq.s32.totalorder %s42, 0
      %p291 = por %p289, %p290
      %p292 = scmp.ne.s32.totalorder %s284, %s286
      %p293 = scmp.eq.s32.totalorder %s47, 3
      %p294 = por %p292, %p293
      %p295 = scmp.ne.s32.totalorder %s286, %s287
      %p296 = scmp.eq.s32.totalorder %s47, 0
      %p297 = por %p295, %p296
      %p298 = scmp.ne.s32.totalorder %s286, %s287
      %p299 = scmp.eq.s32.totalorder %s48, 3
      %p300 = por %p298, %p299
      %p302 = scmp.ne.s32.totalorder %s287, %s301
      %p303 = scmp.eq.s32.totalorder %s48, 0
      %p304 = por %p302, %p303
      %s306 = sadd.s32 %s305, 1
      %p309 = scmp.eq.s32.totalorder %s42, 3
      %p310 = scmp.ne.s32.totalorder %s305, %s307
      %p311 = scmp.eq.s32.totalorder %s42, 0
      %p312 = por %p310, %p311
      %p313 = scmp.ne.s32.totalorder %s305, %s307
      %p314 = scmp.eq.s32.totalorder %s47, 3
      %p315 = por %p313, %p314
      %p316 = scmp.ne.s32.totalorder %s307, %s308
      %p317 = scmp.eq.s32.totalorder %s47, 0
      %p318 = por %p316, %p317
      %p319 = scmp.ne.s32.totalorder %s307, %s308
      %p320 = scmp.eq.s32.totalorder %s48, 3
      %p321 = por %p319, %p320
      %p323 = scmp.ne.s32.totalorder %s308, %s322
      %p324 = scmp.eq.s32.totalorder %s48, 0
      %p325 = por %p323, %p324
      %s327 = sadd.s32 %s326, 1
      %p330 = scmp.eq.s32.totalorder %s42, 3
      %p331 = scmp.ne.s32.totalorder %s326, %s328
      %p332 = scmp.eq.s32.totalorder %s42, 0
      %p333 = por %p331, %p332
      %p334 = scmp.ne.s32.totalorder %s326, %s328
      %p335 = scmp.eq.s32.totalorder %s47, 3
      %p336 = por %p334, %p335
      %p337 = scmp.ne.s32.totalorder %s328, %s329
      %p338 = scmp.eq.s32.totalorder %s47, 0
      %p339 = por %p337, %p338
      %p340 = scmp.ne.s32.totalorder %s328, %s329
      %p341 = scmp.eq.s32.totalorder %s48, 3
      %p342 = por %p340, %p341
      %p344 = scmp.ne.s32.totalorder %s329, %s343
      %p345 = scmp.eq.s32.totalorder %s48, 0
      %p346 = por %p344, %p345
      %s348 = sadd.s32 %s347, 1
      %p351 = scmp.eq.s32.totalorder %s42, 3
      %p352 = scmp.ne.s32.totalorder %s347, %s349
      %p353 = scmp.eq.s32.totalorder %s42, 0
      %p354 = por %p352, %p353
      %p355 = scmp.ne.s32.totalorder %s347, %s349
      %p356 = scmp.eq.s32.totalorder %s47, 3
      %p357 = por %p355, %p356
      %p358 = scmp.ne.s32.totalorder %s349, %s350
      %p359 = scmp.eq.s32.totalorder %s47, 0
      %p360 = por %p358, %p359
      %p361 = scmp.ne.s32.totalorder %s349, %s350
      %p362 = scmp.eq.s32.totalorder %s48, 3
      %p363 = por %p361, %p362
      %p365 = scmp.ne.s32.totalorder %s350, %s364
      %p366 = scmp.eq.s32.totalorder %s48, 0
      %p367 = por %p365, %p366
      %s369 = sadd.s32 %s368, 1
      %p372 = scmp.eq.s32.totalorder %s42, 3
      %p373 = scmp.ne.s32.totalorder %s368, %s370
      %p374 = scmp.eq.s32.totalorder %s42, 0
      %p375 = por %p373, %p374
      %p376 = scmp.ne.s32.totalorder %s368, %s370
      %p377 = scmp.eq.s32.totalorder %s47, 3
      %p378 = por %p376, %p377
      %p379 = scmp.ne.s32.totalorder %s370, %s371
      %p380 = scmp.eq.s32.totalorder %s47, 0
      %p381 = por %p379, %p380
      %p382 = scmp.ne.s32.totalorder %s370, %s371
      %p383 = scmp.eq.s32.totalorder %s48, 3
      %p384 = por %p382, %p383
      %p386 = scmp.ne.s32.totalorder %s371, %s385
      %p387 = scmp.eq.s32.totalorder %s48, 0
      %p388 = por %p386, %p387
      %s390 = sadd.s32 %s389, 1
      %p393 = scmp.eq.s32.totalorder %s42, 3
      %p394 = scmp.ne.s32.totalorder %s389, %s391
      %p395 = scmp.eq.s32.totalorder %s42, 0
      %p396 = por %p394, %p395
      %p397 = scmp.ne.s32.totalorder %s389, %s391
      %p398 = scmp.eq.s32.totalorder %s47, 3
      %p399 = por %p397, %p398
      %p400 = scmp.ne.s32.totalorder %s391, %s392
      %p401 = scmp.eq.s32.totalorder %s47, 0
      %p402 = por %p400, %p401
      %p403 = scmp.ne.s32.totalorder %s391, %s392
      %p404 = scmp.eq.s32.totalorder %s48, 3
      %p405 = por %p403, %p404
      %p407 = scmp.ne.s32.totalorder %s392, %s406
      %p408 = scmp.eq.s32.totalorder %s48, 0
      %p409 = por %p407, %p408
      %s411 = sadd.s32 %s410, 1
      %p414 = scmp.eq.s32.totalorder %s42, 3
      %p415 = scmp.ne.s32.totalorder %s410, %s412
      %p416 = scmp.eq.s32.totalorder %s42, 0
      %p417 = por %p415, %p416
      %p418 = scmp.ne.s32.totalorder %s410, %s412
      %p419 = scmp.eq.s32.totalorder %s47, 3
      %p420 = por %p418, %p419
      %p421 = scmp.ne.s32.totalorder %s412, %s413
      %p422 = scmp.eq.s32.totalorder %s47, 0
      %p423 = por %p421, %p422
      %p424 = scmp.ne.s32.totalorder %s412, %s413
      %p425 = scmp.eq.s32.totalorder %s48, 3
      %p426 = por %p424, %p425
      %p428 = scmp.ne.s32.totalorder %s413, %s427
      %p429 = scmp.eq.s32.totalorder %s48, 0
      %p430 = por %p428, %p429
      %s432 = sadd.s32 %s431, 1
      %p435 = scmp.eq.s32.totalorder %s42, 3
      %p436 = scmp.ne.s32.totalorder %s431, %s433
      %p437 = scmp.eq.s32.totalorder %s42, 0
      %p438 = por %p436, %p437
      %p439 = scmp.ne.s32.totalorder %s431, %s433
      %p440 = scmp.eq.s32.totalorder %s47, 3
      %p441 = por %p439, %p440
      %p442 = scmp.ne.s32.totalorder %s433, %s434
      %p443 = scmp.eq.s32.totalorder %s47, 0
      %p444 = por %p442, %p443
      %p445 = scmp.ne.s32.totalorder %s433, %s434
      %p446 = scmp.eq.s32.totalorder %s48, 3
      %p447 = por %p445, %p446
      %p449 = scmp.ne.s32.totalorder %s434, %s448
      %p450 = scmp.eq.s32.totalorder %s48, 0
      %p451 = por %p449, %p450
      %s453 = sadd.s32 %s452, 1
      %p456 = scmp.eq.s32.totalorder %s42, 3
      %p457 = scmp.ne.s32.totalorder %s452, %s454
      %p458 = scmp.eq.s32.totalorder %s42, 0
      %p459 = por %p457, %p458
      %p460 = scmp.ne.s32.totalorder %s452, %s454
      %p461 = scmp.eq.s32.totalorder %s47, 3
      %p462 = por %p460, %p461
      %p463 = scmp.ne.s32.totalorder %s454, %s455
      %p464 = scmp.eq.s32.totalorder %s47, 0
      %p465 = por %p463, %p464
      %p466 = scmp.ne.s32.totalorder %s454, %s455
      %p467 = scmp.eq.s32.totalorder %s48, 3
      %p468 = por %p466, %p467
      %p470 = scmp.ne.s32.totalorder %s455, %s469
      %p471 = scmp.eq.s32.totalorder %s48, 0
      %p472 = por %p470, %p471
      %s473 = ssub.s32 %s49, %s61
      %p474 = scmp.eq.s32.totalorder %s473, 0
      %s476 = sadd.s32 %s475, 1
      %s477 = scalar_select %p474, %s475, %s476
      %p480 = pneg %p474
      %p481 = scmp.eq.s32.totalorder %s42, 3
      %p482 = por %p480, %p481
      %p483 = scmp.ne.s32.totalorder %s475, %s478
      %p484 = scmp.eq.s32.totalorder %s42, 0
      %p485 = por %p483, %p484
      %p486 = scmp.ne.s32.totalorder %s475, %s478
      %p487 = scmp.eq.s32.totalorder %s47, 3
      %p488 = por %p486, %p487
      %p489 = scmp.ne.s32.totalorder %s478, %s479
      %p490 = scmp.eq.s32.totalorder %s47, 0
      %p491 = por %p489, %p490
      %p492 = scmp.ne.s32.totalorder %s478, %s479
      %p493 = scmp.eq.s32.totalorder %s48, 3
      %p494 = por %p492, %p493
      %p496 = scmp.ne.s32.totalorder %s479, %s495
      %p497 = scmp.eq.s32.totalorder %s48, 0
      %p498 = por %p496, %p497
      %p499 = scmp.le.s32.totalorder 1, %s42
      %p500 = scmp.lt.s32.totalorder %s42, 5
      %p501 = pnand %p499, %p500
      %p502 = pneg %p501
      // Predicated region
      $region9: #{tpu_custom_call.1} parent=5 // pred_check
        _
      $region10: #{tpu_custom_call.1} parent=5 // pred_check_branch
        %504 = sbr.rel (%p501) target = $region12
      $region11: #{tpu_custom_call.1} parent=5 // pred_region
        %s505 = ssub.s32 %s42, 1
        // Predicated region
        $region13: #{tpu_custom_call.1} parent=11 // pred_check
          %p506 = pneg %p129
        $region14: #{tpu_custom_call.1} parent=11 // pred_check_branch
          %508 = sbr.rel (%p506) target = $region16
        $region15: #{tpu_custom_call.1} parent=11 // pred_region
          %s510 = ssub.s32 16, 16
          %511 = vsyncadd [#allocation8], %s510
          %s513 = sshll.u32 [#allocation9], 4
          %s514 = int_to_ptr.vmem [resolvable:$true] %s513
          %516 = dma.hbm_to_vmem [thread:$0]  %s2, 16, %s514, [#allocation8]
        $region16: #{tpu_custom_call.1} parent=11 // pred_fallthru
          _
        // Predicated region
        $region17: #{tpu_custom_call.1} parent=11 // pred_check
          %p517 = pneg %p150
        $region18: #{tpu_custom_call.1} parent=11 // pred_check_branch
          %519 = sbr.rel (%p517) target = $region20
        $region19: #{tpu_custom_call.1} parent=11 // pred_region
          %s521 = ssub.s32 512, 512
          %522 = vsyncadd [#allocation11], %s521
          %s523 = sshll.u32 [#allocation10], 4
          %s524 = int_to_ptr.vmem [resolvable:$true] %s523
          %529 = dma.hbm_to_vmem [thread:$0]  %s3, 512, %s524, [#allocation11], 64, 64, 4
        $region20: #{tpu_custom_call.1} parent=11 // pred_fallthru
          _
        // Predicated region
        $region21: #{tpu_custom_call.1} parent=11 // pred_check
          %p530 = pneg %p171
        $region22: #{tpu_custom_call.1} parent=11 // pred_check_branch
          %532 = sbr.rel (%p530) target = $region24
        $region23: #{tpu_custom_call.1} parent=11 // pred_region
          %s534 = ssub.s32 16, 16
          %535 = vsyncadd [#allocation11], %s534
          %s537 = sshll.u32 [#allocation12], 4
          %s538 = int_to_ptr.vmem [resolvable:$true] %s537
          %540 = dma.hbm_to_vmem [thread:$0]  %s4, 16, %s538, [#allocation11]
        $region24: #{tpu_custom_call.1} parent=11 // pred_fallthru
          _
        // Predicated region
        $region25: #{tpu_custom_call.1} parent=11 // pred_check
          %p541 = pneg %p192
        $region26: #{tpu_custom_call.1} parent=11 // pred_check_branch
          %543 = sbr.rel (%p541) target = $region28
        $region27: #{tpu_custom_call.1} parent=11 // pred_region
          %s545 = ssub.s32 512, 512
          %546 = vsyncadd [#allocation14], %s545
          %s547 = sshll.u32 [#allocation13], 4
          %s548 = int_to_ptr.vmem [resolvable:$true] %s547
          %553 = dma.hbm_to_vmem [thread:$0]  %s5, 512, %s548, [#allocation14], 64, 64, 4
        $region28: #{tpu_custom_call.1} parent=11 // pred_fallthru
          _
        // Predicated region
        $region29: #{tpu_custom_call.1} parent=11 // pred_check
          %p554 = pneg %p213
        $region30: #{tpu_custom_call.1} parent=11 // pred_check_branch
          %556 = sbr.rel (%p554) target = $region32
        $region31: #{tpu_custom_call.1} parent=11 // pred_region
          %s558 = ssub.s32 16, 16
          %559 = vsyncadd [#allocation14], %s558
          %s561 = sshll.u32 [#allocation15], 4
          %s562 = int_to_ptr.vmem [resolvable:$true] %s561
          %564 = dma.hbm_to_vmem [thread:$0]  %s6, 16, %s562, [#allocation14]
        $region32: #{tpu_custom_call.1} parent=11 // pred_fallthru
          _
        // Predicated region
        $region33: #{tpu_custom_call.1} parent=11 // pred_check
          %p565 = pneg %p234
        $region34: #{tpu_custom_call.1} parent=11 // pred_check_branch
          %567 = sbr.rel (%p565) target = $region36
        $region35: #{tpu_custom_call.1} parent=11 // pred_region
          %s569 = ssub.s32 512, 512
          %570 = vsyncadd [#allocation17], %s569
          %s571 = sshll.u32 [#allocation16], 4
          %s572 = int_to_ptr.vmem [resolvable:$true] %s571
          %577 = dma.hbm_to_vmem [thread:$0]  %s7, 512, %s572, [#allocation17], 64, 64, 4
        $region36: #{tpu_custom_call.1} parent=11 // pred_fallthru
          _
        // Predicated region
        $region37: #{tpu_custom_call.1} parent=11 // pred_check
          %p578 = pneg %p255
        $region38: #{tpu_custom_call.1} parent=11 // pred_check_branch
          %580 = sbr.rel (%p578) target = $region40
        $region39: #{tpu_custom_call.1} parent=11 // pred_region
          %s582 = ssub.s32 16, 16
          %583 = vsyncadd [#allocation17], %s582
          %s585 = sshll.u32 [#allocation18], 4
          %s586 = int_to_ptr.vmem [resolvable:$true] %s585
          %588 = dma.hbm_to_vmem [thread:$0]  %s8, 16, %s586, [#allocation17]
        $region40: #{tpu_custom_call.1} parent=11 // pred_fallthru
          _
        // Predicated region
        $region41: #{tpu_custom_call.1} parent=11 // pred_check
          %p589 = pneg %p276
        $region42: #{tpu_custom_call.1} parent=11 // pred_check_branch
          %591 = sbr.rel (%p589) target = $region44
        $region43: #{tpu_custom_call.1} parent=11 // pred_region
          %s593 = ssub.s32 512, 512
          %594 = vsyncadd [#allocation20], %s593
          %s595 = sshll.u32 [#allocation19], 4
          %s596 = int_to_ptr.vmem [resolvable:$true] %s595
          %601 = dma.hbm_to_vmem [thread:$0]  %s9, 512, %s596, [#allocation20], 64, 64, 4
        $region44: #{tpu_custom_call.1} parent=11 // pred_fallthru
          _
        // Predicated region
        $region45: #{tpu_custom_call.1} parent=11 // pred_check
          %p602 = pneg %p297
        $region46: #{tpu_custom_call.1} parent=11 // pred_check_branch
          %604 = sbr.rel (%p602) target = $region48
        $region47: #{tpu_custom_call.1} parent=11 // pred_region
          %s606 = ssub.s32 16, 16
          %607 = vsyncadd [#allocation20], %s606
          %s609 = sshll.u32 [#allocation21], 4
          %s610 = int_to_ptr.vmem [resolvable:$true] %s609
          %612 = dma.hbm_to_vmem [thread:$0]  %s10, 16, %s610, [#allocation20]
        $region48: #{tpu_custom_call.1} parent=11 // pred_fallthru
          _
        // Predicated region
        $region49: #{tpu_custom_call.1} parent=11 // pred_check
          %p613 = pneg %p318
        $region50: #{tpu_custom_call.1} parent=11 // pred_check_branch
          %615 = sbr.rel (%p613) target = $region52
        $region51: #{tpu_custom_call.1} parent=11 // pred_region
          %s617 = ssub.s32 16, 16
          %618 = vsyncadd [#allocation23], %s617
          %s620 = sshll.u32 [#allocation22], 4
          %s621 = int_to_ptr.vmem [resolvable:$true] %s620
          %623 = dma.hbm_to_vmem [thread:$0]  %s11, 16, %s621, [#allocation23]
        $region52: #{tpu_custom_call.1} parent=11 // pred_fallthru
          _
        // Predicated region
        $region53: #{tpu_custom_call.1} parent=11 // pred_check
          %p624 = pneg %p339
        $region54: #{tpu_custom_call.1} parent=11 // pred_check_branch
          %626 = sbr.rel (%p624) target = $region56
        $region55: #{tpu_custom_call.1} parent=11 // pred_region
          %s628 = ssub.s32 16, 16
          %629 = vsyncadd [#allocation23], %s628
          %s631 = sshll.u32 [#allocation24], 4
          %s632 = int_to_ptr.vmem [resolvable:$true] %s631
          %634 = dma.hbm_to_vmem [thread:$0]  %s12, 16, %s632, [#allocation23]
        $region56: #{tpu_custom_call.1} parent=11 // pred_fallthru
          _
        // Predicated region
        $region57: #{tpu_custom_call.1} parent=11 // pred_check
          %p635 = pneg %p360
        $region58: #{tpu_custom_call.1} parent=11 // pred_check_branch
          %637 = sbr.rel (%p635) target = $region60
        $region59: #{tpu_custom_call.1} parent=11 // pred_region
          %s639 = ssub.s32 512, 512
          %640 = vsyncadd [#allocation26], %s639
          %s641 = sshll.u32 [#allocation25], 4
          %s642 = int_to_ptr.vmem [resolvable:$true] %s641
          %647 = dma.hbm_to_vmem [thread:$0]  %s13, 512, %s642, [#allocation26], 64, 64, 4
        $region60: #{tpu_custom_call.1} parent=11 // pred_fallthru
          _
        // Predicated region
        $region61: #{tpu_custom_call.1} parent=11 // pred_check
          %p648 = pneg %p381
        $region62: #{tpu_custom_call.1} parent=11 // pred_check_branch
          %650 = sbr.rel (%p648) target = $region64
        $region63: #{tpu_custom_call.1} parent=11 // pred_region
          %s652 = ssub.s32 16, 16
          %653 = vsyncadd [#allocation26], %s652
          %s655 = sshll.u32 [#allocation27], 4
          %s656 = int_to_ptr.vmem [resolvable:$true] %s655
          %658 = dma.hbm_to_vmem [thread:$0]  %s14, 16, %s656, [#allocation26]
        $region64: #{tpu_custom_call.1} parent=11 // pred_fallthru
          _
        // Predicated region
        $region65: #{tpu_custom_call.1} parent=11 // pred_check
          %p659 = pneg %p402
        $region66: #{tpu_custom_call.1} parent=11 // pred_check_branch
          %661 = sbr.rel (%p659) target = $region68
        $region67: #{tpu_custom_call.1} parent=11 // pred_region
          %s663 = ssub.s32 1024, 1024
          %664 = vsyncadd [#allocation29], %s663
          %s665 = sshll.u32 [#allocation28], 4
          %s666 = int_to_ptr.vmem [resolvable:$true] %s665
          %671 = dma.hbm_to_vmem [thread:$0]  %s15, 1024, %s666, [#allocation29], 64, 64, 4
        $region68: #{tpu_custom_call.1} parent=11 // pred_fallthru
          _
        // Predicated region
        $region69: #{tpu_custom_call.1} parent=11 // pred_check
          %p672 = pneg %p423
        $region70: #{tpu_custom_call.1} parent=11 // pred_check_branch
          %674 = sbr.rel (%p672) target = $region72
        $region71: #{tpu_custom_call.1} parent=11 // pred_region
          %s676 = ssub.s32 16, 16
          %677 = vsyncadd [#allocation29], %s676
          %s679 = sshll.u32 [#allocation30], 4
          %s680 = int_to_ptr.vmem [resolvable:$true] %s679
          %682 = dma.hbm_to_vmem [thread:$0]  %s16, 16, %s680, [#allocation29]
        $region72: #{tpu_custom_call.1} parent=11 // pred_fallthru
          _
        // Predicated region
        $region73: #{tpu_custom_call.1} parent=11 // pred_check
          %p683 = pneg %p444
        $region74: #{tpu_custom_call.1} parent=11 // pred_check_branch
          %685 = sbr.rel (%p683) target = $region76
        $region75: #{tpu_custom_call.1} parent=11 // pred_region
          %s687 = ssub.s32 16, 16
          %688 = vsyncadd [#allocation32], %s687
          %s690 = sshll.u32 [#allocation31], 4
          %s691 = int_to_ptr.vmem [resolvable:$true] %s690
          %693 = dma.hbm_to_vmem [thread:$0]  %s17, 16, %s691, [#allocation32]
        $region76: #{tpu_custom_call.1} parent=11 // pred_fallthru
          _
        // Predicated region
        $region77: #{tpu_custom_call.1} parent=11 // pred_check
          %p694 = pneg %p465
        $region78: #{tpu_custom_call.1} parent=11 // pred_check_branch
          %696 = sbr.rel (%p694) target = $region80
        $region79: #{tpu_custom_call.1} parent=11 // pred_region
          %s698 = ssub.s32 16, 16
          %699 = vsyncadd [#allocation32], %s698
          %s701 = sshll.u32 [#allocation33], 4
          %s702 = int_to_ptr.vmem [resolvable:$true] %s701
          %704 = dma.hbm_to_vmem [thread:$0]  %s18, 16, %s702, [#allocation32]
        $region80: #{tpu_custom_call.1} parent=11 // pred_fallthru
          _
      $region12: #{tpu_custom_call.1} parent=5 // pred_fallthru
        _
      %p705 = scmp.lt.s32.totalorder %s42, 4
      // Predicated region
      $region81: #{tpu_custom_call.1} parent=5 // pred_check
        %p706 = pneg %p705
      $region82: #{tpu_custom_call.1} parent=5 // pred_check_branch
        %708 = sbr.rel (%p706) target = $region84
      $region83: #{tpu_custom_call.1} parent=5 // pred_region
        // Predicated region
        $region85: #{tpu_custom_call.1} parent=83 // pred_check
          %p709 = pneg %p76
        $region86: #{tpu_custom_call.1} parent=83 // pred_check_branch
          %711 = sbr.rel (%p709) target = $region88
        $region87: #{tpu_custom_call.1} parent=83 // pred_region
          %s712 = sand.u32 %s66, 1
          %s713 = scalar_lea.sflag [#allocation5], %s712
          %s714 = sand.u32 %s66, 1
          %s715 = smul.addr %s714, 32
          %s716 = scalar_lea.vmem [#allocation4], %s715
          %s717 = smul.u32 4, %s49
          %s719 = ssub.s32 512, 512
          %720 = vsyncadd %s713, %s719
          %s721 = smul.addr %s717, 2
          %s722 = sadd.s32 %s50, %s721
          %s723 = smul.addr %s722, 128
          %s724 = scalar_lea.hbm %s0, %s723
          %s725 = sshll.u32 %s716, 4
          %s726 = int_to_ptr.vmem [resolvable:$true] %s725
          %731 = dma.hbm_to_vmem [thread:$0]  %s724, 512, %s726, %s713, 256, 128, 8
        $region88: #{tpu_custom_call.1} parent=83 // pred_fallthru
          _
        // Predicated region
        $region89: #{tpu_custom_call.1} parent=83 // pred_check
          %p732 = pneg %p102
        $region90: #{tpu_custom_call.1} parent=83 // pred_check_branch
          %734 = sbr.rel (%p732) target = $region92
        $region91: #{tpu_custom_call.1} parent=83 // pred_region
          %s735 = sand.u32 %s42, 1
          %s736 = scalar_lea.sflag [#allocation8], %s735
          %s737 = sand.u32 %s92, 1
          %s738 = smul.addr %s737, 64
          %s739 = scalar_lea.vmem [#allocation7], %s738
          %s740 = smul.u32 16, %s50
          %s742 = ssub.s32 1024, 1024
          %743 = vsyncadd %s736, %s742
          %s744 = smul.addr %s740, 64
          %s745 = scalar_lea.hbm %s1, %s744
          %s746 = sshll.u32 %s739, 4
          %s747 = int_to_ptr.vmem [resolvable:$true] %s746
          %752 = dma.hbm_to_vmem [thread:$0]  %s745, 1024, %s747, %s736, 64, 64, 4
        $region92: #{tpu_custom_call.1} parent=83 // pred_fallthru
          _
      $region84: #{tpu_custom_call.1} parent=5 // pred_fallthru
        _
      %p753 = scmp.le.s32.totalorder 1, %s42
      %p754 = scmp.lt.s32.totalorder %s42, 5
      %p755 = pnand %p753, %p754
      %p756 = pneg %p755
      // Predicated region
      $region93: #{tpu_custom_call.1} parent=5 // pred_check
        _
      $region94: #{tpu_custom_call.1} parent=5 // pred_check_branch
        %758 = sbr.rel (%p755) target = $region96
      $region95: #{tpu_custom_call.1} parent=5 // pred_region
        %s759 = ssub.s32 %s42, 1
        %s760 = sand.u32 %s69, 1
        %s761 = scalar_lea.sflag [#allocation5], %s760
        %s762 = sand.u32 %s69, 1
        %s763 = smul.addr %s762, 32
        %s764 = scalar_lea.vmem [#allocation4], %s763
        // Predicated region
        $region97: #{tpu_custom_call.1} parent=95 // pred_check
          %p765 = pneg %p82
        $region98: #{tpu_custom_call.1} parent=95 // pred_check_branch
          %767 = sbr.rel (%p765) target = $region100
        $region99: #{tpu_custom_call.1} parent=95 // pred_region
          %768 = dma.done %s761, 512
        $region100: #{tpu_custom_call.1} parent=95 // pred_fallthru
          _
        %s769 = sand.u32 %s47, 1
        %s770 = scalar_lea.sflag [#allocation8], %s769
        %s771 = sand.u32 %s95, 1
        %s772 = smul.addr %s771, 64
        %s773 = scalar_lea.vmem [#allocation7], %s772
        // Predicated region
        $region101: #{tpu_custom_call.1} parent=95 // pred_check
          %p774 = pneg %p108
        $region102: #{tpu_custom_call.1} parent=95 // pred_check_branch
          %776 = sbr.rel (%p774) target = $region104
        $region103: #{tpu_custom_call.1} parent=95 // pred_region
          %777 = dma.done %s770, 1024
        $region104: #{tpu_custom_call.1} parent=95 // pred_fallthru
          _
        // Predicated region
        $region105: #{tpu_custom_call.1} parent=95 // pred_check
          %p778 = pneg %p129
        $region106: #{tpu_custom_call.1} parent=95 // pred_check_branch
          %780 = sbr.rel (%p778) target = $region108
        $region107: #{tpu_custom_call.1} parent=95 // pred_region
          %781 = dma.done [#allocation8], 16
        $region108: #{tpu_custom_call.1} parent=95 // pred_fallthru
          _
        // Predicated region
        $region109: #{tpu_custom_call.1} parent=95 // pred_check
          %p782 = pneg %p150
        $region110: #{tpu_custom_call.1} parent=95 // pred_check_branch
          %784 = sbr.rel (%p782) target = $region112
        $region111: #{tpu_custom_call.1} parent=95 // pred_region
          %785 = dma.done [#allocation11], 512
        $region112: #{tpu_custom_call.1} parent=95 // pred_fallthru
          _
        // Predicated region
        $region113: #{tpu_custom_call.1} parent=95 // pred_check
          %p786 = pneg %p171
        $region114: #{tpu_custom_call.1} parent=95 // pred_check_branch
          %788 = sbr.rel (%p786) target = $region116
        $region115: #{tpu_custom_call.1} parent=95 // pred_region
          %789 = dma.done [#allocation11], 16
        $region116: #{tpu_custom_call.1} parent=95 // pred_fallthru
          _
        // Predicated region
        $region117: #{tpu_custom_call.1} parent=95 // pred_check
          %p790 = pneg %p192
        $region118: #{tpu_custom_call.1} parent=95 // pred_check_branch
          %792 = sbr.rel (%p790) target = $region120
        $region119: #{tpu_custom_call.1} parent=95 // pred_region
          %793 = dma.done [#allocation14], 512
        $region120: #{tpu_custom_call.1} parent=95 // pred_fallthru
          _
        // Predicated region
        $region121: #{tpu_custom_call.1} parent=95 // pred_check
          %p794 = pneg %p213
        $region122: #{tpu_custom_call.1} parent=95 // pred_check_branch
          %796 = sbr.rel (%p794) target = $region124
        $region123: #{tpu_custom_call.1} parent=95 // pred_region
          %797 = dma.done [#allocation14], 16
        $region124: #{tpu_custom_call.1} parent=95 // pred_fallthru
          _
        // Predicated region
        $region125: #{tpu_custom_call.1} parent=95 // pred_check
          %p798 = pneg %p234
        $region126: #{tpu_custom_call.1} parent=95 // pred_check_branch
          %800 = sbr.rel (%p798) target = $region128
        $region127: #{tpu_custom_call.1} parent=95 // pred_region
          %801 = dma.done [#allocation17], 512
        $region128: #{tpu_custom_call.1} parent=95 // pred_fallthru
          _
        // Predicated region
        $region129: #{tpu_custom_call.1} parent=95 // pred_check
          %p802 = pneg %p255
        $region130: #{tpu_custom_call.1} parent=95 // pred_check_branch
          %804 = sbr.rel (%p802) target = $region132
        $region131: #{tpu_custom_call.1} parent=95 // pred_region
          %805 = dma.done [#allocation17], 16
        $region132: #{tpu_custom_call.1} parent=95 // pred_fallthru
          _
        // Predicated region
        $region133: #{tpu_custom_call.1} parent=95 // pred_check
          %p806 = pneg %p276
        $region134: #{tpu_custom_call.1} parent=95 // pred_check_branch
          %808 = sbr.rel (%p806) target = $region136
        $region135: #{tpu_custom_call.1} parent=95 // pred_region
          %809 = dma.done [#allocation20], 512
        $region136: #{tpu_custom_call.1} parent=95 // pred_fallthru
          _
        // Predicated region
        $region137: #{tpu_custom_call.1} parent=95 // pred_check
          %p810 = pneg %p297
        $region138: #{tpu_custom_call.1} parent=95 // pred_check_branch
          %812 = sbr.rel (%p810) target = $region140
        $region139: #{tpu_custom_call.1} parent=95 // pred_region
          %813 = dma.done [#allocation20], 16
        $region140: #{tpu_custom_call.1} parent=95 // pred_fallthru
          _
        // Predicated region
        $region141: #{tpu_custom_call.1} parent=95 // pred_check
          %p814 = pneg %p318
        $region142: #{tpu_custom_call.1} parent=95 // pred_check_branch
          %816 = sbr.rel (%p814) target = $region144
        $region143: #{tpu_custom_call.1} parent=95 // pred_region
          %817 = dma.done [#allocation23], 16
        $region144: #{tpu_custom_call.1} parent=95 // pred_fallthru
          _
        // Predicated region
        $region145: #{tpu_custom_call.1} parent=95 // pred_check
          %p818 = pneg %p339
        $region146: #{tpu_custom_call.1} parent=95 // pred_check_branch
          %820 = sbr.rel (%p818) target = $region148
        $region147: #{tpu_custom_call.1} parent=95 // pred_region
          %821 = dma.done [#allocation23], 16
        $region148: #{tpu_custom_call.1} parent=95 // pred_fallthru
          _
        // Predicated region
        $region149: #{tpu_custom_call.1} parent=95 // pred_check
          %p822 = pneg %p360
        $region150: #{tpu_custom_call.1} parent=95 // pred_check_branch
          %824 = sbr.rel (%p822) target = $region152
        $region151: #{tpu_custom_call.1} parent=95 // pred_region
          %825 = dma.done [#allocation26], 512
        $region152: #{tpu_custom_call.1} parent=95 // pred_fallthru
          _
        // Predicated region
        $region153: #{tpu_custom_call.1} parent=95 // pred_check
          %p826 = pneg %p381
        $region154: #{tpu_custom_call.1} parent=95 // pred_check_branch
          %828 = sbr.rel (%p826) target = $region156
        $region155: #{tpu_custom_call.1} parent=95 // pred_region
          %829 = dma.done [#allocation26], 16
        $region156: #{tpu_custom_call.1} parent=95 // pred_fallthru
          _
        // Predicated region
        $region157: #{tpu_custom_call.1} parent=95 // pred_check
          %p830 = pneg %p402
        $region158: #{tpu_custom_call.1} parent=95 // pred_check_branch
          %832 = sbr.rel (%p830) target = $region160
        $region159: #{tpu_custom_call.1} parent=95 // pred_region
          %833 = dma.done [#allocation29], 1024
        $region160: #{tpu_custom_call.1} parent=95 // pred_fallthru
          _
        // Predicated region
        $region161: #{tpu_custom_call.1} parent=95 // pred_check
          %p834 = pneg %p423
        $region162: #{tpu_custom_call.1} parent=95 // pred_check_branch
          %836 = sbr.rel (%p834) target = $region164
        $region163: #{tpu_custom_call.1} parent=95 // pred_region
          %837 = dma.done [#allocation29], 16
        $region164: #{tpu_custom_call.1} parent=95 // pred_fallthru
          _
        // Predicated region
        $region165: #{tpu_custom_call.1} parent=95 // pred_check
          %p838 = pneg %p444
        $region166: #{tpu_custom_call.1} parent=95 // pred_check_branch
          %840 = sbr.rel (%p838) target = $region168
        $region167: #{tpu_custom_call.1} parent=95 // pred_region
          %841 = dma.done [#allocation32], 16
        $region168: #{tpu_custom_call.1} parent=95 // pred_fallthru
          _
        // Predicated region
        $region169: #{tpu_custom_call.1} parent=95 // pred_check
          %p842 = pneg %p465
        $region170: #{tpu_custom_call.1} parent=95 // pred_check_branch
          %844 = sbr.rel (%p842) target = $region172
        $region171: #{tpu_custom_call.1} parent=95 // pred_region
          %845 = dma.done [#allocation32], 16
        $region172: #{tpu_custom_call.1} parent=95 // pred_fallthru
          _
        %s846 = sand.u32 %s69, 1
        %s847 = scalar_lea.sflag [#allocation5], %s846
        %s848 = sand.u32 %s69, 1
        %s849 = smul.addr %s848, 32
        %s850 = scalar_lea.vmem [#allocation4], %s849
        %p851 = pneg %p82
        %p852 = pneg %p79
        %s853 = sand.u32 %s47, 1
        %s854 = scalar_lea.sflag [#allocation8], %s853
        %s855 = sand.u32 %s95, 1
        %s856 = smul.addr %s855, 64
        %s857 = scalar_lea.vmem [#allocation7], %s856
        %p858 = pneg %p108
        %p859 = pneg %p105
        %p860 = pneg %p129
        %p861 = pneg %p126
        %p862 = pneg %p150
        %p863 = pneg %p147
        %p864 = pneg %p171
        %p865 = pneg %p168
        %p866 = pneg %p192
        %p867 = pneg %p189
        %p868 = pneg %p213
        %p869 = pneg %p210
        %p870 = pneg %p234
        %p871 = pneg %p231
        %p872 = pneg %p255
        %p873 = pneg %p252
        %p874 = pneg %p276
        %p875 = pneg %p273
        %p876 = pneg %p297
        %p877 = pneg %p294
        %p878 = pneg %p318
        %p879 = pneg %p315
        %p880 = pneg %p339
        %p881 = pneg %p336
        %p882 = pneg %p360
        %p883 = pneg %p357
        %p884 = pneg %p381
        %p885 = pneg %p378
        %p886 = pneg %p402
        %p887 = pneg %p399
        %p888 = pneg %p423
        %p889 = pneg %p420
        %p890 = pneg %p444
        %p891 = pneg %p441
        %p892 = pneg %p465
        %p893 = pneg %p462
        %p894 = pneg %p491
        %p895 = pneg %p488
        %s896 = sand.u32 %s478, 1
        %s897 = scalar_lea.sflag [#allocation6], %s896
        %s898 = sand.u32 %s478, 1
        %s899 = smul.addr %s898, 4
        %s900 = scalar_lea.vmem [#allocation34], %s899
        %s901 = smul.u32 4, %s51
        %s902 = smul.u32 16, %s52
        %s903 = smul.u32 4, %s51
        %p905 = scmp.eq.s32.totalorder %s52, 0
        // Predicated region
        $region173: #{tpu_custom_call.1} parent=95 // pred_check
          %p906 = pneg %p905
        $region174: #{tpu_custom_call.1} parent=95 // pred_check_branch
          %908 = sbr.rel (%p906) target = $region176
        $region175: #{tpu_custom_call.1} parent=95 // pred_region
          %vm909 = vcmask 523264
          %910 = vst.msk [vmem:[#allocation2] sm:$0xff] %vm909, 0.0
          %911 = vst.msk [vmem:[#allocation2 + $0x8] sm:$0xff] %vm909, 0.0
          %912 = vst.msk [vmem:[#allocation2 + $0x10] sm:$0xff] %vm909, 0.0
          %913 = vst.msk [vmem:[#allocation2 + $0x18] sm:$0xff] %vm909, 0.0
          %914 = vst.msk [vmem:[#allocation2 + $0x20] sm:$0xff] %vm909, 0.0
          %915 = vst.msk [vmem:[#allocation2 + $0x28] sm:$0xff] %vm909, 0.0
          %916 = vst.msk [vmem:[#allocation2 + $0x30] sm:$0xff] %vm909, 0.0
          %917 = vst.msk [vmem:[#allocation2 + $0x38] sm:$0xff] %vm909, 0.0
        $region176: #{tpu_custom_call.1} parent=95 // pred_fallthru
          _
        %v918 = vld [vmem:[%s764] sm:$0xff]
        %v919 = vld [vmem:[%s764 + $0x8] sm:$0xff]
        %v920 = vld [vmem:[%s764 + $0x10] sm:$0xff]
        %v921 = vld [vmem:[%s764 + $0x18] sm:$0xff]
        %v922 = vpack.c.bf16 %v919, %v918
        %v923 = vpack.c.bf16 %v921, %v920
        %v924 = vld [vmem:[%s773] sm:$0xf]
        %v925 = vld [vmem:[%s773 + $0x4] sm:$0xf]
        %v926 = vld [vmem:[%s773 + $0x8] sm:$0xf]
        %v927 = vld [vmem:[%s773 + $0xc] sm:$0xf]
        %v928 = vld [vmem:[%s773 + $0x10] sm:$0xf]
        %v929 = vld [vmem:[%s773 + $0x14] sm:$0xf]
        %v930 = vld [vmem:[%s773 + $0x18] sm:$0xf]
        %v931 = vld [vmem:[%s773 + $0x1c] sm:$0xf]
        %v932 = vld [vmem:[%s773 + $0x20] sm:$0xf]
        %v933 = vld [vmem:[%s773 + $0x24] sm:$0xf]
        %v934 = vld [vmem:[%s773 + $0x28] sm:$0xf]
        %v935 = vld [vmem:[%s773 + $0x2c] sm:$0xf]
        %v936 = vld [vmem:[%s773 + $0x30] sm:$0xf]
        %v937 = vld [vmem:[%s773 + $0x34] sm:$0xf]
        %v938 = vld [vmem:[%s773 + $0x38] sm:$0xf]
        %v939 = vld [vmem:[%s773 + $0x3c] sm:$0xf]
        %v956 = vunpack.c.l.b16 %v924
        %v957 = vunpack.c.l.b16 %v925
        %v958 = vunpack.c.l.b16 %v926
        %v959 = vunpack.c.l.b16 %v927
        %v960 = vunpack.c.l.b16 %v928
        %v961 = vunpack.c.l.b16 %v929
        %v962 = vunpack.c.l.b16 %v930
        %v963 = vunpack.c.l.b16 %v931
        %v964 = vunpack.c.l.b16 %v932
        %v965 = vunpack.c.l.b16 %v933
        %v966 = vunpack.c.l.b16 %v934
        %v967 = vunpack.c.l.b16 %v935
        %v968 = vunpack.c.l.b16 %v936
        %v969 = vunpack.c.l.b16 %v937
        %v970 = vunpack.c.l.b16 %v938
        %v971 = vunpack.c.l.b16 %v939
        %v972 = vpack.c.b16 %v957, %v956
        %v973 = vpack.c.b16 %v959, %v958
        %v974 = vpack.c.b16 %v961, %v960
        %v975 = vpack.c.b16 %v963, %v962
        %v976 = vpack.c.b16 %v965, %v964
        %v977 = vpack.c.b16 %v967, %v966
        %v978 = vpack.c.b16 %v969, %v968
        %v979 = vpack.c.b16 %v971, %v970
        %988 = vmatprep.subr.bf16.mxu0 0
        %989 = vmatpush1.bf16.msra.mxu0 %v972
        %990 = vmatprep.subr.bf16.mxu0 0
        %991 = vmatpush1.bf16.msra.mxu0 %v973
        %992 = vmatprep.subr.bf16.mxu0 0
        %993 = vmatpush1.bf16.msra.mxu0 %v974
        %994 = vmatprep.subr.bf16.mxu0 0
        %995 = vmatpush1.bf16.msra.mxu0 %v975
        %996 = vmatprep.subr.bf16.mxu0 0
        %997 = vmatpush1.bf16.msra.mxu0 %v976
        %998 = vmatprep.subr.bf16.mxu0 0
        %999 = vmatpush1.bf16.msra.mxu0 %v977
        %1000 = vmatprep.subr.bf16.mxu0 0
        %1001 = vmatpush1.bf16.msra.mxu0 %v978
        %1002 = vmatprep.subr.bf16.mxu0 0
        %1003 = vmatpush1.bf16.msra.mxu0 %v979
        %1004 = vmatprep.subr.bf16.mxu0 0
        %1005 = vmatpush1.bf16.msra.mxu0 0
        %1006 = vmatprep.subr.bf16.mxu0 0
        %1007 = vmatpush1.bf16.msra.mxu0 0
        %1008 = vmatprep.subr.bf16.mxu0 0
        %1009 = vmatpush1.bf16.msra.mxu0 0
        %1010 = vmatprep.subr.bf16.mxu0 0
        %1011 = vmatpush1.bf16.msra.mxu0 0
        %1012 = vmatprep.subr.bf16.mxu0 0
        %1013 = vmatpush1.bf16.msra.mxu0 0
        %1014 = vmatprep.subr.bf16.mxu0 0
        %1015 = vmatpush1.bf16.msra.mxu0 0
        %1016 = vmatprep.subr.bf16.mxu0 0
        %1017 = vmatpush1.bf16.msra.mxu0 0
        %1018 = vmatprep.subr.bf16.mxu0 0
        %1019 = vmatpush1.bf16.msra.mxu0 0
        %1020 = vmatprep.mubr.bf16.mxu0 0
        %1021 = vmatmul.mubr.bf16.gmra.mrb[0].mxu0 %v922
        %v1022 = vpop.f32.mrb[0].mxu0
        %v1023 = vadd.f32 0.0, %v1022
        %v1024 = vpop.f32.mrb[0].mxu0
        %v1025 = vpop.f32.mrb[0].mxu0
        %v1026 = vadd.f32 0.0, %v1025
        %v1027 = vpop.f32.mrb[0].mxu0
        %1028 = vmatprep.mubr.bf16.mxu0 0
        %1029 = vmatmul.mubr.bf16.gmra.mrb[0].mxu0 %v923
        %v1030 = vpop.f32.mrb[0].mxu0
        %v1031 = vadd.f32 0.0, %v1030
        %v1032 = vpop.f32.mrb[0].mxu0
        %v1033 = vpop.f32.mrb[0].mxu0
        %v1034 = vadd.f32 0.0, %v1033
        %v1035 = vpop.f32.mrb[0].mxu0
        %1036 = vdwg.mxu0
        %v1037 = vld [vmem:[#allocation2] sm:$0xff]
        %v1038 = vld [vmem:[#allocation2 + $0x10] sm:$0xff]
        %v1039 = vld [vmem:[#allocation2 + $0x20] sm:$0xff]
        %v1040 = vld [vmem:[#allocation2 + $0x30] sm:$0xff]
        %v1041 = vadd.f32 %v1037, %v1023
        %v1042 = vadd.f32 %v1038, %v1026
        %v1043 = vadd.f32 %v1039, %v1031
        %v1044 = vadd.f32 %v1040, %v1034
        %vm1045 = vcmask 523264
        %1046 = vst.msk [vmem:[#allocation2] sm:$0xff] %vm1045, %v1041
        %1047 = vst.msk [vmem:[#allocation2 + $0x10] sm:$0xff] %vm1045, %v1042
        %1048 = vst.msk [vmem:[#allocation2 + $0x20] sm:$0xff] %vm1045, %v1043
        %1049 = vst.msk [vmem:[#allocation2 + $0x30] sm:$0xff] %vm1045, %v1044
        %p1050 = scmp.eq.s32.totalorder %s52, 1
        // Predicated region
        $region177: #{tpu_custom_call.1} parent=95 // pred_check
          %p1051 = pneg %p1050
        $region178: #{tpu_custom_call.1} parent=95 // pred_check_branch
          %1053 = sbr.rel (%p1051) target = $region180
        $region179: #{tpu_custom_call.1} parent=95 // pred_region
          %v1054 = vlaneseq
          %v1055 = vshrl.u32 %v1054, 7
          %v1056 = vadd.s32 %v1055, 8
          %vm1057 = vcmp.lt.s32.totalorder %v1055, 8
          %vm1058 = vcmp.lt.s32.totalorder %v1056, 8
          %v1059 = vsel %vm1057, 1, 0
          %v1060 = vsel %vm1058, 1, 0
          %v1061 = vcvt.s32.f32 %v1059
          %v1062 = vcvt.s32.f32 %v1060
          %v1063 = vld [vmem:[#allocation2] sm:$0xff]
          %v1064 = vld [vmem:[#allocation2 + $0x8] sm:$0xff]
          %v1065 = vld [vmem:[#allocation2 + $0x10] sm:$0xff]
          %v1066 = vld [vmem:[#allocation2 + $0x18] sm:$0xff]
          %v1067 = vld [vmem:[#allocation2 + $0x20] sm:$0xff]
          %v1068 = vld [vmem:[#allocation2 + $0x28] sm:$0xff]
          %v1069 = vld [vmem:[#allocation2 + $0x30] sm:$0xff]
          %v1070 = vld [vmem:[#allocation2 + $0x38] sm:$0xff]
          %v1071 = vld [vmem:[#allocation9] sm:$0x1]
          %v1073 = vlaneseq
          %v1074 = vshrl.u32 %v1073, 7
          %v1075 = vsub.s32 0, %v1074
          %v1076 = vrot.slane %v1071, %v1075
          %v1078 = vmul.f32 %v1061, %v1076
          %v1079 = vmul.f32 %v1062, %v1076
          %v1080 = vadd.f32 %v1063, %v1078
          %v1081 = vadd.f32 %v1064, %v1079
          %v1082 = vadd.f32 %v1065, %v1078
          %v1083 = vadd.f32 %v1066, %v1079
          %v1084 = vadd.f32 %v1067, %v1078
          %v1085 = vadd.f32 %v1068, %v1079
          %v1086 = vadd.f32 %v1069, %v1078
          %v1087 = vadd.f32 %v1070, %v1079
          %v1088 = vpack.c.bf16 %v1081, %v1080
          %v1089 = vpack.c.bf16 %v1083, %v1082
          %v1090 = vpack.c.bf16 %v1085, %v1084
          %v1091 = vpack.c.bf16 %v1087, %v1086
          %v1092 = vld [vmem:[#allocation10] sm:$0xf]
          %v1093 = vld [vmem:[#allocation10 + $0x4] sm:$0xf]
          %v1094 = vld [vmem:[#allocation10 + $0x8] sm:$0xf]
          %v1095 = vld [vmem:[#allocation10 + $0xc] sm:$0xf]
          %v1096 = vld [vmem:[#allocation10 + $0x10] sm:$0xf]
          %v1097 = vld [vmem:[#allocation10 + $0x14] sm:$0xf]
          %v1098 = vld [vmem:[#allocation10 + $0x18] sm:$0xf]
          %v1099 = vld [vmem:[#allocation10 + $0x1c] sm:$0xf]
          %v1100 = vld [vmem:[#allocation12] sm:$0x1]
          %v1102 = vlaneseq
          %v1103 = vshrl.u32 %v1102, 7
          %v1104 = vsub.s32 0, %v1103
          %v1105 = vrot.slane %v1100, %v1104
          %v1115 = vunpack.c.l.b16 %v1092
          %v1116 = vunpack.c.l.b16 %v1093
          %v1117 = vunpack.c.l.b16 %v1094
          %v1118 = vunpack.c.l.b16 %v1095
          %v1119 = vunpack.c.l.b16 %v1096
          %v1120 = vunpack.c.l.b16 %v1097
          %v1121 = vunpack.c.l.b16 %v1098
          %v1122 = vunpack.c.l.b16 %v1099
          %v1123 = vpack.c.b16 %v1116, %v1115
          %v1124 = vpack.c.b16 %v1118, %v1117
          %v1125 = vpack.c.b16 %v1120, %v1119
          %v1126 = vpack.c.b16 %v1122, %v1121
          %v1132 = vsel %vm1045, %v1088, 0
          %v1135 = vsel %vm1045, %v1089, 0
          %v1138 = vsel %vm1045, %v1090, 0
          %v1141 = vsel %vm1045, %v1091, 0
          %1143 = vmatprep.subr.bf16.mxu0 0
          %1144 = vmatpush1.bf16.msra.mxu0 %v1123
          %1145 = vmatprep.subr.bf16.mxu0 0
          %1146 = vmatpush1.bf16.msra.mxu0 %v1124
          %1147 = vmatprep.subr.bf16.mxu0 0
          %1148 = vmatpush1.bf16.msra.mxu0 %v1125
          %1149 = vmatprep.subr.bf16.mxu0 0
          %1150 = vmatpush1.bf16.msra.mxu0 %v1126
          %1151 = vmatprep.subr.bf16.mxu0 0
          %1152 = vmatpush1.bf16.msra.mxu0 0
          %1153 = vmatprep.subr.bf16.mxu0 0
          %1154 = vmatpush1.bf16.msra.mxu0 0
          %1155 = vmatprep.subr.bf16.mxu0 0
          %1156 = vmatpush1.bf16.msra.mxu0 0
          %1157 = vmatprep.subr.bf16.mxu0 0
          %1158 = vmatpush1.bf16.msra.mxu0 0
          %1159 = vmatprep.subr.bf16.mxu0 0
          %1160 = vmatpush1.bf16.msra.mxu0 0
          %1161 = vmatprep.subr.bf16.mxu0 0
          %1162 = vmatpush1.bf16.msra.mxu0 0
          %1163 = vmatprep.subr.bf16.mxu0 0
          %1164 = vmatpush1.bf16.msra.mxu0 0
          %1165 = vmatprep.subr.bf16.mxu0 0
          %1166 = vmatpush1.bf16.msra.mxu0 0
          %1167 = vmatprep.subr.bf16.mxu0 0
          %1168 = vmatpush1.bf16.msra.mxu0 0
          %1169 = vmatprep.subr.bf16.mxu0 0
          %1170 = vmatpush1.bf16.msra.mxu0 0
          %1171 = vmatprep.subr.bf16.mxu0 0
          %1172 = vmatpush1.bf16.msra.mxu0 0
          %1173 = vmatprep.subr.bf16.mxu0 0
          %1174 = vmatpush1.bf16.msra.mxu0 0
          %1175 = vmatprep.mubr.bf16.mxu0 0
          %1176 = vmatmul.mubr.bf16.gmra.mrb[0].mxu0 %v1132
          %v1177 = vpop.f32.mrb[0].mxu0
          %v1178 = vadd.f32 %v1105, %v1177
          %v1179 = vpop.f32.mrb[0].mxu0
          %v1180 = vpop.f32.mrb[0].mxu0
          %v1181 = vadd.f32 %v1105, %v1180
          %v1182 = vpop.f32.mrb[0].mxu0
          %1183 = vmatprep.mubr.bf16.mxu0 0
          %1184 = vmatmul.mubr.bf16.gmra.mrb[0].mxu0 %v1135
          %v1185 = vpop.f32.mrb[0].mxu0
          %v1186 = vadd.f32 %v1105, %v1185
          %v1187 = vpop.f32.mrb[0].mxu0
          %v1188 = vpop.f32.mrb[0].mxu0
          %v1189 = vadd.f32 %v1105, %v1188
          %v1190 = vpop.f32.mrb[0].mxu0
          %1191 = vmatprep.mubr.bf16.mxu0 0
          %1192 = vmatmul.mubr.bf16.gmra.mrb[0].mxu0 %v1138
          %v1193 = vpop.f32.mrb[0].mxu0
          %v1194 = vadd.f32 %v1105, %v1193
          %v1195 = vpop.f32.mrb[0].mxu0
          %v1196 = vpop.f32.mrb[0].mxu0
          %v1197 = vadd.f32 %v1105, %v1196
          %v1198 = vpop.f32.mrb[0].mxu0
          %1199 = vmatprep.mubr.bf16.mxu0 0
          %1200 = vmatmul.mubr.bf16.gmra.mrb[0].mxu0 %v1141
          %v1201 = vpop.f32.mrb[0].mxu0
          %v1202 = vadd.f32 %v1105, %v1201
          %v1203 = vpop.f32.mrb[0].mxu0
          %v1204 = vpop.f32.mrb[0].mxu0
          %v1205 = vadd.f32 %v1105, %v1204
          %v1206 = vpop.f32.mrb[0].mxu0
          %1207 = vdwg.mxu0
          %v1208 = vld [vmem:[#allocation13] sm:$0xf]
          %v1209 = vld [vmem:[#allocation13 + $0x4] sm:$0xf]
          %v1210 = vld [vmem:[#allocation13 + $0x8] sm:$0xf]
          %v1211 = vld [vmem:[#allocation13 + $0xc] sm:$0xf]
          %v1212 = vld [vmem:[#allocation13 + $0x10] sm:$0xf]
          %v1213 = vld [vmem:[#allocation13 + $0x14] sm:$0xf]
          %v1214 = vld [vmem:[#allocation13 + $0x18] sm:$0xf]
          %v1215 = vld [vmem:[#allocation13 + $0x1c] sm:$0xf]
          %v1216 = vld [vmem:[#allocation15] sm:$0x1]
          %v1218 = vlaneseq
          %v1219 = vshrl.u32 %v1218, 7
          %v1220 = vsub.s32 0, %v1219
          %v1221 = vrot.slane %v1216, %v1220
          %v1231 = vunpack.c.l.b16 %v1208
          %v1232 = vunpack.c.l.b16 %v1209
          %v1233 = vunpack.c.l.b16 %v1210
          %v1234 = vunpack.c.l.b16 %v1211
          %v1235 = vunpack.c.l.b16 %v1212
          %v1236 = vunpack.c.l.b16 %v1213
          %v1237 = vunpack.c.l.b16 %v1214
          %v1238 = vunpack.c.l.b16 %v1215
          %v1239 = vpack.c.b16 %v1232, %v1231
          %v1240 = vpack.c.b16 %v1234, %v1233
          %v1241 = vpack.c.b16 %v1236, %v1235
          %v1242 = vpack.c.b16 %v1238, %v1237
          %1247 = vmatprep.subr.bf16.mxu0 0
          %1248 = vmatpush1.bf16.msra.mxu0 %v1239
          %1249 = vmatprep.subr.bf16.mxu0 0
          %1250 = vmatpush1.bf16.msra.mxu0 %v1240
          %1251 = vmatprep.subr.bf16.mxu0 0
          %1252 = vmatpush1.bf16.msra.mxu0 %v1241
          %1253 = vmatprep.subr.bf16.mxu0 0
          %1254 = vmatpush1.bf16.msra.mxu0 %v1242
          %1255 = vmatprep.subr.bf16.mxu0 0
          %1256 = vmatpush1.bf16.msra.mxu0 0
          %1257 = vmatprep.subr.bf16.mxu0 0
          %1258 = vmatpush1.bf16.msra.mxu0 0
          %1259 = vmatprep.subr.bf16.mxu0 0
          %1260 = vmatpush1.bf16.msra.mxu0 0
          %1261 = vmatprep.subr.bf16.mxu0 0
          %1262 = vmatpush1.bf16.msra.mxu0 0
          %1263 = vmatprep.subr.bf16.mxu0 0
          %1264 = vmatpush1.bf16.msra.mxu0 0
          %1265 = vmatprep.subr.bf16.mxu0 0
          %1266 = vmatpush1.bf16.msra.mxu0 0
          %1267 = vmatprep.subr.bf16.mxu0 0
          %1268 = vmatpush1.bf16.msra.mxu0 0
          %1269 = vmatprep.subr.bf16.mxu0 0
          %1270 = vmatpush1.bf16.msra.mxu0 0
          %1271 = vmatprep.subr.bf16.mxu0 0
          %1272 = vmatpush1.bf16.msra.mxu0 0
          %1273 = vmatprep.subr.bf16.mxu0 0
          %1274 = vmatpush1.bf16.msra.mxu0 0
          %1275 = vmatprep.subr.bf16.mxu0 0
          %1276 = vmatpush1.bf16.msra.mxu0 0
          %1277 = vmatprep.subr.bf16.mxu0 0
          %1278 = vmatpush1.bf16.msra.mxu0 0
          %1279 = vmatprep.mubr.bf16.mxu0 0
          %1280 = vmatmul.mubr.bf16.gmra.mrb[0].mxu0 %v1132
          %v1281 = vpop.f32.mrb[0].mxu0
          %v1282 = vadd.f32 %v1221, %v1281
          %v1283 = vpop.f32.mrb[0].mxu0
          %v1284 = vpop.f32.mrb[0].mxu0
          %v1285 = vadd.f32 %v1221, %v1284
          %v1286 = vpop.f32.mrb[0].mxu0
          %1287 = vmatprep.mubr.bf16.mxu0 0
          %1288 = vmatmul.mubr.bf16.gmra.mrb[0].mxu0 %v1135
          %v1289 = vpop.f32.mrb[0].mxu0
          %v1290 = vadd.f32 %v1221, %v1289
          %v1291 = vpop.f32.mrb[0].mxu0
          %v1292 = vpop.f32.mrb[0].mxu0
          %v1293 = vadd.f32 %v1221, %v1292
          %v1294 = vpop.f32.mrb[0].mxu0
          %1295 = vmatprep.mubr.bf16.mxu0 0
          %1296 = vmatmul.mubr.bf16.gmra.mrb[0].mxu0 %v1138
          %v1297 = vpop.f32.mrb[0].mxu0
          %v1298 = vadd.f32 %v1221, %v1297
          %v1299 = vpop.f32.mrb[0].mxu0
          %v1300 = vpop.f32.mrb[0].mxu0
          %v1301 = vadd.f32 %v1221, %v1300
          %v1302 = vpop.f32.mrb[0].mxu0
          %1303 = vmatprep.mubr.bf16.mxu0 0
          %1304 = vmatmul.mubr.bf16.gmra.mrb[0].mxu0 %v1141
          %v1305 = vpop.f32.mrb[0].mxu0
          %v1306 = vadd.f32 %v1221, %v1305
          %v1307 = vpop.f32.mrb[0].mxu0
          %v1308 = vpop.f32.mrb[0].mxu0
          %v1309 = vadd.f32 %v1221, %v1308
          %v1310 = vpop.f32.mrb[0].mxu0
          %1311 = vdwg.mxu0
          %v1312 = vld [vmem:[#allocation16] sm:$0xf]
          %v1313 = vld [vmem:[#allocation16 + $0x4] sm:$0xf]
          %v1314 = vld [vmem:[#allocation16 + $0x8] sm:$0xf]
          %v1315 = vld [vmem:[#allocation16 + $0xc] sm:$0xf]
          %v1316 = vld [vmem:[#allocation16 + $0x10] sm:$0xf]
          %v1317 = vld [vmem:[#allocation16 + $0x14] sm:$0xf]
          %v1318 = vld [vmem:[#allocation16 + $0x18] sm:$0xf]
          %v1319 = vld [vmem:[#allocation16 + $0x1c] sm:$0xf]
          %v1320 = vld [vmem:[#allocation18] sm:$0x1]
          %v1322 = vlaneseq
          %v1323 = vshrl.u32 %v1322, 7
          %v1324 = vsub.s32 0, %v1323
          %v1325 = vrot.slane %v1320, %v1324
          %v1335 = vunpack.c.l.b16 %v1312
          %v1336 = vunpack.c.l.b16 %v1313
          %v1337 = vunpack.c.l.b16 %v1314
          %v1338 = vunpack.c.l.b16 %v1315
          %v1339 = vunpack.c.l.b16 %v1316
          %v1340 = vunpack.c.l.b16 %v1317
          %v1341 = vunpack.c.l.b16 %v1318
          %v1342 = vunpack.c.l.b16 %v1319
          %v1343 = vpack.c.b16 %v1336, %v1335
          %v1344 = vpack.c.b16 %v1338, %v1337
          %v1345 = vpack.c.b16 %v1340, %v1339
          %v1346 = vpack.c.b16 %v1342, %v1341
          %1351 = vmatprep.subr.bf16.mxu0 0
          %1352 = vmatpush1.bf16.msra.mxu0 %v1343
          %1353 = vmatprep.subr.bf16.mxu0 0
          %1354 = vmatpush1.bf16.msra.mxu0 %v1344
          %1355 = vmatprep.subr.bf16.mxu0 0
          %1356 = vmatpush1.bf16.msra.mxu0 %v1345
          %1357 = vmatprep.subr.bf16.mxu0 0
          %1358 = vmatpush1.bf16.msra.mxu0 %v1346
          %1359 = vmatprep.subr.bf16.mxu0 0
          %1360 = vmatpush1.bf16.msra.mxu0 0
          %1361 = vmatprep.subr.bf16.mxu0 0
          %1362 = vmatpush1.bf16.msra.mxu0 0
          %1363 = vmatprep.subr.bf16.mxu0 0
          %1364 = vmatpush1.bf16.msra.mxu0 0
          %1365 = vmatprep.subr.bf16.mxu0 0
          %1366 = vmatpush1.bf16.msra.mxu0 0
          %1367 = vmatprep.subr.bf16.mxu0 0
          %1368 = vmatpush1.bf16.msra.mxu0 0
          %1369 = vmatprep.subr.bf16.mxu0 0
          %1370 = vmatpush1.bf16.msra.mxu0 0
          %1371 = vmatprep.subr.bf16.mxu0 0
          %1372 = vmatpush1.bf16.msra.mxu0 0
          %1373 = vmatprep.subr.bf16.mxu0 0
          %1374 = vmatpush1.bf16.msra.mxu0 0
          %1375 = vmatprep.subr.bf16.mxu0 0
          %1376 = vmatpush1.bf16.msra.mxu0 0
          %1377 = vmatprep.subr.bf16.mxu0 0
          %1378 = vmatpush1.bf16.msra.mxu0 0
          %1379 = vmatprep.subr.bf16.mxu0 0
          %1380 = vmatpush1.bf16.msra.mxu0 0
          %1381 = vmatprep.subr.bf16.mxu0 0
          %1382 = vmatpush1.bf16.msra.mxu0 0
          %1383 = vmatprep.mubr.bf16.mxu0 0
          %1384 = vmatmul.mubr.bf16.gmra.mrb[0].mxu0 %v1132
          %v1385 = vpop.f32.mrb[0].mxu0
          %v1386 = vadd.f32 %v1325, %v1385
          %v1387 = vpop.f32.mrb[0].mxu0
          %v1388 = vpop.f32.mrb[0].mxu0
          %v1389 = vadd.f32 %v1325, %v1388
          %v1390 = vpop.f32.mrb[0].mxu0
          %1391 = vmatprep.mubr.bf16.mxu0 0
          %1392 = vmatmul.mubr.bf16.gmra.mrb[0].mxu0 %v1135
          %v1393 = vpop.f32.mrb[0].mxu0
          %v1394 = vadd.f32 %v1325, %v1393
          %v1395 = vpop.f32.mrb[0].mxu0
          %v1396 = vpop.f32.mrb[0].mxu0
          %v1397 = vadd.f32 %v1325, %v1396
          %v1398 = vpop.f32.mrb[0].mxu0
          %1399 = vmatprep.mubr.bf16.mxu0 0
          %1400 = vmatmul.mubr.bf16.gmra.mrb[0].mxu0 %v1138
          %v1401 = vpop.f32.mrb[0].mxu0
          %v1402 = vadd.f32 %v1325, %v1401
          %v1403 = vpop.f32.mrb[0].mxu0
          %v1404 = vpop.f32.mrb[0].mxu0
          %v1405 = vadd.f32 %v1325, %v1404
          %v1406 = vpop.f32.mrb[0].mxu0
          %1407 = vmatprep.mubr.bf16.mxu0 0
          %1408 = vmatmul.mubr.bf16.gmra.mrb[0].mxu0 %v1141
          %v1409 = vpop.f32.mrb[0].mxu0
          %v1410 = vadd.f32 %v1325, %v1409
          %v1411 = vpop.f32.mrb[0].mxu0
          %v1412 = vpop.f32.mrb[0].mxu0
          %v1413 = vadd.f32 %v1325, %v1412
          %v1414 = vpop.f32.mrb[0].mxu0
          %1415 = vdwg.mxu0
          %v1416 = vlaneseq
          %v1417 = vand.u32 %v1416, 127
          %vm1418 = vcmp.lt.s32.totalorder %v1417, 9
          %v1419 = vsel %vm1418, 0.0, -1e+30
          %vm1420 = vcmask 130048
          %v1422 = vsel %vm1420, %v1178, 0
          %v1425 = vsel %vm1420, %v1181, 0
          %v1428 = vsel %vm1420, %v1282, 0
          %v1431 = vsel %vm1420, %v1285, 0
          %1433 = vmatprep.subr.mxu0 0.0
          %1434 = vmatpush1.xpose.msra.mxu0 %v1428
          %1435 = vmatprep.subr.mxu0 0.0
          %1436 = vmatpush1.xpose.msra.mxu0 %v1431
          %1437 = vmatprep.subr.mxu0 0.0
          %1438 = vmatpush1.xpose.msra.mxu0 0.0
          %1439 = vmatprep.subr.mxu0 0.0
          %1440 = vmatpush1.xpose.msra.mxu0 0.0
          %1441 = vmatprep.subr.mxu0 0.0
          %1442 = vmatpush1.xpose.msra.mxu0 0.0
          %1443 = vmatprep.subr.mxu0 0.0
          %1444 = vmatpush1.xpose.msra.mxu0 0.0
          %1445 = vmatprep.subr.mxu0 0.0
          %1446 = vmatpush1.xpose.msra.mxu0 0.0
          %1447 = vmatprep.subr.mxu0 0.0
          %1448 = vmatpush1.xpose.msra.mxu0 0.0
          %1449 = vmatprep.subr.mxu0 0.0
          %1450 = vmatpush1.xpose.msra.mxu0 0.0
          %1451 = vmatprep.subr.mxu0 0.0
          %1452 = vmatpush1.xpose.msra.mxu0 0.0
          %1453 = vmatprep.subr.mxu0 0.0
          %1454 = vmatpush1.xpose.msra.mxu0 0.0
          %1455 = vmatprep.subr.mxu0 0.0
          %1456 = vmatpush1.xpose.msra.mxu0 0.0
          %1457 = vmatprep.subr.mxu0 0.0
          %1458 = vmatpush1.xpose.msra.mxu0 0.0
          %1459 = vmatprep.subr.mxu0 0.0
          %1460 = vmatpush1.xpose.msra.mxu0 0.0
          %1461 = vmatprep.subr.mxu0 0.0
          %1462 = vmatpush1.xpose.msra.mxu0 0.0
          %1463 = vmatprep.subr.mxu0 0.0
          %1464 = vmatpush1.xpose.msra.mxu0 0.0
          %1465 = vmatprep.subr.mxu0 0.0
          %1466 = vmatpush1.xpose.msra.mxu0 0.0
          %1467 = vmatprep.subr.mxu0 0.0
          %1468 = vmatpush1.xpose.msra.mxu0 0.0
          %1469 = vmatprep.subr.mxu0 0.0
          %1470 = vmatpush1.xpose.msra.mxu0 0.0
          %1471 = vmatprep.subr.mxu0 0.0
          %1472 = vmatpush1.xpose.msra.mxu0 0.0
          %1473 = vmatprep.subr.mxu0 0.0
          %1474 = vmatpush1.xpose.msra.mxu0 0.0
          %1475 = vmatprep.subr.mxu0 0.0
          %1476 = vmatpush1.xpose.msra.mxu0 0.0
          %1477 = vmatprep.subr.mxu0 0.0
          %1478 = vmatpush1.xpose.msra.mxu0 0.0
          %1479 = vmatprep.subr.mxu0 0.0
          %1480 = vmatpush1.xpose.msra.mxu0 0.0
          %1481 = vmatprep.subr.mxu0 0.0
          %1482 = vmatpush1.xpose.msra.mxu0 0.0
          %1483 = vmatprep.subr.mxu0 0.0
          %1484 = vmatpush1.xpose.msra.mxu0 0.0
          %1485 = vmatprep.subr.mxu0 0.0
          %1486 = vmatpush1.xpose.msra.mxu0 0.0
          %1487 = vmatprep.subr.mxu0 0.0
          %1488 = vmatpush1.xpose.msra.mxu0 0.0
          %1489 = vmatprep.subr.mxu0 0.0
          %1490 = vmatpush1.xpose.msra.mxu0 0.0
          %1491 = vmatprep.subr.mxu0 0.0
          %1492 = vmatpush1.xpose.msra.mxu0 0.0
          %1493 = vmatprep.subr.mxu0 0.0
          %1494 = vmatpush1.xpose.msra.mxu0 0.0
          %1495 = vmatprep.subr.mxu0 0.0
          %1496 = vmatpush1.xpose.msra.mxu0 0.0
          %1497 = vmatprep.mubr.f32.mxu0 0.0
          %1498 = vmatmul.mubr.f32.gmra.mrb[0].mxu0 %v1422
          %v1499 = vpop.f32.mrb[0].mxu0
          %v1500 = vadd.f32 0.0, %v1499
          %v1501 = vpop.f32.mrb[0].mxu0
          %1502 = vmatprep.mubr.f32.mxu0 0.0
          %1503 = vmatmul.mubr.f32.gmra.mrb[0].mxu0 %v1425
          %v1504 = vpop.f32.mrb[0].mxu0
          %v1505 = vadd.f32 0.0, %v1504
          %v1506 = vpop.f32.mrb[0].mxu0
          %1507 = vdwg.mxu0
          %v1509 = vsel %vm1420, %v1186, 0
          %v1512 = vsel %vm1420, %v1189, 0
          %v1515 = vsel %vm1420, %v1290, 0
          %v1518 = vsel %vm1420, %v1293, 0
          %1520 = vmatprep.subr.mxu0 0.0
          %1521 = vmatpush1.xpose.msra.mxu0 %v1515
          %1522 = vmatprep.subr.mxu0 0.0
          %1523 = vmatpush1.xpose.msra.mxu0 %v1518
          %1524 = vmatprep.subr.mxu0 0.0
          %1525 = vmatpush1.xpose.msra.mxu0 0.0
          %1526 = vmatprep.subr.mxu0 0.0
          %1527 = vmatpush1.xpose.msra.mxu0 0.0
          %1528 = vmatprep.subr.mxu0 0.0
          %1529 = vmatpush1.xpose.msra.mxu0 0.0
          %1530 = vmatprep.subr.mxu0 0.0
          %1531 = vmatpush1.xpose.msra.mxu0 0.0
          %1532 = vmatprep.subr.mxu0 0.0
          %1533 = vmatpush1.xpose.msra.mxu0 0.0
          %1534 = vmatprep.subr.mxu0 0.0
          %1535 = vmatpush1.xpose.msra.mxu0 0.0
          %1536 = vmatprep.subr.mxu0 0.0
          %1537 = vmatpush1.xpose.msra.mxu0 0.0
          %1538 = vmatprep.subr.mxu0 0.0
          %1539 = vmatpush1.xpose.msra.mxu0 0.0
          %1540 = vmatprep.subr.mxu0 0.0
          %1541 = vmatpush1.xpose.msra.mxu0 0.0
          %1542 = vmatprep.subr.mxu0 0.0
          %1543 = vmatpush1.xpose.msra.mxu0 0.0
          %1544 = vmatprep.subr.mxu0 0.0
          %1545 = vmatpush1.xpose.msra.mxu0 0.0
          %1546 = vmatprep.subr.mxu0 0.0
          %1547 = vmatpush1.xpose.msra.mxu0 0.0
          %1548 = vmatprep.subr.mxu0 0.0
          %1549 = vmatpush1.xpose.msra.mxu0 0.0
          %1550 = vmatprep.subr.mxu0 0.0
          %1551 = vmatpush1.xpose.msra.mxu0 0.0
          %1552 = vmatprep.subr.mxu0 0.0
          %1553 = vmatpush1.xpose.msra.mxu0 0.0
          %1554 = vmatprep.subr.mxu0 0.0
          %1555 = vmatpush1.xpose.msra.mxu0 0.0
          %1556 = vmatprep.subr.mxu0 0.0
          %1557 = vmatpush1.xpose.msra.mxu0 0.0
          %1558 = vmatprep.subr.mxu0 0.0
          %1559 = vmatpush1.xpose.msra.mxu0 0.0
          %1560 = vmatprep.subr.mxu0 0.0
          %1561 = vmatpush1.xpose.msra.mxu0 0.0
          %1562 = vmatprep.subr.mxu0 0.0
          %1563 = vmatpush1.xpose.msra.mxu0 0.0
          %1564 = vmatprep.subr.mxu0 0.0
          %1565 = vmatpush1.xpose.msra.mxu0 0.0
          %1566 = vmatprep.subr.mxu0 0.0
          %1567 = vmatpush1.xpose.msra.mxu0 0.0
          %1568 = vmatprep.subr.mxu0 0.0
          %1569 = vmatpush1.xpose.msra.mxu0 0.0
          %1570 = vmatprep.subr.mxu0 0.0
          %1571 = vmatpush1.xpose.msra.mxu0 0.0
          %1572 = vmatprep.subr.mxu0 0.0
          %1573 = vmatpush1.xpose.msra.mxu0 0.0
          %1574 = vmatprep.subr.mxu0 0.0
          %1575 = vmatpush1.xpose.msra.mxu0 0.0
          %1576 = vmatprep.subr.mxu0 0.0
          %1577 = vmatpush1.xpose.msra.mxu0 0.0
          %1578 = vmatprep.subr.mxu0 0.0
          %1579 = vmatpush1.xpose.msra.mxu0 0.0
          %1580 = vmatprep.subr.mxu0 0.0
          %1581 = vmatpush1.xpose.msra.mxu0 0.0
          %1582 = vmatprep.subr.mxu0 0.0
          %1583 = vmatpush1.xpose.msra.mxu0 0.0
          %1584 = vmatprep.mubr.f32.mxu0 0.0
          %1585 = vmatmul.mubr.f32.gmra.mrb[0].mxu0 %v1509
          %v1586 = vpop.f32.mrb[0].mxu0
          %v1587 = vadd.f32 0.0, %v1586
          %v1588 = vpop.f32.mrb[0].mxu0
          %1589 = vmatprep.mubr.f32.mxu0 0.0
          %1590 = vmatmul.mubr.f32.gmra.mrb[0].mxu0 %v1512
          %v1591 = vpop.f32.mrb[0].mxu0
          %v1592 = vadd.f32 0.0, %v1591
          %v1593 = vpop.f32.mrb[0].mxu0
          %1594 = vdwg.mxu0
          %v1596 = vsel %vm1420, %v1194, 0
          %v1599 = vsel %vm1420, %v1197, 0
          %v1602 = vsel %vm1420, %v1298, 0
          %v1605 = vsel %vm1420, %v1301, 0
          %1607 = vmatprep.subr.mxu0 0.0
          %1608 = vmatpush1.xpose.msra.mxu0 %v1602
          %1609 = vmatprep.subr.mxu0 0.0
          %1610 = vmatpush1.xpose.msra.mxu0 %v1605
          %1611 = vmatprep.subr.mxu0 0.0
          %1612 = vmatpush1.xpose.msra.mxu0 0.0
          %1613 = vmatprep.subr.mxu0 0.0
          %1614 = vmatpush1.xpose.msra.mxu0 0.0
          %1615 = vmatprep.subr.mxu0 0.0
          %1616 = vmatpush1.xpose.msra.mxu0 0.0
          %1617 = vmatprep.subr.mxu0 0.0
          %1618 = vmatpush1.xpose.msra.mxu0 0.0
          %1619 = vmatprep.subr.mxu0 0.0
          %1620 = vmatpush1.xpose.msra.mxu0 0.0
          %1621 = vmatprep.subr.mxu0 0.0
          %1622 = vmatpush1.xpose.msra.mxu0 0.0
          %1623 = vmatprep.subr.mxu0 0.0
          %1624 = vmatpush1.xpose.msra.mxu0 0.0
          %1625 = vmatprep.subr.mxu0 0.0
          %1626 = vmatpush1.xpose.msra.mxu0 0.0
          %1627 = vmatprep.subr.mxu0 0.0
          %1628 = vmatpush1.xpose.msra.mxu0 0.0
          %1629 = vmatprep.subr.mxu0 0.0
          %1630 = vmatpush1.xpose.msra.mxu0 0.0
          %1631 = vmatprep.subr.mxu0 0.0
          %1632 = vmatpush1.xpose.msra.mxu0 0.0
          %1633 = vmatprep.subr.mxu0 0.0
          %1634 = vmatpush1.xpose.msra.mxu0 0.0
          %1635 = vmatprep.subr.mxu0 0.0
          %1636 = vmatpush1.xpose.msra.mxu0 0.0
          %1637 = vmatprep.subr.mxu0 0.0
          %1638 = vmatpush1.xpose.msra.mxu0 0.0
          %1639 = vmatprep.subr.mxu0 0.0
          %1640 = vmatpush1.xpose.msra.mxu0 0.0
          %1641 = vmatprep.subr.mxu0 0.0
          %1642 = vmatpush1.xpose.msra.mxu0 0.0
          %1643 = vmatprep.subr.mxu0 0.0
          %1644 = vmatpush1.xpose.msra.mxu0 0.0
          %1645 = vmatprep.subr.mxu0 0.0
          %1646 = vmatpush1.xpose.msra.mxu0 0.0
          %1647 = vmatprep.subr.mxu0 0.0
          %1648 = vmatpush1.xpose.msra.mxu0 0.0
          %1649 = vmatprep.subr.mxu0 0.0
          %1650 = vmatpush1.xpose.msra.mxu0 0.0
          %1651 = vmatprep.subr.mxu0 0.0
          %1652 = vmatpush1.xpose.msra.mxu0 0.0
          %1653 = vmatprep.subr.mxu0 0.0
          %1654 = vmatpush1.xpose.msra.mxu0 0.0
          %1655 = vmatprep.subr.mxu0 0.0
          %1656 = vmatpush1.xpose.msra.mxu0 0.0
          %1657 = vmatprep.subr.mxu0 0.0
          %1658 = vmatpush1.xpose.msra.mxu0 0.0
          %1659 = vmatprep.subr.mxu0 0.0
          %1660 = vmatpush1.xpose.msra.mxu0 0.0
          %1661 = vmatprep.subr.mxu0 0.0
          %1662 = vmatpush1.xpose.msra.mxu0 0.0
          %1663 = vmatprep.subr.mxu0 0.0
          %1664 = vmatpush1.xpose.msra.mxu0 0.0
          %1665 = vmatprep.subr.mxu0 0.0
          %1666 = vmatpush1.xpose.msra.mxu0 0.0
          %1667 = vmatprep.subr.mxu0 0.0
          %1668 = vmatpush1.xpose.msra.mxu0 0.0
          %1669 = vmatprep.subr.mxu0 0.0
          %1670 = vmatpush1.xpose.msra.mxu0 0.0
          %1671 = vmatprep.mubr.f32.mxu0 0.0
          %1672 = vmatmul.mubr.f32.gmra.mrb[0].mxu0 %v1596
          %v1673 = vpop.f32.mrb[0].mxu0
          %v1674 = vadd.f32 0.0, %v1673
          %v1675 = vpop.f32.mrb[0].mxu0
          %1676 = vmatprep.mubr.f32.mxu0 0.0
          %1677 = vmatmul.mubr.f32.gmra.mrb[0].mxu0 %v1599
          %v1678 = vpop.f32.mrb[0].mxu0
          %v1679 = vadd.f32 0.0, %v1678
          %v1680 = vpop.f32.mrb[0].mxu0
          %1681 = vdwg.mxu0
          %v1683 = vsel %vm1420, %v1202, 0
          %v1686 = vsel %vm1420, %v1205, 0
          %v1689 = vsel %vm1420, %v1306, 0
          %v1692 = vsel %vm1420, %v1309, 0
          %1694 = vmatprep.subr.mxu0 0.0
          %1695 = vmatpush1.xpose.msra.mxu0 %v1689
          %1696 = vmatprep.subr.mxu0 0.0
          %1697 = vmatpush1.xpose.msra.mxu0 %v1692
          %1698 = vmatprep.subr.mxu0 0.0
          %1699 = vmatpush1.xpose.msra.mxu0 0.0
          %1700 = vmatprep.subr.mxu0 0.0
          %1701 = vmatpush1.xpose.msra.mxu0 0.0
          %1702 = vmatprep.subr.mxu0 0.0
          %1703 = vmatpush1.xpose.msra.mxu0 0.0
          %1704 = vmatprep.subr.mxu0 0.0
          %1705 = vmatpush1.xpose.msra.mxu0 0.0
          %1706 = vmatprep.subr.mxu0 0.0
          %1707 = vmatpush1.xpose.msra.mxu0 0.0
          %1708 = vmatprep.subr.mxu0 0.0
          %1709 = vmatpush1.xpose.msra.mxu0 0.0
          %1710 = vmatprep.subr.mxu0 0.0
          %1711 = vmatpush1.xpose.msra.mxu0 0.0
          %1712 = vmatprep.subr.mxu0 0.0
          %1713 = vmatpush1.xpose.msra.mxu0 0.0
          %1714 = vmatprep.subr.mxu0 0.0
          %1715 = vmatpush1.xpose.msra.mxu0 0.0
          %1716 = vmatprep.subr.mxu0 0.0
          %1717 = vmatpush1.xpose.msra.mxu0 0.0
          %1718 = vmatprep.subr.mxu0 0.0
          %1719 = vmatpush1.xpose.msra.mxu0 0.0
          %1720 = vmatprep.subr.mxu0 0.0
          %1721 = vmatpush1.xpose.msra.mxu0 0.0
          %1722 = vmatprep.subr.mxu0 0.0
          %1723 = vmatpush1.xpose.msra.mxu0 0.0
          %1724 = vmatprep.subr.mxu0 0.0
          %1725 = vmatpush1.xpose.msra.mxu0 0.0
          %1726 = vmatprep.subr.mxu0 0.0
          %1727 = vmatpush1.xpose.msra.mxu0 0.0
          %1728 = vmatprep.subr.mxu0 0.0
          %1729 = vmatpush1.xpose.msra.mxu0 0.0
          %1730 = vmatprep.subr.mxu0 0.0
          %1731 = vmatpush1.xpose.msra.mxu0 0.0
          %1732 = vmatprep.subr.mxu0 0.0
          %1733 = vmatpush1.xpose.msra.mxu0 0.0
          %1734 = vmatprep.subr.mxu0 0.0
          %1735 = vmatpush1.xpose.msra.mxu0 0.0
          %1736 = vmatprep.subr.mxu0 0.0
          %1737 = vmatpush1.xpose.msra.mxu0 0.0
          %1738 = vmatprep.subr.mxu0 0.0
          %1739 = vmatpush1.xpose.msra.mxu0 0.0
          %1740 = vmatprep.subr.mxu0 0.0
          %1741 = vmatpush1.xpose.msra.mxu0 0.0
          %1742 = vmatprep.subr.mxu0 0.0
          %1743 = vmatpush1.xpose.msra.mxu0 0.0
          %1744 = vmatprep.subr.mxu0 0.0
          %1745 = vmatpush1.xpose.msra.mxu0 0.0
          %1746 = vmatprep.subr.mxu0 0.0
          %1747 = vmatpush1.xpose.msra.mxu0 0.0
          %1748 = vmatprep.subr.mxu0 0.0
          %1749 = vmatpush1.xpose.msra.mxu0 0.0
          %1750 = vmatprep.subr.mxu0 0.0
          %1751 = vmatpush1.xpose.msra.mxu0 0.0
          %1752 = vmatprep.subr.mxu0 0.0
          %1753 = vmatpush1.xpose.msra.mxu0 0.0
          %1754 = vmatprep.subr.mxu0 0.0
          %1755 = vmatpush1.xpose.msra.mxu0 0.0
          %1756 = vmatprep.subr.mxu0 0.0
          %1757 = vmatpush1.xpose.msra.mxu0 0.0
          %1758 = vmatprep.mubr.f32.mxu0 0.0
          %1759 = vmatmul.mubr.f32.gmra.mrb[0].mxu0 %v1683
          %v1760 = vpop.f32.mrb[0].mxu0
          %v1761 = vadd.f32 0.0, %v1760
          %v1762 = vpop.f32.mrb[0].mxu0
          %1763 = vmatprep.mubr.f32.mxu0 0.0
          %1764 = vmatmul.mubr.f32.gmra.mrb[0].mxu0 %v1686
          %v1765 = vpop.f32.mrb[0].mxu0
          %v1766 = vadd.f32 0.0, %v1765
          %v1767 = vpop.f32.mrb[0].mxu0
          %1768 = vdwg.mxu0
          %v1769 = vmul.f32 %v1500, 0.25
          %v1770 = vmul.f32 %v1505, 0.25
          %v1771 = vmul.f32 %v1587, 0.25
          %v1772 = vmul.f32 %v1592, 0.25
          %v1773 = vmul.f32 %v1674, 0.25
          %v1774 = vmul.f32 %v1679, 0.25
          %v1775 = vmul.f32 %v1761, 0.25
          %v1776 = vmul.f32 %v1766, 0.25
          %v1777 = vadd.f32 %v1769, %v1419
          %v1778 = vadd.f32 %v1770, %v1419
          %v1779 = vadd.f32 %v1771, %v1419
          %v1780 = vadd.f32 %v1772, %v1419
          %v1781 = vadd.f32 %v1773, %v1419
          %v1782 = vadd.f32 %v1774, %v1419
          %v1783 = vadd.f32 %v1775, %v1419
          %v1784 = vadd.f32 %v1776, %v1419
          %v1785 = vsel %vm1420, %v1777, -inf
          %1786 = vmax.xlane.f32.xlu0 %v1785
          %v1787 = vpop.xlane.xlu0 %1786
          %v1788 = vsel %vm1420, %v1778, -inf
          %1789 = vmax.xlane.f32.xlu0 %v1788
          %v1790 = vpop.xlane.xlu0 %1789
          %v1791 = vsel %vm1420, %v1779, -inf
          %1792 = vmax.xlane.f32.xlu0 %v1791
          %v1793 = vpop.xlane.xlu0 %1792
          %v1794 = vsel %vm1420, %v1780, -inf
          %1795 = vmax.xlane.f32.xlu0 %v1794
          %v1796 = vpop.xlane.xlu0 %1795
          %v1797 = vsel %vm1420, %v1781, -inf
          %1798 = vmax.xlane.f32.xlu0 %v1797
          %v1799 = vpop.xlane.xlu0 %1798
          %v1800 = vsel %vm1420, %v1782, -inf
          %1801 = vmax.xlane.f32.xlu0 %v1800
          %v1802 = vpop.xlane.xlu0 %1801
          %v1803 = vsel %vm1420, %v1783, -inf
          %1804 = vmax.xlane.f32.xlu0 %v1803
          %v1805 = vpop.xlane.xlu0 %1804
          %v1806 = vsel %vm1420, %v1784, -inf
          %1807 = vmax.xlane.f32.xlu0 %v1806
          %v1808 = vpop.xlane.xlu0 %1807
          %v1809 = vsub.f32 %v1777, %v1787
          %v1810 = vsub.f32 %v1778, %v1790
          %v1811 = vsub.f32 %v1779, %v1793
          %v1812 = vsub.f32 %v1780, %v1796
          %v1813 = vsub.f32 %v1781, %v1799
          %v1814 = vsub.f32 %v1782, %v1802
          %v1815 = vsub.f32 %v1783, %v1805
          %v1816 = vsub.f32 %v1784, %v1808
          %v1817 = vmul.f32 %v1809, 1.442695
          %v1818 = vpow.pop %v1817
          %v1819 = vmul.f32 %v1810, 1.442695
          %v1820 = vpow.pop %v1819
          %v1821 = vmul.f32 %v1811, 1.442695
          %v1822 = vpow.pop %v1821
          %v1823 = vmul.f32 %v1812, 1.442695
          %v1824 = vpow.pop %v1823
          %v1825 = vmul.f32 %v1813, 1.442695
          %v1826 = vpow.pop %v1825
          %v1827 = vmul.f32 %v1814, 1.442695
          %v1828 = vpow.pop %v1827
          %v1829 = vmul.f32 %v1815, 1.442695
          %v1830 = vpow.pop %v1829
          %v1831 = vmul.f32 %v1816, 1.442695
          %v1832 = vpow.pop %v1831
          %v1833 = vsel %vm1420, %v1818, 0.0
          %1834 = vadd.xlane.f32.xlu0 %v1833
          %v1835 = vpop.xlane.xlu0 %1834
          %v1836 = vsel %vm1420, %v1820, 0.0
          %1837 = vadd.xlane.f32.xlu0 %v1836
          %v1838 = vpop.xlane.xlu0 %1837
          %v1839 = vsel %vm1420, %v1822, 0.0
          %1840 = vadd.xlane.f32.xlu0 %v1839
          %v1841 = vpop.xlane.xlu0 %1840
          %v1842 = vsel %vm1420, %v1824, 0.0
          %1843 = vadd.xlane.f32.xlu0 %v1842
          %v1844 = vpop.xlane.xlu0 %1843
          %v1845 = vsel %vm1420, %v1826, 0.0
          %1846 = vadd.xlane.f32.xlu0 %v1845
          %v1847 = vpop.xlane.xlu0 %1846
          %v1848 = vsel %vm1420, %v1828, 0.0
          %1849 = vadd.xlane.f32.xlu0 %v1848
          %v1850 = vpop.xlane.xlu0 %1849
          %v1851 = vsel %vm1420, %v1830, 0.0
          %1852 = vadd.xlane.f32.xlu0 %v1851
          %v1853 = vpop.xlane.xlu0 %1852
          %v1854 = vsel %vm1420, %v1832, 0.0
          %1855 = vadd.xlane.f32.xlu0 %v1854
          %v1856 = vpop.xlane.xlu0 %1855
          %v1857 = vrcp.pop %v1835
          %v1858 = vrcp.pop %v1838
          %v1859 = vrcp.pop %v1841
          %v1860 = vrcp.pop %v1844
          %v1861 = vrcp.pop %v1847
          %v1862 = vrcp.pop %v1850
          %v1863 = vrcp.pop %v1853
          %v1864 = vrcp.pop %v1856
          %v1865 = vmul.f32 %v1818, %v1857
          %v1866 = vmul.f32 %v1820, %v1858
          %v1867 = vmul.f32 %v1822, %v1859
          %v1868 = vmul.f32 %v1824, %v1860
          %v1869 = vmul.f32 %v1826, %v1861
          %v1870 = vmul.f32 %v1828, %v1862
          %v1871 = vmul.f32 %v1830, %v1863
          %v1872 = vmul.f32 %v1832, %v1864
          %v1874 = vsel %vm1420, %v1865, 0
          %v1877 = vsel %vm1420, %v1866, 0
          %1879 = vmatprep.subr.mxu0 0.0
          %1880 = vmatpush1.msra.mxu0 %v1386
          %1881 = vmatprep.subr.mxu0 0.0
          %1882 = vmatpush1.msra.mxu0 %v1389
          %1883 = vmatprep.subr.mxu0 0.0
          %1884 = vmatpush1.msra.mxu0 0.0
          %1885 = vmatprep.subr.mxu0 0.0
          %1886 = vmatpush1.msra.mxu0 0.0
          %1887 = vmatprep.subr.mxu0 0.0
          %1888 = vmatpush1.msra.mxu0 0.0
          %1889 = vmatprep.subr.mxu0 0.0
          %1890 = vmatpush1.msra.mxu0 0.0
          %1891 = vmatprep.subr.mxu0 0.0
          %1892 = vmatpush1.msra.mxu0 0.0
          %1893 = vmatprep.subr.mxu0 0.0
          %1894 = vmatpush1.msra.mxu0 0.0
          %1895 = vmatprep.subr.mxu0 0.0
          %1896 = vmatpush1.msra.mxu0 0.0
          %1897 = vmatprep.subr.mxu0 0.0
          %1898 = vmatpush1.msra.mxu0 0.0
          %1899 = vmatprep.subr.mxu0 0.0
          %1900 = vmatpush1.msra.mxu0 0.0
          %1901 = vmatprep.subr.mxu0 0.0
          %1902 = vmatpush1.msra.mxu0 0.0
          %1903 = vmatprep.subr.mxu0 0.0
          %1904 = vmatpush1.msra.mxu0 0.0
          %1905 = vmatprep.subr.mxu0 0.0
          %1906 = vmatpush1.msra.mxu0 0.0
          %1907 = vmatprep.subr.mxu0 0.0
          %1908 = vmatpush1.msra.mxu0 0.0
          %1909 = vmatprep.subr.mxu0 0.0
          %1910 = vmatpush1.msra.mxu0 0.0
          %1911 = vmatprep.subr.mxu0 0.0
          %1912 = vmatpush1.msra.mxu0 0.0
          %1913 = vmatprep.subr.mxu0 0.0
          %1914 = vmatpush1.msra.mxu0 0.0
          %1915 = vmatprep.subr.mxu0 0.0
          %1916 = vmatpush1.msra.mxu0 0.0
          %1917 = vmatprep.subr.mxu0 0.0
          %1918 = vmatpush1.msra.mxu0 0.0
          %1919 = vmatprep.subr.mxu0 0.0
          %1920 = vmatpush1.msra.mxu0 0.0
          %1921 = vmatprep.subr.mxu0 0.0
          %1922 = vmatpush1.msra.mxu0 0.0
          %1923 = vmatprep.subr.mxu0 0.0
          %1924 = vmatpush1.msra.mxu0 0.0
          %1925 = vmatprep.subr.mxu0 0.0
          %1926 = vmatpush1.msra.mxu0 0.0
          %1927 = vmatprep.subr.mxu0 0.0
          %1928 = vmatpush1.msra.mxu0 0.0
          %1929 = vmatprep.subr.mxu0 0.0
          %1930 = vmatpush1.msra.mxu0 0.0
          %1931 = vmatprep.subr.mxu0 0.0
          %1932 = vmatpush1.msra.mxu0 0.0
          %1933 = vmatprep.subr.mxu0 0.0
          %1934 = vmatpush1.msra.mxu0 0.0
          %1935 = vmatprep.subr.mxu0 0.0
          %1936 = vmatpush1.msra.mxu0 0.0
          %1937 = vmatprep.subr.mxu0 0.0
          %1938 = vmatpush1.msra.mxu0 0.0
          %1939 = vmatprep.subr.mxu0 0.0
          %1940 = vmatpush1.msra.mxu0 0.0
          %1941 = vmatprep.subr.mxu0 0.0
          %1942 = vmatpush1.msra.mxu0 0.0
          %1943 = vmatprep.mubr.f32.mxu0 0.0
          %1944 = vmatmul.mubr.f32.gmra.mrb[0].mxu0 %v1874
          %v1945 = vpop.f32.mrb[0].mxu0
          %v1946 = vadd.f32 0.0, %v1945
          %v1947 = vpop.f32.mrb[0].mxu0
          %1948 = vmatprep.mubr.f32.mxu0 0.0
          %1949 = vmatmul.mubr.f32.gmra.mrb[0].mxu0 %v1877
          %v1950 = vpop.f32.mrb[0].mxu0
          %v1951 = vadd.f32 0.0, %v1950
          %v1952 = vpop.f32.mrb[0].mxu0
          %1953 = vdwg.mxu0
          %v1955 = vsel %vm1420, %v1867, 0
          %v1958 = vsel %vm1420, %v1868, 0
          %1960 = vmatprep.subr.mxu0 0.0
          %1961 = vmatpush1.msra.mxu0 %v1394
          %1962 = vmatprep.subr.mxu0 0.0
          %1963 = vmatpush1.msra.mxu0 %v1397
          %1964 = vmatprep.subr.mxu0 0.0
          %1965 = vmatpush1.msra.mxu0 0.0
          %1966 = vmatprep.subr.mxu0 0.0
          %1967 = vmatpush1.msra.mxu0 0.0
          %1968 = vmatprep.subr.mxu0 0.0
          %1969 = vmatpush1.msra.mxu0 0.0
          %1970 = vmatprep.subr.mxu0 0.0
          %1971 = vmatpush1.msra.mxu0 0.0
          %1972 = vmatprep.subr.mxu0 0.0
          %1973 = vmatpush1.msra.mxu0 0.0
          %1974 = vmatprep.subr.mxu0 0.0
          %1975 = vmatpush1.msra.mxu0 0.0
          %1976 = vmatprep.subr.mxu0 0.0
          %1977 = vmatpush1.msra.mxu0 0.0
          %1978 = vmatprep.subr.mxu0 0.0
          %1979 = vmatpush1.msra.mxu0 0.0
          %1980 = vmatprep.subr.mxu0 0.0
          %1981 = vmatpush1.msra.mxu0 0.0
          %1982 = vmatprep.subr.mxu0 0.0
          %1983 = vmatpush1.msra.mxu0 0.0
          %1984 = vmatprep.subr.mxu0 0.0
          %1985 = vmatpush1.msra.mxu0 0.0
          %1986 = vmatprep.subr.mxu0 0.0
          %1987 = vmatpush1.msra.mxu0 0.0
          %1988 = vmatprep.subr.mxu0 0.0
          %1989 = vmatpush1.msra.mxu0 0.0
          %1990 = vmatprep.subr.mxu0 0.0
          %1991 = vmatpush1.msra.mxu0 0.0
          %1992 = vmatprep.subr.mxu0 0.0
          %1993 = vmatpush1.msra.mxu0 0.0
          %1994 = vmatprep.subr.mxu0 0.0
          %1995 = vmatpush1.msra.mxu0 0.0
          %1996 = vmatprep.subr.mxu0 0.0
          %1997 = vmatpush1.msra.mxu0 0.0
          %1998 = vmatprep.subr.mxu0 0.0
          %1999 = vmatpush1.msra.mxu0 0.0
          %2000 = vmatprep.subr.mxu0 0.0
          %2001 = vmatpush1.msra.mxu0 0.0
          %2002 = vmatprep.subr.mxu0 0.0
          %2003 = vmatpush1.msra.mxu0 0.0
          %2004 = vmatprep.subr.mxu0 0.0
          %2005 = vmatpush1.msra.mxu0 0.0
          %2006 = vmatprep.subr.mxu0 0.0
          %2007 = vmatpush1.msra.mxu0 0.0
          %2008 = vmatprep.subr.mxu0 0.0
          %2009 = vmatpush1.msra.mxu0 0.0
          %2010 = vmatprep.subr.mxu0 0.0
          %2011 = vmatpush1.msra.mxu0 0.0
          %2012 = vmatprep.subr.mxu0 0.0
          %2013 = vmatpush1.msra.mxu0 0.0
          %2014 = vmatprep.subr.mxu0 0.0
          %2015 = vmatpush1.msra.mxu0 0.0
          %2016 = vmatprep.subr.mxu0 0.0
          %2017 = vmatpush1.msra.mxu0 0.0
          %2018 = vmatprep.subr.mxu0 0.0
          %2019 = vmatpush1.msra.mxu0 0.0
          %2020 = vmatprep.subr.mxu0 0.0
          %2021 = vmatpush1.msra.mxu0 0.0
          %2022 = vmatprep.subr.mxu0 0.0
          %2023 = vmatpush1.msra.mxu0 0.0
          %2024 = vmatprep.mubr.f32.mxu0 0.0
          %2025 = vmatmul.mubr.f32.gmra.mrb[0].mxu0 %v1955
          %v2026 = vpop.f32.mrb[0].mxu0
          %v2027 = vadd.f32 0.0, %v2026
          %v2028 = vpop.f32.mrb[0].mxu0
          %2029 = vmatprep.mubr.f32.mxu0 0.0
          %2030 = vmatmul.mubr.f32.gmra.mrb[0].mxu0 %v1958
          %v2031 = vpop.f32.mrb[0].mxu0
          %v2032 = vadd.f32 0.0, %v2031
          %v2033 = vpop.f32.mrb[0].mxu0
          %2034 = vdwg.mxu0
          %v2036 = vsel %vm1420, %v1869, 0
          %v2039 = vsel %vm1420, %v1870, 0
          %2041 = vmatprep.subr.mxu0 0.0
          %2042 = vmatpush1.msra.mxu0 %v1402
          %2043 = vmatprep.subr.mxu0 0.0
          %2044 = vmatpush1.msra.mxu0 %v1405
          %2045 = vmatprep.subr.mxu0 0.0
          %2046 = vmatpush1.msra.mxu0 0.0
          %2047 = vmatprep.subr.mxu0 0.0
          %2048 = vmatpush1.msra.mxu0 0.0
          %2049 = vmatprep.subr.mxu0 0.0
          %2050 = vmatpush1.msra.mxu0 0.0
          %2051 = vmatprep.subr.mxu0 0.0
          %2052 = vmatpush1.msra.mxu0 0.0
          %2053 = vmatprep.subr.mxu0 0.0
          %2054 = vmatpush1.msra.mxu0 0.0
          %2055 = vmatprep.subr.mxu0 0.0
          %2056 = vmatpush1.msra.mxu0 0.0
          %2057 = vmatprep.subr.mxu0 0.0
          %2058 = vmatpush1.msra.mxu0 0.0
          %2059 = vmatprep.subr.mxu0 0.0
          %2060 = vmatpush1.msra.mxu0 0.0
          %2061 = vmatprep.subr.mxu0 0.0
          %2062 = vmatpush1.msra.mxu0 0.0
          %2063 = vmatprep.subr.mxu0 0.0
          %2064 = vmatpush1.msra.mxu0 0.0
          %2065 = vmatprep.subr.mxu0 0.0
          %2066 = vmatpush1.msra.mxu0 0.0
          %2067 = vmatprep.subr.mxu0 0.0
          %2068 = vmatpush1.msra.mxu0 0.0
          %2069 = vmatprep.subr.mxu0 0.0
          %2070 = vmatpush1.msra.mxu0 0.0
          %2071 = vmatprep.subr.mxu0 0.0
          %2072 = vmatpush1.msra.mxu0 0.0
          %2073 = vmatprep.subr.mxu0 0.0
          %2074 = vmatpush1.msra.mxu0 0.0
          %2075 = vmatprep.subr.mxu0 0.0
          %2076 = vmatpush1.msra.mxu0 0.0
          %2077 = vmatprep.subr.mxu0 0.0
          %2078 = vmatpush1.msra.mxu0 0.0
          %2079 = vmatprep.subr.mxu0 0.0
          %2080 = vmatpush1.msra.mxu0 0.0
          %2081 = vmatprep.subr.mxu0 0.0
          %2082 = vmatpush1.msra.mxu0 0.0
          %2083 = vmatprep.subr.mxu0 0.0
          %2084 = vmatpush1.msra.mxu0 0.0
          %2085 = vmatprep.subr.mxu0 0.0
          %2086 = vmatpush1.msra.mxu0 0.0
          %2087 = vmatprep.subr.mxu0 0.0
          %2088 = vmatpush1.msra.mxu0 0.0
          %2089 = vmatprep.subr.mxu0 0.0
          %2090 = vmatpush1.msra.mxu0 0.0
          %2091 = vmatprep.subr.mxu0 0.0
          %2092 = vmatpush1.msra.mxu0 0.0
          %2093 = vmatprep.subr.mxu0 0.0
          %2094 = vmatpush1.msra.mxu0 0.0
          %2095 = vmatprep.subr.mxu0 0.0
          %2096 = vmatpush1.msra.mxu0 0.0
          %2097 = vmatprep.subr.mxu0 0.0
          %2098 = vmatpush1.msra.mxu0 0.0
          %2099 = vmatprep.subr.mxu0 0.0
          %2100 = vmatpush1.msra.mxu0 0.0
          %2101 = vmatprep.subr.mxu0 0.0
          %2102 = vmatpush1.msra.mxu0 0.0
          %2103 = vmatprep.subr.mxu0 0.0
          %2104 = vmatpush1.msra.mxu0 0.0
          %2105 = vmatprep.mubr.f32.mxu0 0.0
          %2106 = vmatmul.mubr.f32.gmra.mrb[0].mxu0 %v2036
          %v2107 = vpop.f32.mrb[0].mxu0
          %v2108 = vadd.f32 0.0, %v2107
          %v2109 = vpop.f32.mrb[0].mxu0
          %2110 = vmatprep.mubr.f32.mxu0 0.0
          %2111 = vmatmul.mubr.f32.gmra.mrb[0].mxu0 %v2039
          %v2112 = vpop.f32.mrb[0].mxu0
          %v2113 = vadd.f32 0.0, %v2112
          %v2114 = vpop.f32.mrb[0].mxu0
          %2115 = vdwg.mxu0
          %v2117 = vsel %vm1420, %v1871, 0
          %v2120 = vsel %vm1420, %v1872, 0
          %2122 = vmatprep.subr.mxu0 0.0
          %2123 = vmatpush1.msra.mxu0 %v1410
          %2124 = vmatprep.subr.mxu0 0.0
          %2125 = vmatpush1.msra.mxu0 %v1413
          %2126 = vmatprep.subr.mxu0 0.0
          %2127 = vmatpush1.msra.mxu0 0.0
          %2128 = vmatprep.subr.mxu0 0.0
          %2129 = vmatpush1.msra.mxu0 0.0
          %2130 = vmatprep.subr.mxu0 0.0
          %2131 = vmatpush1.msra.mxu0 0.0
          %2132 = vmatprep.subr.mxu0 0.0
          %2133 = vmatpush1.msra.mxu0 0.0
          %2134 = vmatprep.subr.mxu0 0.0
          %2135 = vmatpush1.msra.mxu0 0.0
          %2136 = vmatprep.subr.mxu0 0.0
          %2137 = vmatpush1.msra.mxu0 0.0
          %2138 = vmatprep.subr.mxu0 0.0
          %2139 = vmatpush1.msra.mxu0 0.0
          %2140 = vmatprep.subr.mxu0 0.0
          %2141 = vmatpush1.msra.mxu0 0.0
          %2142 = vmatprep.subr.mxu0 0.0
          %2143 = vmatpush1.msra.mxu0 0.0
          %2144 = vmatprep.subr.mxu0 0.0
          %2145 = vmatpush1.msra.mxu0 0.0
          %2146 = vmatprep.subr.mxu0 0.0
          %2147 = vmatpush1.msra.mxu0 0.0
          %2148 = vmatprep.subr.mxu0 0.0
          %2149 = vmatpush1.msra.mxu0 0.0
          %2150 = vmatprep.subr.mxu0 0.0
          %2151 = vmatpush1.msra.mxu0 0.0
          %2152 = vmatprep.subr.mxu0 0.0
          %2153 = vmatpush1.msra.mxu0 0.0
          %2154 = vmatprep.subr.mxu0 0.0
          %2155 = vmatpush1.msra.mxu0 0.0
          %2156 = vmatprep.subr.mxu0 0.0
          %2157 = vmatpush1.msra.mxu0 0.0
          %2158 = vmatprep.subr.mxu0 0.0
          %2159 = vmatpush1.msra.mxu0 0.0
          %2160 = vmatprep.subr.mxu0 0.0
          %2161 = vmatpush1.msra.mxu0 0.0
          %2162 = vmatprep.subr.mxu0 0.0
          %2163 = vmatpush1.msra.mxu0 0.0
          %2164 = vmatprep.subr.mxu0 0.0
          %2165 = vmatpush1.msra.mxu0 0.0
          %2166 = vmatprep.subr.mxu0 0.0
          %2167 = vmatpush1.msra.mxu0 0.0
          %2168 = vmatprep.subr.mxu0 0.0
          %2169 = vmatpush1.msra.mxu0 0.0
          %2170 = vmatprep.subr.mxu0 0.0
          %2171 = vmatpush1.msra.mxu0 0.0
          %2172 = vmatprep.subr.mxu0 0.0
          %2173 = vmatpush1.msra.mxu0 0.0
          %2174 = vmatprep.subr.mxu0 0.0
          %2175 = vmatpush1.msra.mxu0 0.0
          %2176 = vmatprep.subr.mxu0 0.0
          %2177 = vmatpush1.msra.mxu0 0.0
          %2178 = vmatprep.subr.mxu0 0.0
          %2179 = vmatpush1.msra.mxu0 0.0
          %2180 = vmatprep.subr.mxu0 0.0
          %2181 = vmatpush1.msra.mxu0 0.0
          %2182 = vmatprep.subr.mxu0 0.0
          %2183 = vmatpush1.msra.mxu0 0.0
          %2184 = vmatprep.subr.mxu0 0.0
          %2185 = vmatpush1.msra.mxu0 0.0
          %2186 = vmatprep.mubr.f32.mxu0 0.0
          %2187 = vmatmul.mubr.f32.gmra.mrb[0].mxu0 %v2117
          %v2188 = vpop.f32.mrb[0].mxu0
          %v2189 = vadd.f32 0.0, %v2188
          %v2190 = vpop.f32.mrb[0].mxu0
          %2191 = vmatprep.mubr.f32.mxu0 0.0
          %2192 = vmatmul.mubr.f32.gmra.mrb[0].mxu0 %v2120
          %v2193 = vpop.f32.mrb[0].mxu0
          %v2194 = vadd.f32 0.0, %v2193
          %v2195 = vpop.f32.mrb[0].mxu0
          %2196 = vdwg.mxu0
          %2197 = vst.msk [vmem:[#allocation3] sm:$0xff] %vm1420, %v1946
          %2198 = vst.msk [vmem:[#allocation3 + $0x8] sm:$0xff] %vm1420, %v1951
          %2199 = vst.msk [vmem:[#allocation3 + $0x10] sm:$0xff] %vm1420, %v2027
          %2200 = vst.msk [vmem:[#allocation3 + $0x18] sm:$0xff] %vm1420, %v2032
          %2201 = vst.msk [vmem:[#allocation3 + $0x20] sm:$0xff] %vm1420, %v2108
          %2202 = vst.msk [vmem:[#allocation3 + $0x28] sm:$0xff] %vm1420, %v2113
          %2203 = vst.msk [vmem:[#allocation3 + $0x30] sm:$0xff] %vm1420, %v2189
          %2204 = vst.msk [vmem:[#allocation3 + $0x38] sm:$0xff] %vm1420, %v2194
          %2205 = vrot.lane.b32.xlu0 %v1178, 112
          %v2206 = vpop.permute.xlu0 %2205
          %2207 = vrot.lane.b32.xlu0 %v1181, 112
          %v2208 = vpop.permute.xlu0 %2207
          %2209 = vrot.lane.b32.xlu0 %v1282, 112
          %v2210 = vpop.permute.xlu0 %2209
          %2211 = vrot.lane.b32.xlu0 %v1285, 112
          %v2212 = vpop.permute.xlu0 %2211
          %v2213 = vsel %vm1420, %v2206, 0
          %v2215 = vsel %vm1420, %v2208, 0
          %v2217 = vsel %vm1420, %v2210, 0
          %v2219 = vsel %vm1420, %v2212, 0
          %2221 = vmatprep.subr.mxu0 0.0
          %2222 = vmatpush1.xpose.msra.mxu0 %v2217
          %2223 = vmatprep.subr.mxu0 0.0
          %2224 = vmatpush1.xpose.msra.mxu0 %v2219
          %2225 = vmatprep.subr.mxu0 0.0
          %2226 = vmatpush1.xpose.msra.mxu0 0.0
          %2227 = vmatprep.subr.mxu0 0.0
          %2228 = vmatpush1.xpose.msra.mxu0 0.0
          %2229 = vmatprep.subr.mxu0 0.0
          %2230 = vmatpush1.xpose.msra.mxu0 0.0
          %2231 = vmatprep.subr.mxu0 0.0
          %2232 = vmatpush1.xpose.msra.mxu0 0.0
          %2233 = vmatprep.subr.mxu0 0.0
          %2234 = vmatpush1.xpose.msra.mxu0 0.0
          %2235 = vmatprep.subr.mxu0 0.0
          %2236 = vmatpush1.xpose.msra.mxu0 0.0
          %2237 = vmatprep.subr.mxu0 0.0
          %2238 = vmatpush1.xpose.msra.mxu0 0.0
          %2239 = vmatprep.subr.mxu0 0.0
          %2240 = vmatpush1.xpose.msra.mxu0 0.0
          %2241 = vmatprep.subr.mxu0 0.0
          %2242 = vmatpush1.xpose.msra.mxu0 0.0
          %2243 = vmatprep.subr.mxu0 0.0
          %2244 = vmatpush1.xpose.msra.mxu0 0.0
          %2245 = vmatprep.subr.mxu0 0.0
          %2246 = vmatpush1.xpose.msra.mxu0 0.0
          %2247 = vmatprep.subr.mxu0 0.0
          %2248 = vmatpush1.xpose.msra.mxu0 0.0
          %2249 = vmatprep.subr.mxu0 0.0
          %2250 = vmatpush1.xpose.msra.mxu0 0.0
          %2251 = vmatprep.subr.mxu0 0.0
          %2252 = vmatpush1.xpose.msra.mxu0 0.0
          %2253 = vmatprep.subr.mxu0 0.0
          %2254 = vmatpush1.xpose.msra.mxu0 0.0
          %2255 = vmatprep.subr.mxu0 0.0
          %2256 = vmatpush1.xpose.msra.mxu0 0.0
          %2257 = vmatprep.subr.mxu0 0.0
          %2258 = vmatpush1.xpose.msra.mxu0 0.0
          %2259 = vmatprep.subr.mxu0 0.0
          %2260 = vmatpush1.xpose.msra.mxu0 0.0
          %2261 = vmatprep.subr.mxu0 0.0
          %2262 = vmatpush1.xpose.msra.mxu0 0.0
          %2263 = vmatprep.subr.mxu0 0.0
          %2264 = vmatpush1.xpose.msra.mxu0 0.0
          %2265 = vmatprep.subr.mxu0 0.0
          %2266 = vmatpush1.xpose.msra.mxu0 0.0
          %2267 = vmatprep.subr.mxu0 0.0
          %2268 = vmatpush1.xpose.msra.mxu0 0.0
          %2269 = vmatprep.subr.mxu0 0.0
          %2270 = vmatpush1.xpose.msra.mxu0 0.0
          %2271 = vmatprep.subr.mxu0 0.0
          %2272 = vmatpush1.xpose.msra.mxu0 0.0
          %2273 = vmatprep.subr.mxu0 0.0
          %2274 = vmatpush1.xpose.msra.mxu0 0.0
          %2275 = vmatprep.subr.mxu0 0.0
          %2276 = vmatpush1.xpose.msra.mxu0 0.0
          %2277 = vmatprep.subr.mxu0 0.0
          %2278 = vmatpush1.xpose.msra.mxu0 0.0
          %2279 = vmatprep.subr.mxu0 0.0
          %2280 = vmatpush1.xpose.msra.mxu0 0.0
          %2281 = vmatprep.subr.mxu0 0.0
          %2282 = vmatpush1.xpose.msra.mxu0 0.0
          %2283 = vmatprep.subr.mxu0 0.0
          %2284 = vmatpush1.xpose.msra.mxu0 0.0
          %2285 = vmatprep.mubr.f32.mxu0 0.0
          %2286 = vmatmul.mubr.f32.gmra.mrb[0].mxu0 %v2213
          %v2287 = vpop.f32.mrb[0].mxu0
          %v2288 = vadd.f32 0.0, %v2287
          %v2289 = vpop.f32.mrb[0].mxu0
          %2290 = vmatprep.mubr.f32.mxu0 0.0
          %2291 = vmatmul.mubr.f32.gmra.mrb[0].mxu0 %v2215
          %v2292 = vpop.f32.mrb[0].mxu0
          %v2293 = vadd.f32 0.0, %v2292
          %v2294 = vpop.f32.mrb[0].mxu0
          %2295 = vdwg.mxu0
          %2296 = vrot.lane.b32.xlu0 %v1186, 112
          %v2297 = vpop.permute.xlu0 %2296
          %2298 = vrot.lane.b32.xlu0 %v1189, 112
          %v2299 = vpop.permute.xlu0 %2298
          %2300 = vrot.lane.b32.xlu0 %v1290, 112
          %v2301 = vpop.permute.xlu0 %2300
          %2302 = vrot.lane.b32.xlu0 %v1293, 112
          %v2303 = vpop.permute.xlu0 %2302
          %v2304 = vsel %vm1420, %v2297, 0
          %v2306 = vsel %vm1420, %v2299, 0
          %v2308 = vsel %vm1420, %v2301, 0
          %v2310 = vsel %vm1420, %v2303, 0
          %2312 = vmatprep.subr.mxu0 0.0
          %2313 = vmatpush1.xpose.msra.mxu0 %v2308
          %2314 = vmatprep.subr.mxu0 0.0
          %2315 = vmatpush1.xpose.msra.mxu0 %v2310
          %2316 = vmatprep.subr.mxu0 0.0
          %2317 = vmatpush1.xpose.msra.mxu0 0.0
          %2318 = vmatprep.subr.mxu0 0.0
          %2319 = vmatpush1.xpose.msra.mxu0 0.0
          %2320 = vmatprep.subr.mxu0 0.0
          %2321 = vmatpush1.xpose.msra.mxu0 0.0
          %2322 = vmatprep.subr.mxu0 0.0
          %2323 = vmatpush1.xpose.msra.mxu0 0.0
          %2324 = vmatprep.subr.mxu0 0.0
          %2325 = vmatpush1.xpose.msra.mxu0 0.0
          %2326 = vmatprep.subr.mxu0 0.0
          %2327 = vmatpush1.xpose.msra.mxu0 0.0
          %2328 = vmatprep.subr.mxu0 0.0
          %2329 = vmatpush1.xpose.msra.mxu0 0.0
          %2330 = vmatprep.subr.mxu0 0.0
          %2331 = vmatpush1.xpose.msra.mxu0 0.0
          %2332 = vmatprep.subr.mxu0 0.0
          %2333 = vmatpush1.xpose.msra.mxu0 0.0
          %2334 = vmatprep.subr.mxu0 0.0
          %2335 = vmatpush1.xpose.msra.mxu0 0.0
          %2336 = vmatprep.subr.mxu0 0.0
          %2337 = vmatpush1.xpose.msra.mxu0 0.0
          %2338 = vmatprep.subr.mxu0 0.0
          %2339 = vmatpush1.xpose.msra.mxu0 0.0
          %2340 = vmatprep.subr.mxu0 0.0
          %2341 = vmatpush1.xpose.msra.mxu0 0.0
          %2342 = vmatprep.subr.mxu0 0.0
          %2343 = vmatpush1.xpose.msra.mxu0 0.0
          %2344 = vmatprep.subr.mxu0 0.0
          %2345 = vmatpush1.xpose.msra.mxu0 0.0
          %2346 = vmatprep.subr.mxu0 0.0
          %2347 = vmatpush1.xpose.msra.mxu0 0.0
          %2348 = vmatprep.subr.mxu0 0.0
          %2349 = vmatpush1.xpose.msra.mxu0 0.0
          %2350 = vmatprep.subr.mxu0 0.0
          %2351 = vmatpush1.xpose.msra.mxu0 0.0
          %2352 = vmatprep.subr.mxu0 0.0
          %2353 = vmatpush1.xpose.msra.mxu0 0.0
          %2354 = vmatprep.subr.mxu0 0.0
          %2355 = vmatpush1.xpose.msra.mxu0 0.0
          %2356 = vmatprep.subr.mxu0 0.0
          %2357 = vmatpush1.xpose.msra.mxu0 0.0
          %2358 = vmatprep.subr.mxu0 0.0
          %2359 = vmatpush1.xpose.msra.mxu0 0.0
          %2360 = vmatprep.subr.mxu0 0.0
          %2361 = vmatpush1.xpose.msra.mxu0 0.0
          %2362 = vmatprep.subr.mxu0 0.0
          %2363 = vmatpush1.xpose.msra.mxu0 0.0
          %2364 = vmatprep.subr.mxu0 0.0
          %2365 = vmatpush1.xpose.msra.mxu0 0.0
          %2366 = vmatprep.subr.mxu0 0.0
          %2367 = vmatpush1.xpose.msra.mxu0 0.0
          %2368 = vmatprep.subr.mxu0 0.0
          %2369 = vmatpush1.xpose.msra.mxu0 0.0
          %2370 = vmatprep.subr.mxu0 0.0
          %2371 = vmatpush1.xpose.msra.mxu0 0.0
          %2372 = vmatprep.subr.mxu0 0.0
          %2373 = vmatpush1.xpose.msra.mxu0 0.0
          %2374 = vmatprep.subr.mxu0 0.0
          %2375 = vmatpush1.xpose.msra.mxu0 0.0
          %2376 = vmatprep.mubr.f32.mxu0 0.0
          %2377 = vmatmul.mubr.f32.gmra.mrb[0].mxu0 %v2304
          %v2378 = vpop.f32.mrb[0].mxu0
          %v2379 = vadd.f32 0.0, %v2378
          %v2380 = vpop.f32.mrb[0].mxu0
          %2381 = vmatprep.mubr.f32.mxu0 0.0
          %2382 = vmatmul.mubr.f32.gmra.mrb[0].mxu0 %v2306
          %v2383 = vpop.f32.mrb[0].mxu0
          %v2384 = vadd.f32 0.0, %v2383
          %v2385 = vpop.f32.mrb[0].mxu0
          %2386 = vdwg.mxu0
          %2387 = vrot.lane.b32.xlu0 %v1194, 112
          %v2388 = vpop.permute.xlu0 %2387
          %2389 = vrot.lane.b32.xlu0 %v1197, 112
          %v2390 = vpop.permute.xlu0 %2389
          %2391 = vrot.lane.b32.xlu0 %v1298, 112
          %v2392 = vpop.permute.xlu0 %2391
          %2393 = vrot.lane.b32.xlu0 %v1301, 112
          %v2394 = vpop.permute.xlu0 %2393
          %v2395 = vsel %vm1420, %v2388, 0
          %v2397 = vsel %vm1420, %v2390, 0
          %v2399 = vsel %vm1420, %v2392, 0
          %v2401 = vsel %vm1420, %v2394, 0
          %2403 = vmatprep.subr.mxu0 0.0
          %2404 = vmatpush1.xpose.msra.mxu0 %v2399
          %2405 = vmatprep.subr.mxu0 0.0
          %2406 = vmatpush1.xpose.msra.mxu0 %v2401
          %2407 = vmatprep.subr.mxu0 0.0
          %2408 = vmatpush1.xpose.msra.mxu0 0.0
          %2409 = vmatprep.subr.mxu0 0.0
          %2410 = vmatpush1.xpose.msra.mxu0 0.0
          %2411 = vmatprep.subr.mxu0 0.0
          %2412 = vmatpush1.xpose.msra.mxu0 0.0
          %2413 = vmatprep.subr.mxu0 0.0
          %2414 = vmatpush1.xpose.msra.mxu0 0.0
          %2415 = vmatprep.subr.mxu0 0.0
          %2416 = vmatpush1.xpose.msra.mxu0 0.0
          %2417 = vmatprep.subr.mxu0 0.0
          %2418 = vmatpush1.xpose.msra.mxu0 0.0
          %2419 = vmatprep.subr.mxu0 0.0
          %2420 = vmatpush1.xpose.msra.mxu0 0.0
          %2421 = vmatprep.subr.mxu0 0.0
          %2422 = vmatpush1.xpose.msra.mxu0 0.0
          %2423 = vmatprep.subr.mxu0 0.0
          %2424 = vmatpush1.xpose.msra.mxu0 0.0
          %2425 = vmatprep.subr.mxu0 0.0
          %2426 = vmatpush1.xpose.msra.mxu0 0.0
          %2427 = vmatprep.subr.mxu0 0.0
          %2428 = vmatpush1.xpose.msra.mxu0 0.0
          %2429 = vmatprep.subr.mxu0 0.0
          %2430 = vmatpush1.xpose.msra.mxu0 0.0
          %2431 = vmatprep.subr.mxu0 0.0
          %2432 = vmatpush1.xpose.msra.mxu0 0.0
          %2433 = vmatprep.subr.mxu0 0.0
          %2434 = vmatpush1.xpose.msra.mxu0 0.0
          %2435 = vmatprep.subr.mxu0 0.0
          %2436 = vmatpush1.xpose.msra.mxu0 0.0
          %2437 = vmatprep.subr.mxu0 0.0
          %2438 = vmatpush1.xpose.msra.mxu0 0.0
          %2439 = vmatprep.subr.mxu0 0.0
          %2440 = vmatpush1.xpose.msra.mxu0 0.0
          %2441 = vmatprep.subr.mxu0 0.0
          %2442 = vmatpush1.xpose.msra.mxu0 0.0
          %2443 = vmatprep.subr.mxu0 0.0
          %2444 = vmatpush1.xpose.msra.mxu0 0.0
          %2445 = vmatprep.subr.mxu0 0.0
          %2446 = vmatpush1.xpose.msra.mxu0 0.0
          %2447 = vmatprep.subr.mxu0 0.0
          %2448 = vmatpush1.xpose.msra.mxu0 0.0
          %2449 = vmatprep.subr.mxu0 0.0
          %2450 = vmatpush1.xpose.msra.mxu0 0.0
          %2451 = vmatprep.subr.mxu0 0.0
          %2452 = vmatpush1.xpose.msra.mxu0 0.0
          %2453 = vmatprep.subr.mxu0 0.0
          %2454 = vmatpush1.xpose.msra.mxu0 0.0
          %2455 = vmatprep.subr.mxu0 0.0
          %2456 = vmatpush1.xpose.msra.mxu0 0.0
          %2457 = vmatprep.subr.mxu0 0.0
          %2458 = vmatpush1.xpose.msra.mxu0 0.0
          %2459 = vmatprep.subr.mxu0 0.0
          %2460 = vmatpush1.xpose.msra.mxu0 0.0
          %2461 = vmatprep.subr.mxu0 0.0
          %2462 = vmatpush1.xpose.msra.mxu0 0.0
          %2463 = vmatprep.subr.mxu0 0.0
          %2464 = vmatpush1.xpose.msra.mxu0 0.0
          %2465 = vmatprep.subr.mxu0 0.0
          %2466 = vmatpush1.xpose.msra.mxu0 0.0
          %2467 = vmatprep.mubr.f32.mxu0 0.0
          %2468 = vmatmul.mubr.f32.gmra.mrb[0].mxu0 %v2395
          %v2469 = vpop.f32.mrb[0].mxu0
          %v2470 = vadd.f32 0.0, %v2469
          %v2471 = vpop.f32.mrb[0].mxu0
          %2472 = vmatprep.mubr.f32.mxu0 0.0
          %2473 = vmatmul.mubr.f32.gmra.mrb[0].mxu0 %v2397
          %v2474 = vpop.f32.mrb[0].mxu0
          %v2475 = vadd.f32 0.0, %v2474
          %v2476 = vpop.f32.mrb[0].mxu0
          %2477 = vdwg.mxu0
          %2478 = vrot.lane.b32.xlu0 %v1202, 112
          %v2479 = vpop.permute.xlu0 %2478
          %2480 = vrot.lane.b32.xlu0 %v1205, 112
          %v2481 = vpop.permute.xlu0 %2480
          %2482 = vrot.lane.b32.xlu0 %v1306, 112
          %v2483 = vpop.permute.xlu0 %2482
          %2484 = vrot.lane.b32.xlu0 %v1309, 112
          %v2485 = vpop.permute.xlu0 %2484
          %v2486 = vsel %vm1420, %v2479, 0
          %v2488 = vsel %vm1420, %v2481, 0
          %v2490 = vsel %vm1420, %v2483, 0
          %v2492 = vsel %vm1420, %v2485, 0
          %2494 = vmatprep.subr.mxu0 0.0
          %2495 = vmatpush1.xpose.msra.mxu0 %v2490
          %2496 = vmatprep.subr.mxu0 0.0
          %2497 = vmatpush1.xpose.msra.mxu0 %v2492
          %2498 = vmatprep.subr.mxu0 0.0
          %2499 = vmatpush1.xpose.msra.mxu0 0.0
          %2500 = vmatprep.subr.mxu0 0.0
          %2501 = vmatpush1.xpose.msra.mxu0 0.0
          %2502 = vmatprep.subr.mxu0 0.0
          %2503 = vmatpush1.xpose.msra.mxu0 0.0
          %2504 = vmatprep.subr.mxu0 0.0
          %2505 = vmatpush1.xpose.msra.mxu0 0.0
          %2506 = vmatprep.subr.mxu0 0.0
          %2507 = vmatpush1.xpose.msra.mxu0 0.0
          %2508 = vmatprep.subr.mxu0 0.0
          %2509 = vmatpush1.xpose.msra.mxu0 0.0
          %2510 = vmatprep.subr.mxu0 0.0
          %2511 = vmatpush1.xpose.msra.mxu0 0.0
          %2512 = vmatprep.subr.mxu0 0.0
          %2513 = vmatpush1.xpose.msra.mxu0 0.0
          %2514 = vmatprep.subr.mxu0 0.0
          %2515 = vmatpush1.xpose.msra.mxu0 0.0
          %2516 = vmatprep.subr.mxu0 0.0
          %2517 = vmatpush1.xpose.msra.mxu0 0.0
          %2518 = vmatprep.subr.mxu0 0.0
          %2519 = vmatpush1.xpose.msra.mxu0 0.0
          %2520 = vmatprep.subr.mxu0 0.0
          %2521 = vmatpush1.xpose.msra.mxu0 0.0
          %2522 = vmatprep.subr.mxu0 0.0
          %2523 = vmatpush1.xpose.msra.mxu0 0.0
          %2524 = vmatprep.subr.mxu0 0.0
          %2525 = vmatpush1.xpose.msra.mxu0 0.0
          %2526 = vmatprep.subr.mxu0 0.0
          %2527 = vmatpush1.xpose.msra.mxu0 0.0
          %2528 = vmatprep.subr.mxu0 0.0
          %2529 = vmatpush1.xpose.msra.mxu0 0.0
          %2530 = vmatprep.subr.mxu0 0.0
          %2531 = vmatpush1.xpose.msra.mxu0 0.0
          %2532 = vmatprep.subr.mxu0 0.0
          %2533 = vmatpush1.xpose.msra.mxu0 0.0
          %2534 = vmatprep.subr.mxu0 0.0
          %2535 = vmatpush1.xpose.msra.mxu0 0.0
          %2536 = vmatprep.subr.mxu0 0.0
          %2537 = vmatpush1.xpose.msra.mxu0 0.0
          %2538 = vmatprep.subr.mxu0 0.0
          %2539 = vmatpush1.xpose.msra.mxu0 0.0
          %2540 = vmatprep.subr.mxu0 0.0
          %2541 = vmatpush1.xpose.msra.mxu0 0.0
          %2542 = vmatprep.subr.mxu0 0.0
          %2543 = vmatpush1.xpose.msra.mxu0 0.0
          %2544 = vmatprep.subr.mxu0 0.0
          %2545 = vmatpush1.xpose.msra.mxu0 0.0
          %2546 = vmatprep.subr.mxu0 0.0
          %2547 = vmatpush1.xpose.msra.mxu0 0.0
          %2548 = vmatprep.subr.mxu0 0.0
          %2549 = vmatpush1.xpose.msra.mxu0 0.0
          %2550 = vmatprep.subr.mxu0 0.0
          %2551 = vmatpush1.xpose.msra.mxu0 0.0
          %2552 = vmatprep.subr.mxu0 0.0
          %2553 = vmatpush1.xpose.msra.mxu0 0.0
          %2554 = vmatprep.subr.mxu0 0.0
          %2555 = vmatpush1.xpose.msra.mxu0 0.0
          %2556 = vmatprep.subr.mxu0 0.0
          %2557 = vmatpush1.xpose.msra.mxu0 0.0
          %2558 = vmatprep.mubr.f32.mxu0 0.0
          %2559 = vmatmul.mubr.f32.gmra.mrb[0].mxu0 %v2486
          %v2560 = vpop.f32.mrb[0].mxu0
          %v2561 = vadd.f32 0.0, %v2560
          %v2562 = vpop.f32.mrb[0].mxu0
          %2563 = vmatprep.mubr.f32.mxu0 0.0
          %2564 = vmatmul.mubr.f32.gmra.mrb[0].mxu0 %v2488
          %v2565 = vpop.f32.mrb[0].mxu0
          %v2566 = vadd.f32 0.0, %v2565
          %v2567 = vpop.f32.mrb[0].mxu0
          %2568 = vdwg.mxu0
          %v2569 = vmul.f32 %v2288, 0.25
          %v2570 = vmul.f32 %v2293, 0.25
          %v2571 = vmul.f32 %v2379, 0.25
          %v2572 = vmul.f32 %v2384, 0.25
          %v2573 = vmul.f32 %v2470, 0.25
          %v2574 = vmul.f32 %v2475, 0.25
          %v2575 = vmul.f32 %v2561, 0.25
          %v2576 = vmul.f32 %v2566, 0.25
          %v2577 = vadd.f32 %v2569, %v1419
          %v2578 = vadd.f32 %v2570, %v1419
          %v2579 = vadd.f32 %v2571, %v1419
          %v2580 = vadd.f32 %v2572, %v1419
          %v2581 = vadd.f32 %v2573, %v1419
          %v2582 = vadd.f32 %v2574, %v1419
          %v2583 = vadd.f32 %v2575, %v1419
          %v2584 = vadd.f32 %v2576, %v1419
          %v2585 = vsel %vm1420, %v2577, -inf
          %2586 = vmax.xlane.f32.xlu0 %v2585
          %v2587 = vpop.xlane.xlu0 %2586
          %v2588 = vsel %vm1420, %v2578, -inf
          %2589 = vmax.xlane.f32.xlu0 %v2588
          %v2590 = vpop.xlane.xlu0 %2589
          %v2591 = vsel %vm1420, %v2579, -inf
          %2592 = vmax.xlane.f32.xlu0 %v2591
          %v2593 = vpop.xlane.xlu0 %2592
          %v2594 = vsel %vm1420, %v2580, -inf
          %2595 = vmax.xlane.f32.xlu0 %v2594
          %v2596 = vpop.xlane.xlu0 %2595
          %v2597 = vsel %vm1420, %v2581, -inf
          %2598 = vmax.xlane.f32.xlu0 %v2597
          %v2599 = vpop.xlane.xlu0 %2598
          %v2600 = vsel %vm1420, %v2582, -inf
          %2601 = vmax.xlane.f32.xlu0 %v2600
          %v2602 = vpop.xlane.xlu0 %2601
          %v2603 = vsel %vm1420, %v2583, -inf
          %2604 = vmax.xlane.f32.xlu0 %v2603
          %v2605 = vpop.xlane.xlu0 %2604
          %v2606 = vsel %vm1420, %v2584, -inf
          %2607 = vmax.xlane.f32.xlu0 %v2606
          %v2608 = vpop.xlane.xlu0 %2607
          %v2609 = vsub.f32 %v2577, %v2587
          %v2610 = vsub.f32 %v2578, %v2590
          %v2611 = vsub.f32 %v2579, %v2593
          %v2612 = vsub.f32 %v2580, %v2596
          %v2613 = vsub.f32 %v2581, %v2599
          %v2614 = vsub.f32 %v2582, %v2602
          %v2615 = vsub.f32 %v2583, %v2605
          %v2616 = vsub.f32 %v2584, %v2608
          %v2617 = vmul.f32 %v2609, 1.442695
          %v2618 = vpow.pop %v2617
          %v2619 = vmul.f32 %v2610, 1.442695
          %v2620 = vpow.pop %v2619
          %v2621 = vmul.f32 %v2611, 1.442695
          %v2622 = vpow.pop %v2621
          %v2623 = vmul.f32 %v2612, 1.442695
          %v2624 = vpow.pop %v2623
          %v2625 = vmul.f32 %v2613, 1.442695
          %v2626 = vpow.pop %v2625
          %v2627 = vmul.f32 %v2614, 1.442695
          %v2628 = vpow.pop %v2627
          %v2629 = vmul.f32 %v2615, 1.442695
          %v2630 = vpow.pop %v2629
          %v2631 = vmul.f32 %v2616, 1.442695
          %v2632 = vpow.pop %v2631
          %v2633 = vsel %vm1420, %v2618, 0.0
          %2634 = vadd.xlane.f32.xlu0 %v2633
          %v2635 = vpop.xlane.xlu0 %2634
          %v2636 = vsel %vm1420, %v2620, 0.0
          %2637 = vadd.xlane.f32.xlu0 %v2636
          %v2638 = vpop.xlane.xlu0 %2637
          %v2639 = vsel %vm1420, %v2622, 0.0
          %2640 = vadd.xlane.f32.xlu0 %v2639
          %v2641 = vpop.xlane.xlu0 %2640
          %v2642 = vsel %vm1420, %v2624, 0.0
          %2643 = vadd.xlane.f32.xlu0 %v2642
          %v2644 = vpop.xlane.xlu0 %2643
          %v2645 = vsel %vm1420, %v2626, 0.0
          %2646 = vadd.xlane.f32.xlu0 %v2645
          %v2647 = vpop.xlane.xlu0 %2646
          %v2648 = vsel %vm1420, %v2628, 0.0
          %2649 = vadd.xlane.f32.xlu0 %v2648
          %v2650 = vpop.xlane.xlu0 %2649
          %v2651 = vsel %vm1420, %v2630, 0.0
          %2652 = vadd.xlane.f32.xlu0 %v2651
          %v2653 = vpop.xlane.xlu0 %2652
          %v2654 = vsel %vm1420, %v2632, 0.0
          %2655 = vadd.xlane.f32.xlu0 %v2654
          %v2656 = vpop.xlane.xlu0 %2655
          %v2657 = vrcp.pop %v2635
          %v2658 = vrcp.pop %v2638
          %v2659 = vrcp.pop %v2641
          %v2660 = vrcp.pop %v2644
          %v2661 = vrcp.pop %v2647
          %v2662 = vrcp.pop %v2650
          %v2663 = vrcp.pop %v2653
          %v2664 = vrcp.pop %v2656
          %v2665 = vmul.f32 %v2618, %v2657
          %v2666 = vmul.f32 %v2620, %v2658
          %v2667 = vmul.f32 %v2622, %v2659
          %v2668 = vmul.f32 %v2624, %v2660
          %v2669 = vmul.f32 %v2626, %v2661
          %v2670 = vmul.f32 %v2628, %v2662
          %v2671 = vmul.f32 %v2630, %v2663
          %v2672 = vmul.f32 %v2632, %v2664
          %2675 = vrot.lane.b32.xlu0 %v1386, 112
          %v2676 = vpop.permute.xlu0 %2675
          %2677 = vrot.lane.b32.xlu0 %v1389, 112
          %v2678 = vpop.permute.xlu0 %2677
          %v2682 = vsel %vm1420, %v2665, 0
          %v2685 = vsel %vm1420, %v2666, 0
          %2687 = vmatprep.subr.mxu0 0.0
          %2688 = vmatpush1.msra.mxu0 %v2676
          %2689 = vmatprep.subr.mxu0 0.0
          %2690 = vmatpush1.msra.mxu0 %v2678
          %2691 = vmatprep.subr.mxu0 0.0
          %2692 = vmatpush1.msra.mxu0 0.0
          %2693 = vmatprep.subr.mxu0 0.0
          %2694 = vmatpush1.msra.mxu0 0.0
          %2695 = vmatprep.subr.mxu0 0.0
          %2696 = vmatpush1.msra.mxu0 0.0
          %2697 = vmatprep.subr.mxu0 0.0
          %2698 = vmatpush1.msra.mxu0 0.0
          %2699 = vmatprep.subr.mxu0 0.0
          %2700 = vmatpush1.msra.mxu0 0.0
          %2701 = vmatprep.subr.mxu0 0.0
          %2702 = vmatpush1.msra.mxu0 0.0
          %2703 = vmatprep.subr.mxu0 0.0
          %2704 = vmatpush1.msra.mxu0 0.0
          %2705 = vmatprep.subr.mxu0 0.0
          %2706 = vmatpush1.msra.mxu0 0.0
          %2707 = vmatprep.subr.mxu0 0.0
          %2708 = vmatpush1.msra.mxu0 0.0
          %2709 = vmatprep.subr.mxu0 0.0
          %2710 = vmatpush1.msra.mxu0 0.0
          %2711 = vmatprep.subr.mxu0 0.0
          %2712 = vmatpush1.msra.mxu0 0.0
          %2713 = vmatprep.subr.mxu0 0.0
          %2714 = vmatpush1.msra.mxu0 0.0
          %2715 = vmatprep.subr.mxu0 0.0
          %2716 = vmatpush1.msra.mxu0 0.0
          %2717 = vmatprep.subr.mxu0 0.0
          %2718 = vmatpush1.msra.mxu0 0.0
          %2719 = vmatprep.subr.mxu0 0.0
          %2720 = vmatpush1.msra.mxu0 0.0
          %2721 = vmatprep.subr.mxu0 0.0
          %2722 = vmatpush1.msra.mxu0 0.0
          %2723 = vmatprep.subr.mxu0 0.0
          %2724 = vmatpush1.msra.mxu0 0.0
          %2725 = vmatprep.subr.mxu0 0.0
          %2726 = vmatpush1.msra.mxu0 0.0
          %2727 = vmatprep.subr.mxu0 0.0
          %2728 = vmatpush1.msra.mxu0 0.0
          %2729 = vmatprep.subr.mxu0 0.0
          %2730 = vmatpush1.msra.mxu0 0.0
          %2731 = vmatprep.subr.mxu0 0.0
          %2732 = vmatpush1.msra.mxu0 0.0
          %2733 = vmatprep.subr.mxu0 0.0
          %2734 = vmatpush1.msra.mxu0 0.0
          %2735 = vmatprep.subr.mxu0 0.0
          %2736 = vmatpush1.msra.mxu0 0.0
          %2737 = vmatprep.subr.mxu0 0.0
          %2738 = vmatpush1.msra.mxu0 0.0
          %2739 = vmatprep.subr.mxu0 0.0
          %2740 = vmatpush1.msra.mxu0 0.0
          %2741 = vmatprep.subr.mxu0 0.0
          %2742 = vmatpush1.msra.mxu0 0.0
          %2743 = vmatprep.subr.mxu0 0.0
          %2744 = vmatpush1.msra.mxu0 0.0
          %2745 = vmatprep.subr.mxu0 0.0
          %2746 = vmatpush1.msra.mxu0 0.0
          %2747 = vmatprep.subr.mxu0 0.0
          %2748 = vmatpush1.msra.mxu0 0.0
          %2749 = vmatprep.subr.mxu0 0.0
          %2750 = vmatpush1.msra.mxu0 0.0
          %2751 = vmatprep.mubr.f32.mxu0 0.0
          %2752 = vmatmul.mubr.f32.gmra.mrb[0].mxu0 %v2682
          %v2753 = vpop.f32.mrb[0].mxu0
          %v2754 = vadd.f32 0.0, %v2753
          %v2755 = vpop.f32.mrb[0].mxu0
          %2756 = vmatprep.mubr.f32.mxu0 0.0
          %2757 = vmatmul.mubr.f32.gmra.mrb[0].mxu0 %v2685
          %v2758 = vpop.f32.mrb[0].mxu0
          %v2759 = vadd.f32 0.0, %v2758
          %v2760 = vpop.f32.mrb[0].mxu0
          %2761 = vdwg.mxu0
          %2764 = vrot.lane.b32.xlu0 %v1394, 112
          %v2765 = vpop.permute.xlu0 %2764
          %2766 = vrot.lane.b32.xlu0 %v1397, 112
          %v2767 = vpop.permute.xlu0 %2766
          %v2771 = vsel %vm1420, %v2667, 0
          %v2774 = vsel %vm1420, %v2668, 0
          %2776 = vmatprep.subr.mxu0 0.0
          %2777 = vmatpush1.msra.mxu0 %v2765
          %2778 = vmatprep.subr.mxu0 0.0
          %2779 = vmatpush1.msra.mxu0 %v2767
          %2780 = vmatprep.subr.mxu0 0.0
          %2781 = vmatpush1.msra.mxu0 0.0
          %2782 = vmatprep.subr.mxu0 0.0
          %2783 = vmatpush1.msra.mxu0 0.0
          %2784 = vmatprep.subr.mxu0 0.0
          %2785 = vmatpush1.msra.mxu0 0.0
          %2786 = vmatprep.subr.mxu0 0.0
          %2787 = vmatpush1.msra.mxu0 0.0
          %2788 = vmatprep.subr.mxu0 0.0
          %2789 = vmatpush1.msra.mxu0 0.0
          %2790 = vmatprep.subr.mxu0 0.0
          %2791 = vmatpush1.msra.mxu0 0.0
          %2792 = vmatprep.subr.mxu0 0.0
          %2793 = vmatpush1.msra.mxu0 0.0
          %2794 = vmatprep.subr.mxu0 0.0
          %2795 = vmatpush1.msra.mxu0 0.0
          %2796 = vmatprep.subr.mxu0 0.0
          %2797 = vmatpush1.msra.mxu0 0.0
          %2798 = vmatprep.subr.mxu0 0.0
          %2799 = vmatpush1.msra.mxu0 0.0
          %2800 = vmatprep.subr.mxu0 0.0
          %2801 = vmatpush1.msra.mxu0 0.0
          %2802 = vmatprep.subr.mxu0 0.0
          %2803 = vmatpush1.msra.mxu0 0.0
          %2804 = vmatprep.subr.mxu0 0.0
          %2805 = vmatpush1.msra.mxu0 0.0
          %2806 = vmatprep.subr.mxu0 0.0
          %2807 = vmatpush1.msra.mxu0 0.0
          %2808 = vmatprep.subr.mxu0 0.0
          %2809 = vmatpush1.msra.mxu0 0.0
          %2810 = vmatprep.subr.mxu0 0.0
          %2811 = vmatpush1.msra.mxu0 0.0
          %2812 = vmatprep.subr.mxu0 0.0
          %2813 = vmatpush1.msra.mxu0 0.0
          %2814 = vmatprep.subr.mxu0 0.0
          %2815 = vmatpush1.msra.mxu0 0.0
          %2816 = vmatprep.subr.mxu0 0.0
          %2817 = vmatpush1.msra.mxu0 0.0
          %2818 = vmatprep.subr.mxu0 0.0
          %2819 = vmatpush1.msra.mxu0 0.0
          %2820 = vmatprep.subr.mxu0 0.0
          %2821 = vmatpush1.msra.mxu0 0.0
          %2822 = vmatprep.subr.mxu0 0.0
          %2823 = vmatpush1.msra.mxu0 0.0
          %2824 = vmatprep.subr.mxu0 0.0
          %2825 = vmatpush1.msra.mxu0 0.0
          %2826 = vmatprep.subr.mxu0 0.0
          %2827 = vmatpush1.msra.mxu0 0.0
          %2828 = vmatprep.subr.mxu0 0.0
          %2829 = vmatpush1.msra.mxu0 0.0
          %2830 = vmatprep.subr.mxu0 0.0
          %2831 = vmatpush1.msra.mxu0 0.0
          %2832 = vmatprep.subr.mxu0 0.0
          %2833 = vmatpush1.msra.mxu0 0.0
          %2834 = vmatprep.subr.mxu0 0.0
          %2835 = vmatpush1.msra.mxu0 0.0
          %2836 = vmatprep.subr.mxu0 0.0
          %2837 = vmatpush1.msra.mxu0 0.0
          %2838 = vmatprep.subr.mxu0 0.0
          %2839 = vmatpush1.msra.mxu0 0.0
          %2840 = vmatprep.mubr.f32.mxu0 0.0
          %2841 = vmatmul.mubr.f32.gmra.mrb[0].mxu0 %v2771
          %v2842 = vpop.f32.mrb[0].mxu0
          %v2843 = vadd.f32 0.0, %v2842
          %v2844 = vpop.f32.mrb[0].mxu0
          %2845 = vmatprep.mubr.f32.mxu0 0.0
          %2846 = vmatmul.mubr.f32.gmra.mrb[0].mxu0 %v2774
          %v2847 = vpop.f32.mrb[0].mxu0
          %v2848 = vadd.f32 0.0, %v2847
          %v2849 = vpop.f32.mrb[0].mxu0
          %2850 = vdwg.mxu0
          %2853 = vrot.lane.b32.xlu0 %v1402, 112
          %v2854 = vpop.permute.xlu0 %2853
          %2855 = vrot.lane.b32.xlu0 %v1405, 112
          %v2856 = vpop.permute.xlu0 %2855
          %v2860 = vsel %vm1420, %v2669, 0
          %v2863 = vsel %vm1420, %v2670, 0
          %2865 = vmatprep.subr.mxu0 0.0
          %2866 = vmatpush1.msra.mxu0 %v2854
          %2867 = vmatprep.subr.mxu0 0.0
          %2868 = vmatpush1.msra.mxu0 %v2856
          %2869 = vmatprep.subr.mxu0 0.0
          %2870 = vmatpush1.msra.mxu0 0.0
          %2871 = vmatprep.subr.mxu0 0.0
          %2872 = vmatpush1.msra.mxu0 0.0
          %2873 = vmatprep.subr.mxu0 0.0
          %2874 = vmatpush1.msra.mxu0 0.0
          %2875 = vmatprep.subr.mxu0 0.0
          %2876 = vmatpush1.msra.mxu0 0.0
          %2877 = vmatprep.subr.mxu0 0.0
          %2878 = vmatpush1.msra.mxu0 0.0
          %2879 = vmatprep.subr.mxu0 0.0
          %2880 = vmatpush1.msra.mxu0 0.0
          %2881 = vmatprep.subr.mxu0 0.0
          %2882 = vmatpush1.msra.mxu0 0.0
          %2883 = vmatprep.subr.mxu0 0.0
          %2884 = vmatpush1.msra.mxu0 0.0
          %2885 = vmatprep.subr.mxu0 0.0
          %2886 = vmatpush1.msra.mxu0 0.0
          %2887 = vmatprep.subr.mxu0 0.0
          %2888 = vmatpush1.msra.mxu0 0.0
          %2889 = vmatprep.subr.mxu0 0.0
          %2890 = vmatpush1.msra.mxu0 0.0
          %2891 = vmatprep.subr.mxu0 0.0
          %2892 = vmatpush1.msra.mxu0 0.0
          %2893 = vmatprep.subr.mxu0 0.0
          %2894 = vmatpush1.msra.mxu0 0.0
          %2895 = vmatprep.subr.mxu0 0.0
          %2896 = vmatpush1.msra.mxu0 0.0
          %2897 = vmatprep.subr.mxu0 0.0
          %2898 = vmatpush1.msra.mxu0 0.0
          %2899 = vmatprep.subr.mxu0 0.0
          %2900 = vmatpush1.msra.mxu0 0.0
          %2901 = vmatprep.subr.mxu0 0.0
          %2902 = vmatpush1.msra.mxu0 0.0
          %2903 = vmatprep.subr.mxu0 0.0
          %2904 = vmatpush1.msra.mxu0 0.0
          %2905 = vmatprep.subr.mxu0 0.0
          %2906 = vmatpush1.msra.mxu0 0.0
          %2907 = vmatprep.subr.mxu0 0.0
          %2908 = vmatpush1.msra.mxu0 0.0
          %2909 = vmatprep.subr.mxu0 0.0
          %2910 = vmatpush1.msra.mxu0 0.0
          %2911 = vmatprep.subr.mxu0 0.0
          %2912 = vmatpush1.msra.mxu0 0.0
          %2913 = vmatprep.subr.mxu0 0.0
          %2914 = vmatpush1.msra.mxu0 0.0
          %2915 = vmatprep.subr.mxu0 0.0
          %2916 = vmatpush1.msra.mxu0 0.0
          %2917 = vmatprep.subr.mxu0 0.0
          %2918 = vmatpush1.msra.mxu0 0.0
          %2919 = vmatprep.subr.mxu0 0.0
          %2920 = vmatpush1.msra.mxu0 0.0
          %2921 = vmatprep.subr.mxu0 0.0
          %2922 = vmatpush1.msra.mxu0 0.0
          %2923 = vmatprep.subr.mxu0 0.0
          %2924 = vmatpush1.msra.mxu0 0.0
          %2925 = vmatprep.subr.mxu0 0.0
          %2926 = vmatpush1.msra.mxu0 0.0
          %2927 = vmatprep.subr.mxu0 0.0
          %2928 = vmatpush1.msra.mxu0 0.0
          %2929 = vmatprep.mubr.f32.mxu0 0.0
          %2930 = vmatmul.mubr.f32.gmra.mrb[0].mxu0 %v2860
          %v2931 = vpop.f32.mrb[0].mxu0
          %v2932 = vadd.f32 0.0, %v2931
          %v2933 = vpop.f32.mrb[0].mxu0
          %2934 = vmatprep.mubr.f32.mxu0 0.0
          %2935 = vmatmul.mubr.f32.gmra.mrb[0].mxu0 %v2863
          %v2936 = vpop.f32.mrb[0].mxu0
          %v2937 = vadd.f32 0.0, %v2936
          %v2938 = vpop.f32.mrb[0].mxu0
          %2939 = vdwg.mxu0
          %2942 = vrot.lane.b32.xlu0 %v1410, 112
          %v2943 = vpop.permute.xlu0 %2942
          %2944 = vrot.lane.b32.xlu0 %v1413, 112
          %v2945 = vpop.permute.xlu0 %2944
          %v2949 = vsel %vm1420, %v2671, 0
          %v2952 = vsel %vm1420, %v2672, 0
          %2954 = vmatprep.subr.mxu0 0.0
          %2955 = vmatpush1.msra.mxu0 %v2943
          %2956 = vmatprep.subr.mxu0 0.0
          %2957 = vmatpush1.msra.mxu0 %v2945
          %2958 = vmatprep.subr.mxu0 0.0
          %2959 = vmatpush1.msra.mxu0 0.0
          %2960 = vmatprep.subr.mxu0 0.0
          %2961 = vmatpush1.msra.mxu0 0.0
          %2962 = vmatprep.subr.mxu0 0.0
          %2963 = vmatpush1.msra.mxu0 0.0
          %2964 = vmatprep.subr.mxu0 0.0
          %2965 = vmatpush1.msra.mxu0 0.0
          %2966 = vmatprep.subr.mxu0 0.0
          %2967 = vmatpush1.msra.mxu0 0.0
          %2968 = vmatprep.subr.mxu0 0.0
          %2969 = vmatpush1.msra.mxu0 0.0
          %2970 = vmatprep.subr.mxu0 0.0
          %2971 = vmatpush1.msra.mxu0 0.0
          %2972 = vmatprep.subr.mxu0 0.0
          %2973 = vmatpush1.msra.mxu0 0.0
          %2974 = vmatprep.subr.mxu0 0.0
          %2975 = vmatpush1.msra.mxu0 0.0
          %2976 = vmatprep.subr.mxu0 0.0
          %2977 = vmatpush1.msra.mxu0 0.0
          %2978 = vmatprep.subr.mxu0 0.0
          %2979 = vmatpush1.msra.mxu0 0.0
          %2980 = vmatprep.subr.mxu0 0.0
          %2981 = vmatpush1.msra.mxu0 0.0
          %2982 = vmatprep.subr.mxu0 0.0
          %2983 = vmatpush1.msra.mxu0 0.0
          %2984 = vmatprep.subr.mxu0 0.0
          %2985 = vmatpush1.msra.mxu0 0.0
          %2986 = vmatprep.subr.mxu0 0.0
          %2987 = vmatpush1.msra.mxu0 0.0
          %2988 = vmatprep.subr.mxu0 0.0
          %2989 = vmatpush1.msra.mxu0 0.0
          %2990 = vmatprep.subr.mxu0 0.0
          %2991 = vmatpush1.msra.mxu0 0.0
          %2992 = vmatprep.subr.mxu0 0.0
          %2993 = vmatpush1.msra.mxu0 0.0
          %2994 = vmatprep.subr.mxu0 0.0
          %2995 = vmatpush1.msra.mxu0 0.0
          %2996 = vmatprep.subr.mxu0 0.0
          %2997 = vmatpush1.msra.mxu0 0.0
          %2998 = vmatprep.subr.mxu0 0.0
          %2999 = vmatpush1.msra.mxu0 0.0
          %3000 = vmatprep.subr.mxu0 0.0
          %3001 = vmatpush1.msra.mxu0 0.0
          %3002 = vmatprep.subr.mxu0 0.0
          %3003 = vmatpush1.msra.mxu0 0.0
          %3004 = vmatprep.subr.mxu0 0.0
          %3005 = vmatpush1.msra.mxu0 0.0
          %3006 = vmatprep.subr.mxu0 0.0
          %3007 = vmatpush1.msra.mxu0 0.0
          %3008 = vmatprep.subr.mxu0 0.0
          %3009 = vmatpush1.msra.mxu0 0.0
          %3010 = vmatprep.subr.mxu0 0.0
          %3011 = vmatpush1.msra.mxu0 0.0
          %3012 = vmatprep.subr.mxu0 0.0
          %3013 = vmatpush1.msra.mxu0 0.0
          %3014 = vmatprep.subr.mxu0 0.0
          %3015 = vmatpush1.msra.mxu0 0.0
          %3016 = vmatprep.subr.mxu0 0.0
          %3017 = vmatpush1.msra.mxu0 0.0
          %3018 = vmatprep.mubr.f32.mxu0 0.0
          %3019 = vmatmul.mubr.f32.gmra.mrb[0].mxu0 %v2949
          %v3020 = vpop.f32.mrb[0].mxu0
          %v3021 = vadd.f32 0.0, %v3020
          %v3022 = vpop.f32.mrb[0].mxu0
          %3023 = vmatprep.mubr.f32.mxu0 0.0
          %3024 = vmatmul.mubr.f32.gmra.mrb[0].mxu0 %v2952
          %v3025 = vpop.f32.mrb[0].mxu0
          %v3026 = vadd.f32 0.0, %v3025
          %v3027 = vpop.f32.mrb[0].mxu0
          %3028 = vdwg.mxu0
          %3037 = vrot.lane.b32.xlu0 %v2754, 16
          %v3038 = vpop.permute.xlu0 %3037
          %3039 = vrot.lane.b32.xlu0 %v2759, 16
          %v3040 = vpop.permute.xlu0 %3039
          %3041 = vrot.lane.b32.xlu0 %v2843, 16
          %v3042 = vpop.permute.xlu0 %3041
          %3043 = vrot.lane.b32.xlu0 %v2848, 16
          %v3044 = vpop.permute.xlu0 %3043
          %3045 = vrot.lane.b32.xlu0 %v2932, 16
          %v3046 = vpop.permute.xlu0 %3045
          %3047 = vrot.lane.b32.xlu0 %v2937, 16
          %v3048 = vpop.permute.xlu0 %3047
          %3049 = vrot.lane.b32.xlu0 %v3021, 16
          %v3050 = vpop.permute.xlu0 %3049
          %3051 = vrot.lane.b32.xlu0 %v3026, 16
          %v3052 = vpop.permute.xlu0 %3051
          %vm3061 = vcmask 261248
          %3062 = vst.msk [vmem:[#allocation3] sm:$0xff] %vm3061, %v3038
          %3063 = vst.msk [vmem:[#allocation3 + $0x8] sm:$0xff] %vm3061, %v3040
          %3064 = vst.msk [vmem:[#allocation3 + $0x10] sm:$0xff] %vm3061, %v3042
          %3065 = vst.msk [vmem:[#allocation3 + $0x18] sm:$0xff] %vm3061, %v3044
          %3066 = vst.msk [vmem:[#allocation3 + $0x20] sm:$0xff] %vm3061, %v3046
          %3067 = vst.msk [vmem:[#allocation3 + $0x28] sm:$0xff] %vm3061, %v3048
          %3068 = vst.msk [vmem:[#allocation3 + $0x30] sm:$0xff] %vm3061, %v3050
          %3069 = vst.msk [vmem:[#allocation3 + $0x38] sm:$0xff] %vm3061, %v3052
          %3070 = vrot.lane.b32.xlu0 %v1178, 96
          %v3071 = vpop.permute.xlu0 %3070
          %3072 = vrot.lane.b32.xlu0 %v1181, 96
          %v3073 = vpop.permute.xlu0 %3072
          %3074 = vrot.lane.b32.xlu0 %v1282, 96
          %v3075 = vpop.permute.xlu0 %3074
          %3076 = vrot.lane.b32.xlu0 %v1285, 96
          %v3077 = vpop.permute.xlu0 %3076
          %v3078 = vsel %vm1420, %v3071, 0
          %v3080 = vsel %vm1420, %v3073, 0
          %v3082 = vsel %vm1420, %v3075, 0
          %v3084 = vsel %vm1420, %v3077, 0
          %3086 = vmatprep.subr.mxu0 0.0
          %3087 = vmatpush1.xpose.msra.mxu0 %v3082
          %3088 = vmatprep.subr.mxu0 0.0
          %3089 = vmatpush1.xpose.msra.mxu0 %v3084
          %3090 = vmatprep.subr.mxu0 0.0
          %3091 = vmatpush1.xpose.msra.mxu0 0.0
          %3092 = vmatprep.subr.mxu0 0.0
          %3093 = vmatpush1.xpose.msra.mxu0 0.0
          %3094 = vmatprep.subr.mxu0 0.0
          %3095 = vmatpush1.xpose.msra.mxu0 0.0
          %3096 = vmatprep.subr.mxu0 0.0
          %3097 = vmatpush1.xpose.msra.mxu0 0.0
          %3098 = vmatprep.subr.mxu0 0.0
          %3099 = vmatpush1.xpose.msra.mxu0 0.0
          %3100 = vmatprep.subr.mxu0 0.0
          %3101 = vmatpush1.xpose.msra.mxu0 0.0
          %3102 = vmatprep.subr.mxu0 0.0
          %3103 = vmatpush1.xpose.msra.mxu0 0.0
          %3104 = vmatprep.subr.mxu0 0.0
          %3105 = vmatpush1.xpose.msra.mxu0 0.0
          %3106 = vmatprep.subr.mxu0 0.0
          %3107 = vmatpush1.xpose.msra.mxu0 0.0
          %3108 = vmatprep.subr.mxu0 0.0
          %3109 = vmatpush1.xpose.msra.mxu0 0.0
          %3110 = vmatprep.subr.mxu0 0.0
          %3111 = vmatpush1.xpose.msra.mxu0 0.0
          %3112 = vmatprep.subr.mxu0 0.0
          %3113 = vmatpush1.xpose.msra.mxu0 0.0
          %3114 = vmatprep.subr.mxu0 0.0
          %3115 = vmatpush1.xpose.msra.mxu0 0.0
          %3116 = vmatprep.subr.mxu0 0.0
          %3117 = vmatpush1.xpose.msra.mxu0 0.0
          %3118 = vmatprep.subr.mxu0 0.0
          %3119 = vmatpush1.xpose.msra.mxu0 0.0
          %3120 = vmatprep.subr.mxu0 0.0
          %3121 = vmatpush1.xpose.msra.mxu0 0.0
          %3122 = vmatprep.subr.mxu0 0.0
          %3123 = vmatpush1.xpose.msra.mxu0 0.0
          %3124 = vmatprep.subr.mxu0 0.0
          %3125 = vmatpush1.xpose.msra.mxu0 0.0
          %3126 = vmatprep.subr.mxu0 0.0
          %3127 = vmatpush1.xpose.msra.mxu0 0.0
          %3128 = vmatprep.subr.mxu0 0.0
          %3129 = vmatpush1.xpose.msra.mxu0 0.0
          %3130 = vmatprep.subr.mxu0 0.0
          %3131 = vmatpush1.xpose.msra.mxu0 0.0
          %3132 = vmatprep.subr.mxu0 0.0
          %3133 = vmatpush1.xpose.msra.mxu0 0.0
          %3134 = vmatprep.subr.mxu0 0.0
          %3135 = vmatpush1.xpose.msra.mxu0 0.0
          %3136 = vmatprep.subr.mxu0 0.0
          %3137 = vmatpush1.xpose.msra.mxu0 0.0
          %3138 = vmatprep.subr.mxu0 0.0
          %3139 = vmatpush1.xpose.msra.mxu0 0.0
          %3140 = vmatprep.subr.mxu0 0.0
          %3141 = vmatpush1.xpose.msra.mxu0 0.0
          %3142 = vmatprep.subr.mxu0 0.0
          %3143 = vmatpush1.xpose.msra.mxu0 0.0
          %3144 = vmatprep.subr.mxu0 0.0
          %3145 = vmatpush1.xpose.msra.mxu0 0.0
          %3146 = vmatprep.subr.mxu0 0.0
          %3147 = vmatpush1.xpose.msra.mxu0 0.0
          %3148 = vmatprep.subr.mxu0 0.0
          %3149 = vmatpush1.xpose.msra.mxu0 0.0
          %3150 = vmatprep.mubr.f32.mxu0 0.0
          %3151 = vmatmul.mubr.f32.gmra.mrb[0].mxu0 %v3078
          %v3152 = vpop.f32.mrb[0].mxu0
          %v3153 = vadd.f32 0.0, %v3152
          %v3154 = vpop.f32.mrb[0].mxu0
          %3155 = vmatprep.mubr.f32.mxu0 0.0
          %3156 = vmatmul.mubr.f32.gmra.mrb[0].mxu0 %v3080
          %v3157 = vpop.f32.mrb[0].mxu0
          %v3158 = vadd.f32 0.0, %v3157
          %v3159 = vpop.f32.mrb[0].mxu0
          %3160 = vdwg.mxu0
          %3161 = vrot.lane.b32.xlu0 %v1186, 96
          %v3162 = vpop.permute.xlu0 %3161
          %3163 = vrot.lane.b32.xlu0 %v1189, 96
          %v3164 = vpop.permute.xlu0 %3163
          %3165 = vrot.lane.b32.xlu0 %v1290, 96
          %v3166 = vpop.permute.xlu0 %3165
          %3167 = vrot.lane.b32.xlu0 %v1293, 96
          %v3168 = vpop.permute.xlu0 %3167
          %v3169 = vsel %vm1420, %v3162, 0
          %v3171 = vsel %vm1420, %v3164, 0
          %v3173 = vsel %vm1420, %v3166, 0
          %v3175 = vsel %vm1420, %v3168, 0
          %3177 = vmatprep.subr.mxu0 0.0
          %3178 = vmatpush1.xpose.msra.mxu0 %v3173
          %3179 = vmatprep.subr.mxu0 0.0
          %3180 = vmatpush1.xpose.msra.mxu0 %v3175
          %3181 = vmatprep.subr.mxu0 0.0
          %3182 = vmatpush1.xpose.msra.mxu0 0.0
          %3183 = vmatprep.subr.mxu0 0.0
          %3184 = vmatpush1.xpose.msra.mxu0 0.0
          %3185 = vmatprep.subr.mxu0 0.0
          %3186 = vmatpush1.xpose.msra.mxu0 0.0
          %3187 = vmatprep.subr.mxu0 0.0
          %3188 = vmatpush1.xpose.msra.mxu0 0.0
          %3189 = vmatprep.subr.mxu0 0.0
          %3190 = vmatpush1.xpose.msra.mxu0 0.0
          %3191 = vmatprep.subr.mxu0 0.0
          %3192 = vmatpush1.xpose.msra.mxu0 0.0
          %3193 = vmatprep.subr.mxu0 0.0
          %3194 = vmatpush1.xpose.msra.mxu0 0.0
          %3195 = vmatprep.subr.mxu0 0.0
          %3196 = vmatpush1.xpose.msra.mxu0 0.0
          %3197 = vmatprep.subr.mxu0 0.0
          %3198 = vmatpush1.xpose.msra.mxu0 0.0
          %3199 = vmatprep.subr.mxu0 0.0
          %3200 = vmatpush1.xpose.msra.mxu0 0.0
          %3201 = vmatprep.subr.mxu0 0.0
          %3202 = vmatpush1.xpose.msra.mxu0 0.0
          %3203 = vmatprep.subr.mxu0 0.0
          %3204 = vmatpush1.xpose.msra.mxu0 0.0
          %3205 = vmatprep.subr.mxu0 0.0
          %3206 = vmatpush1.xpose.msra.mxu0 0.0
          %3207 = vmatprep.subr.mxu0 0.0
          %3208 = vmatpush1.xpose.msra.mxu0 0.0
          %3209 = vmatprep.subr.mxu0 0.0
          %3210 = vmatpush1.xpose.msra.mxu0 0.0
          %3211 = vmatprep.subr.mxu0 0.0
          %3212 = vmatpush1.xpose.msra.mxu0 0.0
          %3213 = vmatprep.subr.mxu0 0.0
          %3214 = vmatpush1.xpose.msra.mxu0 0.0
          %3215 = vmatprep.subr.mxu0 0.0
          %3216 = vmatpush1.xpose.msra.mxu0 0.0
          %3217 = vmatprep.subr.mxu0 0.0
          %3218 = vmatpush1.xpose.msra.mxu0 0.0
          %3219 = vmatprep.subr.mxu0 0.0
          %3220 = vmatpush1.xpose.msra.mxu0 0.0
          %3221 = vmatprep.subr.mxu0 0.0
          %3222 = vmatpush1.xpose.msra.mxu0 0.0
          %3223 = vmatprep.subr.mxu0 0.0
          %3224 = vmatpush1.xpose.msra.mxu0 0.0
          %3225 = vmatprep.subr.mxu0 0.0
          %3226 = vmatpush1.xpose.msra.mxu0 0.0
          %3227 = vmatprep.subr.mxu0 0.0
          %3228 = vmatpush1.xpose.msra.mxu0 0.0
          %3229 = vmatprep.subr.mxu0 0.0
          %3230 = vmatpush1.xpose.msra.mxu0 0.0
          %3231 = vmatprep.subr.mxu0 0.0
          %3232 = vmatpush1.xpose.msra.mxu0 0.0
          %3233 = vmatprep.subr.mxu0 0.0
          %3234 = vmatpush1.xpose.msra.mxu0 0.0
          %3235 = vmatprep.subr.mxu0 0.0
          %3236 = vmatpush1.xpose.msra.mxu0 0.0
          %3237 = vmatprep.subr.mxu0 0.0
          %3238 = vmatpush1.xpose.msra.mxu0 0.0
          %3239 = vmatprep.subr.mxu0 0.0
          %3240 = vmatpush1.xpose.msra.mxu0 0.0
          %3241 = vmatprep.mubr.f32.mxu0 0.0
          %3242 = vmatmul.mubr.f32.gmra.mrb[0].mxu0 %v3169
          %v3243 = vpop.f32.mrb[0].mxu0
          %v3244 = vadd.f32 0.0, %v3243
          %v3245 = vpop.f32.mrb[0].mxu0
          %3246 = vmatprep.mubr.f32.mxu0 0.0
          %3247 = vmatmul.mubr.f32.gmra.mrb[0].mxu0 %v3171
          %v3248 = vpop.f32.mrb[0].mxu0
          %v3249 = vadd.f32 0.0, %v3248
          %v3250 = vpop.f32.mrb[0].mxu0
          %3251 = vdwg.mxu0
          %3252 = vrot.lane.b32.xlu0 %v1194, 96
          %v3253 = vpop.permute.xlu0 %3252
          %3254 = vrot.lane.b32.xlu0 %v1197, 96
          %v3255 = vpop.permute.xlu0 %3254
          %3256 = vrot.lane.b32.xlu0 %v1298, 96
          %v3257 = vpop.permute.xlu0 %3256
          %3258 = vrot.lane.b32.xlu0 %v1301, 96
          %v3259 = vpop.permute.xlu0 %3258
          %v3260 = vsel %vm1420, %v3253, 0
          %v3262 = vsel %vm1420, %v3255, 0
          %v3264 = vsel %vm1420, %v3257, 0
          %v3266 = vsel %vm1420, %v3259, 0
          %3268 = vmatprep.subr.mxu0 0.0
          %3269 = vmatpush1.xpose.msra.mxu0 %v3264
          %3270 = vmatprep.subr.mxu0 0.0
          %3271 = vmatpush1.xpose.msra.mxu0 %v3266
          %3272 = vmatprep.subr.mxu0 0.0
          %3273 = vmatpush1.xpose.msra.mxu0 0.0
          %3274 = vmatprep.subr.mxu0 0.0
          %3275 = vmatpush1.xpose.msra.mxu0 0.0
          %3276 = vmatprep.subr.mxu0 0.0
          %3277 = vmatpush1.xpose.msra.mxu0 0.0
          %3278 = vmatprep.subr.mxu0 0.0
          %3279 = vmatpush1.xpose.msra.mxu0 0.0
          %3280 = vmatprep.subr.mxu0 0.0
          %3281 = vmatpush1.xpose.msra.mxu0 0.0
          %3282 = vmatprep.subr.mxu0 0.0
          %3283 = vmatpush1.xpose.msra.mxu0 0.0
          %3284 = vmatprep.subr.mxu0 0.0
          %3285 = vmatpush1.xpose.msra.mxu0 0.0
          %3286 = vmatprep.subr.mxu0 0.0
          %3287 = vmatpush1.xpose.msra.mxu0 0.0
          %3288 = vmatprep.subr.mxu0 0.0
          %3289 = vmatpush1.xpose.msra.mxu0 0.0
          %3290 = vmatprep.subr.mxu0 0.0
          %3291 = vmatpush1.xpose.msra.mxu0 0.0
          %3292 = vmatprep.subr.mxu0 0.0
          %3293 = vmatpush1.xpose.msra.mxu0 0.0
          %3294 = vmatprep.subr.mxu0 0.0
          %3295 = vmatpush1.xpose.msra.mxu0 0.0
          %3296 = vmatprep.subr.mxu0 0.0
          %3297 = vmatpush1.xpose.msra.mxu0 0.0
          %3298 = vmatprep.subr.mxu0 0.0
          %3299 = vmatpush1.xpose.msra.mxu0 0.0
          %3300 = vmatprep.subr.mxu0 0.0
          %3301 = vmatpush1.xpose.msra.mxu0 0.0
          %3302 = vmatprep.subr.mxu0 0.0
          %3303 = vmatpush1.xpose.msra.mxu0 0.0
          %3304 = vmatprep.subr.mxu0 0.0
          %3305 = vmatpush1.xpose.msra.mxu0 0.0
          %3306 = vmatprep.subr.mxu0 0.0
          %3307 = vmatpush1.xpose.msra.mxu0 0.0
          %3308 = vmatprep.subr.mxu0 0.0
          %3309 = vmatpush1.xpose.msra.mxu0 0.0
          %3310 = vmatprep.subr.mxu0 0.0
          %3311 = vmatpush1.xpose.msra.mxu0 0.0
          %3312 = vmatprep.subr.mxu0 0.0
          %3313 = vmatpush1.xpose.msra.mxu0 0.0
          %3314 = vmatprep.subr.mxu0 0.0
          %3315 = vmatpush1.xpose.msra.mxu0 0.0
          %3316 = vmatprep.subr.mxu0 0.0
          %3317 = vmatpush1.xpose.msra.mxu0 0.0
          %3318 = vmatprep.subr.mxu0 0.0
          %3319 = vmatpush1.xpose.msra.mxu0 0.0
          %3320 = vmatprep.subr.mxu0 0.0
          %3321 = vmatpush1.xpose.msra.mxu0 0.0
          %3322 = vmatprep.subr.mxu0 0.0
          %3323 = vmatpush1.xpose.msra.mxu0 0.0
          %3324 = vmatprep.subr.mxu0 0.0
          %3325 = vmatpush1.xpose.msra.mxu0 0.0
          %3326 = vmatprep.subr.mxu0 0.0
          %3327 = vmatpush1.xpose.msra.mxu0 0.0
          %3328 = vmatprep.subr.mxu0 0.0
          %3329 = vmatpush1.xpose.msra.mxu0 0.0
          %3330 = vmatprep.subr.mxu0 0.0
          %3331 = vmatpush1.xpose.msra.mxu0 0.0
          %3332 = vmatprep.mubr.f32.mxu0 0.0
          %3333 = vmatmul.mubr.f32.gmra.mrb[0].mxu0 %v3260
          %v3334 = vpop.f32.mrb[0].mxu0
          %v3335 = vadd.f32 0.0, %v3334
          %v3336 = vpop.f32.mrb[0].mxu0
          %3337 = vmatprep.mubr.f32.mxu0 0.0
          %3338 = vmatmul.mubr.f32.gmra.mrb[0].mxu0 %v3262
          %v3339 = vpop.f32.mrb[0].mxu0
          %v3340 = vadd.f32 0.0, %v3339
          %v3341 = vpop.f32.mrb[0].mxu0
          %3342 = vdwg.mxu0
          %3343 = vrot.lane.b32.xlu0 %v1202, 96
          %v3344 = vpop.permute.xlu0 %3343
          %3345 = vrot.lane.b32.xlu0 %v1205, 96
          %v3346 = vpop.permute.xlu0 %3345
          %3347 = vrot.lane.b32.xlu0 %v1306, 96
          %v3348 = vpop.permute.xlu0 %3347
          %3349 = vrot.lane.b32.xlu0 %v1309, 96
          %v3350 = vpop.permute.xlu0 %3349
          %v3351 = vsel %vm1420, %v3344, 0
          %v3353 = vsel %vm1420, %v3346, 0
          %v3355 = vsel %vm1420, %v3348, 0
          %v3357 = vsel %vm1420, %v3350, 0
          %3359 = vmatprep.subr.mxu0 0.0
          %3360 = vmatpush1.xpose.msra.mxu0 %v3355
          %3361 = vmatprep.subr.mxu0 0.0
          %3362 = vmatpush1.xpose.msra.mxu0 %v3357
          %3363 = vmatprep.subr.mxu0 0.0
          %3364 = vmatpush1.xpose.msra.mxu0 0.0
          %3365 = vmatprep.subr.mxu0 0.0
          %3366 = vmatpush1.xpose.msra.mxu0 0.0
          %3367 = vmatprep.subr.mxu0 0.0
          %3368 = vmatpush1.xpose.msra.mxu0 0.0
          %3369 = vmatprep.subr.mxu0 0.0
          %3370 = vmatpush1.xpose.msra.mxu0 0.0
          %3371 = vmatprep.subr.mxu0 0.0
          %3372 = vmatpush1.xpose.msra.mxu0 0.0
          %3373 = vmatprep.subr.mxu0 0.0
          %3374 = vmatpush1.xpose.msra.mxu0 0.0
          %3375 = vmatprep.subr.mxu0 0.0
          %3376 = vmatpush1.xpose.msra.mxu0 0.0
          %3377 = vmatprep.subr.mxu0 0.0
          %3378 = vmatpush1.xpose.msra.mxu0 0.0
          %3379 = vmatprep.subr.mxu0 0.0
          %3380 = vmatpush1.xpose.msra.mxu0 0.0
          %3381 = vmatprep.subr.mxu0 0.0
          %3382 = vmatpush1.xpose.msra.mxu0 0.0
          %3383 = vmatprep.subr.mxu0 0.0
          %3384 = vmatpush1.xpose.msra.mxu0 0.0
          %3385 = vmatprep.subr.mxu0 0.0
          %3386 = vmatpush1.xpose.msra.mxu0 0.0
          %3387 = vmatprep.subr.mxu0 0.0
          %3388 = vmatpush1.xpose.msra.mxu0 0.0
          %3389 = vmatprep.subr.mxu0 0.0
          %3390 = vmatpush1.xpose.msra.mxu0 0.0
          %3391 = vmatprep.subr.mxu0 0.0
          %3392 = vmatpush1.xpose.msra.mxu0 0.0
          %3393 = vmatprep.subr.mxu0 0.0
          %3394 = vmatpush1.xpose.msra.mxu0 0.0
          %3395 = vmatprep.subr.mxu0 0.0
          %3396 = vmatpush1.xpose.msra.mxu0 0.0
          %3397 = vmatprep.subr.mxu0 0.0
          %3398 = vmatpush1.xpose.msra.mxu0 0.0
          %3399 = vmatprep.subr.mxu0 0.0
          %3400 = vmatpush1.xpose.msra.mxu0 0.0
          %3401 = vmatprep.subr.mxu0 0.0
          %3402 = vmatpush1.xpose.msra.mxu0 0.0
          %3403 = vmatprep.subr.mxu0 0.0
          %3404 = vmatpush1.xpose.msra.mxu0 0.0
          %3405 = vmatprep.subr.mxu0 0.0
          %3406 = vmatpush1.xpose.msra.mxu0 0.0
          %3407 = vmatprep.subr.mxu0 0.0
          %3408 = vmatpush1.xpose.msra.mxu0 0.0
          %3409 = vmatprep.subr.mxu0 0.0
          %3410 = vmatpush1.xpose.msra.mxu0 0.0
          %3411 = vmatprep.subr.mxu0 0.0
          %3412 = vmatpush1.xpose.msra.mxu0 0.0
          %3413 = vmatprep.subr.mxu0 0.0
          %3414 = vmatpush1.xpose.msra.mxu0 0.0
          %3415 = vmatprep.subr.mxu0 0.0
          %3416 = vmatpush1.xpose.msra.mxu0 0.0
          %3417 = vmatprep.subr.mxu0 0.0
          %3418 = vmatpush1.xpose.msra.mxu0 0.0
          %3419 = vmatprep.subr.mxu0 0.0
          %3420 = vmatpush1.xpose.msra.mxu0 0.0
          %3421 = vmatprep.subr.mxu0 0.0
          %3422 = vmatpush1.xpose.msra.mxu0 0.0
          %3423 = vmatprep.mubr.f32.mxu0 0.0
          %3424 = vmatmul.mubr.f32.gmra.mrb[0].mxu0 %v3351
          %v3425 = vpop.f32.mrb[0].mxu0
          %v3426 = vadd.f32 0.0, %v3425
          %v3427 = vpop.f32.mrb[0].mxu0
          %3428 = vmatprep.mubr.f32.mxu0 0.0
          %3429 = vmatmul.mubr.f32.gmra.mrb[0].mxu0 %v3353
          %v3430 = vpop.f32.mrb[0].mxu0
          %v3431 = vadd.f32 0.0, %v3430
          %v3432 = vpop.f32.mrb[0].mxu0
          %3433 = vdwg.mxu0
          %v3434 = vmul.f32 %v3153, 0.25
          %v3435 = vmul.f32 %v3158, 0.25
          %v3436 = vmul.f32 %v3244, 0.25
          %v3437 = vmul.f32 %v3249, 0.25
          %v3438 = vmul.f32 %v3335, 0.25
          %v3439 = vmul.f32 %v3340, 0.25
          %v3440 = vmul.f32 %v3426, 0.25
          %v3441 = vmul.f32 %v3431, 0.25
          %v3442 = vadd.f32 %v3434, %v1419
          %v3443 = vadd.f32 %v3435, %v1419
          %v3444 = vadd.f32 %v3436, %v1419
          %v3445 = vadd.f32 %v3437, %v1419
          %v3446 = vadd.f32 %v3438, %v1419
          %v3447 = vadd.f32 %v3439, %v1419
          %v3448 = vadd.f32 %v3440, %v1419
          %v3449 = vadd.f32 %v3441, %v1419
          %v3450 = vsel %vm1420, %v3442, -inf
          %3451 = vmax.xlane.f32.xlu0 %v3450
          %v3452 = vpop.xlane.xlu0 %3451
          %v3453 = vsel %vm1420, %v3443, -inf
          %3454 = vmax.xlane.f32.xlu0 %v3453
          %v3455 = vpop.xlane.xlu0 %3454
          %v3456 = vsel %vm1420, %v3444, -inf
          %3457 = vmax.xlane.f32.xlu0 %v3456
          %v3458 = vpop.xlane.xlu0 %3457
          %v3459 = vsel %vm1420, %v3445, -inf
          %3460 = vmax.xlane.f32.xlu0 %v3459
          %v3461 = vpop.xlane.xlu0 %3460
          %v3462 = vsel %vm1420, %v3446, -inf
          %3463 = vmax.xlane.f32.xlu0 %v3462
          %v3464 = vpop.xlane.xlu0 %3463
          %v3465 = vsel %vm1420, %v3447, -inf
          %3466 = vmax.xlane.f32.xlu0 %v3465
          %v3467 = vpop.xlane.xlu0 %3466
          %v3468 = vsel %vm1420, %v3448, -inf
          %3469 = vmax.xlane.f32.xlu0 %v3468
          %v3470 = vpop.xlane.xlu0 %3469
          %v3471 = vsel %vm1420, %v3449, -inf
          %3472 = vmax.xlane.f32.xlu0 %v3471
          %v3473 = vpop.xlane.xlu0 %3472
          %v3474 = vsub.f32 %v3442, %v3452
          %v3475 = vsub.f32 %v3443, %v3455
          %v3476 = vsub.f32 %v3444, %v3458
          %v3477 = vsub.f32 %v3445, %v3461
          %v3478 = vsub.f32 %v3446, %v3464
          %v3479 = vsub.f32 %v3447, %v3467
          %v3480 = vsub.f32 %v3448, %v3470
          %v3481 = vsub.f32 %v3449, %v3473
          %v3482 = vmul.f32 %v3474, 1.442695
          %v3483 = vpow.pop %v3482
          %v3484 = vmul.f32 %v3475, 1.442695
          %v3485 = vpow.pop %v3484
          %v3486 = vmul.f32 %v3476, 1.442695
          %v3487 = vpow.pop %v3486
          %v3488 = vmul.f32 %v3477, 1.442695
          %v3489 = vpow.pop %v3488
          %v3490 = vmul.f32 %v3478, 1.442695
          %v3491 = vpow.pop %v3490
          %v3492 = vmul.f32 %v3479, 1.442695
          %v3493 = vpow.pop %v3492
          %v3494 = vmul.f32 %v3480, 1.442695
          %v3495 = vpow.pop %v3494
          %v3496 = vmul.f32 %v3481, 1.442695
          %v3497 = vpow.pop %v3496
          %v3498 = vsel %vm1420, %v3483, 0.0
          %3499 = vadd.xlane.f32.xlu0 %v3498
          %v3500 = vpop.xlane.xlu0 %3499
          %v3501 = vsel %vm1420, %v3485, 0.0
          %3502 = vadd.xlane.f32.xlu0 %v3501
          %v3503 = vpop.xlane.xlu0 %3502
          %v3504 = vsel %vm1420, %v3487, 0.0
          %3505 = vadd.xlane.f32.xlu0 %v3504
          %v3506 = vpop.xlane.xlu0 %3505
          %v3507 = vsel %vm1420, %v3489, 0.0
          %3508 = vadd.xlane.f32.xlu0 %v3507
          %v3509 = vpop.xlane.xlu0 %3508
          %v3510 = vsel %vm1420, %v3491, 0.0
          %3511 = vadd.xlane.f32.xlu0 %v3510
          %v3512 = vpop.xlane.xlu0 %3511
          %v3513 = vsel %vm1420, %v3493, 0.0
          %3514 = vadd.xlane.f32.xlu0 %v3513
          %v3515 = vpop.xlane.xlu0 %3514
          %v3516 = vsel %vm1420, %v3495, 0.0
          %3517 = vadd.xlane.f32.xlu0 %v3516
          %v3518 = vpop.xlane.xlu0 %3517
          %v3519 = vsel %vm1420, %v3497, 0.0
          %3520 = vadd.xlane.f32.xlu0 %v3519
          %v3521 = vpop.xlane.xlu0 %3520
          %v3522 = vrcp.pop %v3500
          %v3523 = vrcp.pop %v3503
          %v3524 = vrcp.pop %v3506
          %v3525 = vrcp.pop %v3509
          %v3526 = vrcp.pop %v3512
          %v3527 = vrcp.pop %v3515
          %v3528 = vrcp.pop %v3518
          %v3529 = vrcp.pop %v3521
          %v3530 = vmul.f32 %v3483, %v3522
          %v3531 = vmul.f32 %v3485, %v3523
          %v3532 = vmul.f32 %v3487, %v3524
          %v3533 = vmul.f32 %v3489, %v3525
          %v3534 = vmul.f32 %v3491, %v3526
          %v3535 = vmul.f32 %v3493, %v3527
          %v3536 = vmul.f32 %v3495, %v3528
          %v3537 = vmul.f32 %v3497, %v3529
          %3538 = vrot.lane.b32.xlu0 %v1386, 96
          %v3539 = vpop.permute.xlu0 %3538
          %3540 = vrot.lane.b32.xlu0 %v1389, 96
          %v3541 = vpop.permute.xlu0 %3540
          %v3545 = vsel %vm1420, %v3530, 0
          %v3548 = vsel %vm1420, %v3531, 0
          %3550 = vmatprep.subr.mxu0 0.0
          %3551 = vmatpush1.msra.mxu0 %v3539
          %3552 = vmatprep.subr.mxu0 0.0
          %3553 = vmatpush1.msra.mxu0 %v3541
          %3554 = vmatprep.subr.mxu0 0.0
          %3555 = vmatpush1.msra.mxu0 0.0
          %3556 = vmatprep.subr.mxu0 0.0
          %3557 = vmatpush1.msra.mxu0 0.0
          %3558 = vmatprep.subr.mxu0 0.0
          %3559 = vmatpush1.msra.mxu0 0.0
          %3560 = vmatprep.subr.mxu0 0.0
          %3561 = vmatpush1.msra.mxu0 0.0
          %3562 = vmatprep.subr.mxu0 0.0
          %3563 = vmatpush1.msra.mxu0 0.0
          %3564 = vmatprep.subr.mxu0 0.0
          %3565 = vmatpush1.msra.mxu0 0.0
          %3566 = vmatprep.subr.mxu0 0.0
          %3567 = vmatpush1.msra.mxu0 0.0
          %3568 = vmatprep.subr.mxu0 0.0
          %3569 = vmatpush1.msra.mxu0 0.0
          %3570 = vmatprep.subr.mxu0 0.0
          %3571 = vmatpush1.msra.mxu0 0.0
          %3572 = vmatprep.subr.mxu0 0.0
          %3573 = vmatpush1.msra.mxu0 0.0
          %3574 = vmatprep.subr.mxu0 0.0
          %3575 = vmatpush1.msra.mxu0 0.0
          %3576 = vmatprep.subr.mxu0 0.0
          %3577 = vmatpush1.msra.mxu0 0.0
          %3578 = vmatprep.subr.mxu0 0.0
          %3579 = vmatpush1.msra.mxu0 0.0
          %3580 = vmatprep.subr.mxu0 0.0
          %3581 = vmatpush1.msra.mxu0 0.0
          %3582 = vmatprep.subr.mxu0 0.0
          %3583 = vmatpush1.msra.mxu0 0.0
          %3584 = vmatprep.subr.mxu0 0.0
          %3585 = vmatpush1.msra.mxu0 0.0
          %3586 = vmatprep.subr.mxu0 0.0
          %3587 = vmatpush1.msra.mxu0 0.0
          %3588 = vmatprep.subr.mxu0 0.0
          %3589 = vmatpush1.msra.mxu0 0.0
          %3590 = vmatprep.subr.mxu0 0.0
          %3591 = vmatpush1.msra.mxu0 0.0
          %3592 = vmatprep.subr.mxu0 0.0
          %3593 = vmatpush1.msra.mxu0 0.0
          %3594 = vmatprep.subr.mxu0 0.0
          %3595 = vmatpush1.msra.mxu0 0.0
          %3596 = vmatprep.subr.mxu0 0.0
          %3597 = vmatpush1.msra.mxu0 0.0
          %3598 = vmatprep.subr.mxu0 0.0
          %3599 = vmatpush1.msra.mxu0 0.0
          %3600 = vmatprep.subr.mxu0 0.0
          %3601 = vmatpush1.msra.mxu0 0.0
          %3602 = vmatprep.subr.mxu0 0.0
          %3603 = vmatpush1.msra.mxu0 0.0
          %3604 = vmatprep.subr.mxu0 0.0
          %3605 = vmatpush1.msra.mxu0 0.0
          %3606 = vmatprep.subr.mxu0 0.0
          %3607 = vmatpush1.msra.mxu0 0.0
          %3608 = vmatprep.subr.mxu0 0.0
          %3609 = vmatpush1.msra.mxu0 0.0
          %3610 = vmatprep.subr.mxu0 0.0
          %3611 = vmatpush1.msra.mxu0 0.0
          %3612 = vmatprep.subr.mxu0 0.0
          %3613 = vmatpush1.msra.mxu0 0.0
          %3614 = vmatprep.mubr.f32.mxu0 0.0
          %3615 = vmatmul.mubr.f32.gmra.mrb[0].mxu0 %v3545
          %v3616 = vpop.f32.mrb[0].mxu0
          %v3617 = vadd.f32 0.0, %v3616
          %v3618 = vpop.f32.mrb[0].mxu0
          %3619 = vmatprep.mubr.f32.mxu0 0.0
          %3620 = vmatmul.mubr.f32.gmra.mrb[0].mxu0 %v3548
          %v3621 = vpop.f32.mrb[0].mxu0
          %v3622 = vadd.f32 0.0, %v3621
          %v3623 = vpop.f32.mrb[0].mxu0
          %3624 = vdwg.mxu0
          %3625 = vrot.lane.b32.xlu0 %v1394, 96
          %v3626 = vpop.permute.xlu0 %3625
          %3627 = vrot.lane.b32.xlu0 %v1397, 96
          %v3628 = vpop.permute.xlu0 %3627
          %v3632 = vsel %vm1420, %v3532, 0
          %v3635 = vsel %vm1420, %v3533, 0
          %3637 = vmatprep.subr.mxu0 0.0
          %3638 = vmatpush1.msra.mxu0 %v3626
          %3639 = vmatprep.subr.mxu0 0.0
          %3640 = vmatpush1.msra.mxu0 %v3628
          %3641 = vmatprep.subr.mxu0 0.0
          %3642 = vmatpush1.msra.mxu0 0.0
          %3643 = vmatprep.subr.mxu0 0.0
          %3644 = vmatpush1.msra.mxu0 0.0
          %3645 = vmatprep.subr.mxu0 0.0
          %3646 = vmatpush1.msra.mxu0 0.0
          %3647 = vmatprep.subr.mxu0 0.0
          %3648 = vmatpush1.msra.mxu0 0.0
          %3649 = vmatprep.subr.mxu0 0.0
          %3650 = vmatpush1.msra.mxu0 0.0
          %3651 = vmatprep.subr.mxu0 0.0
          %3652 = vmatpush1.msra.mxu0 0.0
          %3653 = vmatprep.subr.mxu0 0.0
          %3654 = vmatpush1.msra.mxu0 0.0
          %3655 = vmatprep.subr.mxu0 0.0
          %3656 = vmatpush1.msra.mxu0 0.0
          %3657 = vmatprep.subr.mxu0 0.0
          %3658 = vmatpush1.msra.mxu0 0.0
          %3659 = vmatprep.subr.mxu0 0.0
          %3660 = vmatpush1.msra.mxu0 0.0
          %3661 = vmatprep.subr.mxu0 0.0
          %3662 = vmatpush1.msra.mxu0 0.0
          %3663 = vmatprep.subr.mxu0 0.0
          %3664 = vmatpush1.msra.mxu0 0.0
          %3665 = vmatprep.subr.mxu0 0.0
          %3666 = vmatpush1.msra.mxu0 0.0
          %3667 = vmatprep.subr.mxu0 0.0
          %3668 = vmatpush1.msra.mxu0 0.0
          %3669 = vmatprep.subr.mxu0 0.0
          %3670 = vmatpush1.msra.mxu0 0.0
          %3671 = vmatprep.subr.mxu0 0.0
          %3672 = vmatpush1.msra.mxu0 0.0
          %3673 = vmatprep.subr.mxu0 0.0
          %3674 = vmatpush1.msra.mxu0 0.0
          %3675 = vmatprep.subr.mxu0 0.0
          %3676 = vmatpush1.msra.mxu0 0.0
          %3677 = vmatprep.subr.mxu0 0.0
          %3678 = vmatpush1.msra.mxu0 0.0
          %3679 = vmatprep.subr.mxu0 0.0
          %3680 = vmatpush1.msra.mxu0 0.0
          %3681 = vmatprep.subr.mxu0 0.0
          %3682 = vmatpush1.msra.mxu0 0.0
          %3683 = vmatprep.subr.mxu0 0.0
          %3684 = vmatpush1.msra.mxu0 0.0
          %3685 = vmatprep.subr.mxu0 0.0
          %3686 = vmatpush1.msra.mxu0 0.0
          %3687 = vmatprep.subr.mxu0 0.0
          %3688 = vmatpush1.msra.mxu0 0.0
          %3689 = vmatprep.subr.mxu0 0.0
          %3690 = vmatpush1.msra.mxu0 0.0
          %3691 = vmatprep.subr.mxu0 0.0
          %3692 = vmatpush1.msra.mxu0 0.0
          %3693 = vmatprep.subr.mxu0 0.0
          %3694 = vmatpush1.msra.mxu0 0.0
          %3695 = vmatprep.subr.mxu0 0.0
          %3696 = vmatpush1.msra.mxu0 0.0
          %3697 = vmatprep.subr.mxu0 0.0
          %3698 = vmatpush1.msra.mxu0 0.0
          %3699 = vmatprep.subr.mxu0 0.0
          %3700 = vmatpush1.msra.mxu0 0.0
          %3701 = vmatprep.mubr.f32.mxu0 0.0
          %3702 = vmatmul.mubr.f32.gmra.mrb[0].mxu0 %v3632
          %v3703 = vpop.f32.mrb[0].mxu0
          %v3704 = vadd.f32 0.0, %v3703
          %v3705 = vpop.f32.mrb[0].mxu0
          %3706 = vmatprep.mubr.f32.mxu0 0.0
          %3707 = vmatmul.mubr.f32.gmra.mrb[0].mxu0 %v3635
          %v3708 = vpop.f32.mrb[0].mxu0
          %v3709 = vadd.f32 0.0, %v3708
          %v3710 = vpop.f32.mrb[0].mxu0
          %3711 = vdwg.mxu0
          %3712 = vrot.lane.b32.xlu0 %v1402, 96
          %v3713 = vpop.permute.xlu0 %3712
          %3714 = vrot.lane.b32.xlu0 %v1405, 96
          %v3715 = vpop.permute.xlu0 %3714
          %v3719 = vsel %vm1420, %v3534, 0
          %v3722 = vsel %vm1420, %v3535, 0
          %3724 = vmatprep.subr.mxu0 0.0
          %3725 = vmatpush1.msra.mxu0 %v3713
          %3726 = vmatprep.subr.mxu0 0.0
          %3727 = vmatpush1.msra.mxu0 %v3715
          %3728 = vmatprep.subr.mxu0 0.0
          %3729 = vmatpush1.msra.mxu0 0.0
          %3730 = vmatprep.subr.mxu0 0.0
          %3731 = vmatpush1.msra.mxu0 0.0
          %3732 = vmatprep.subr.mxu0 0.0
          %3733 = vmatpush1.msra.mxu0 0.0
          %3734 = vmatprep.subr.mxu0 0.0
          %3735 = vmatpush1.msra.mxu0 0.0
          %3736 = vmatprep.subr.mxu0 0.0
          %3737 = vmatpush1.msra.mxu0 0.0
          %3738 = vmatprep.subr.mxu0 0.0
          %3739 = vmatpush1.msra.mxu0 0.0
          %3740 = vmatprep.subr.mxu0 0.0
          %3741 = vmatpush1.msra.mxu0 0.0
          %3742 = vmatprep.subr.mxu0 0.0
          %3743 = vmatpush1.msra.mxu0 0.0
          %3744 = vmatprep.subr.mxu0 0.0
          %3745 = vmatpush1.msra.mxu0 0.0
          %3746 = vmatprep.subr.mxu0 0.0
          %3747 = vmatpush1.msra.mxu0 0.0
          %3748 = vmatprep.subr.mxu0 0.0
          %3749 = vmatpush1.msra.mxu0 0.0
          %3750 = vmatprep.subr.mxu0 0.0
          %3751 = vmatpush1.msra.mxu0 0.0
          %3752 = vmatprep.subr.mxu0 0.0
          %3753 = vmatpush1.msra.mxu0 0.0
          %3754 = vmatprep.subr.mxu0 0.0
          %3755 = vmatpush1.msra.mxu0 0.0
          %3756 = vmatprep.subr.mxu0 0.0
          %3757 = vmatpush1.msra.mxu0 0.0
          %3758 = vmatprep.subr.mxu0 0.0
          %3759 = vmatpush1.msra.mxu0 0.0
          %3760 = vmatprep.subr.mxu0 0.0
          %3761 = vmatpush1.msra.mxu0 0.0
          %3762 = vmatprep.subr.mxu0 0.0
          %3763 = vmatpush1.msra.mxu0 0.0
          %3764 = vmatprep.subr.mxu0 0.0
          %3765 = vmatpush1.msra.mxu0 0.0
          %3766 = vmatprep.subr.mxu0 0.0
          %3767 = vmatpush1.msra.mxu0 0.0
          %3768 = vmatprep.subr.mxu0 0.0
          %3769 = vmatpush1.msra.mxu0 0.0
          %3770 = vmatprep.subr.mxu0 0.0
          %3771 = vmatpush1.msra.mxu0 0.0
          %3772 = vmatprep.subr.mxu0 0.0
          %3773 = vmatpush1.msra.mxu0 0.0
          %3774 = vmatprep.subr.mxu0 0.0
          %3775 = vmatpush1.msra.mxu0 0.0
          %3776 = vmatprep.subr.mxu0 0.0
          %3777 = vmatpush1.msra.mxu0 0.0
          %3778 = vmatprep.subr.mxu0 0.0
          %3779 = vmatpush1.msra.mxu0 0.0
          %3780 = vmatprep.subr.mxu0 0.0
          %3781 = vmatpush1.msra.mxu0 0.0
          %3782 = vmatprep.subr.mxu0 0.0
          %3783 = vmatpush1.msra.mxu0 0.0
          %3784 = vmatprep.subr.mxu0 0.0
          %3785 = vmatpush1.msra.mxu0 0.0
          %3786 = vmatprep.subr.mxu0 0.0
          %3787 = vmatpush1.msra.mxu0 0.0
          %3788 = vmatprep.mubr.f32.mxu0 0.0
          %3789 = vmatmul.mubr.f32.gmra.mrb[0].mxu0 %v3719
          %v3790 = vpop.f32.mrb[0].mxu0
          %v3791 = vadd.f32 0.0, %v3790
          %v3792 = vpop.f32.mrb[0].mxu0
          %3793 = vmatprep.mubr.f32.mxu0 0.0
          %3794 = vmatmul.mubr.f32.gmra.mrb[0].mxu0 %v3722
          %v3795 = vpop.f32.mrb[0].mxu0
          %v3796 = vadd.f32 0.0, %v3795
          %v3797 = vpop.f32.mrb[0].mxu0
          %3798 = vdwg.mxu0
          %3799 = vrot.lane.b32.xlu0 %v1410, 96
          %v3800 = vpop.permute.xlu0 %3799
          %3801 = vrot.lane.b32.xlu0 %v1413, 96
          %v3802 = vpop.permute.xlu0 %3801
          %v3806 = vsel %vm1420, %v3536, 0
          %v3809 = vsel %vm1420, %v3537, 0
          %3811 = vmatprep.subr.mxu0 0.0
          %3812 = vmatpush1.msra.mxu0 %v3800
          %3813 = vmatprep.subr.mxu0 0.0
          %3814 = vmatpush1.msra.mxu0 %v3802
          %3815 = vmatprep.subr.mxu0 0.0
          %3816 = vmatpush1.msra.mxu0 0.0
          %3817 = vmatprep.subr.mxu0 0.0
          %3818 = vmatpush1.msra.mxu0 0.0
          %3819 = vmatprep.subr.mxu0 0.0
          %3820 = vmatpush1.msra.mxu0 0.0
          %3821 = vmatprep.subr.mxu0 0.0
          %3822 = vmatpush1.msra.mxu0 0.0
          %3823 = vmatprep.subr.mxu0 0.0
          %3824 = vmatpush1.msra.mxu0 0.0
          %3825 = vmatprep.subr.mxu0 0.0
          %3826 = vmatpush1.msra.mxu0 0.0
          %3827 = vmatprep.subr.mxu0 0.0
          %3828 = vmatpush1.msra.mxu0 0.0
          %3829 = vmatprep.subr.mxu0 0.0
          %3830 = vmatpush1.msra.mxu0 0.0
          %3831 = vmatprep.subr.mxu0 0.0
          %3832 = vmatpush1.msra.mxu0 0.0
          %3833 = vmatprep.subr.mxu0 0.0
          %3834 = vmatpush1.msra.mxu0 0.0
          %3835 = vmatprep.subr.mxu0 0.0
          %3836 = vmatpush1.msra.mxu0 0.0
          %3837 = vmatprep.subr.mxu0 0.0
          %3838 = vmatpush1.msra.mxu0 0.0
          %3839 = vmatprep.subr.mxu0 0.0
          %3840 = vmatpush1.msra.mxu0 0.0
          %3841 = vmatprep.subr.mxu0 0.0
          %3842 = vmatpush1.msra.mxu0 0.0
          %3843 = vmatprep.subr.mxu0 0.0
          %3844 = vmatpush1.msra.mxu0 0.0
          %3845 = vmatprep.subr.mxu0 0.0
          %3846 = vmatpush1.msra.mxu0 0.0
          %3847 = vmatprep.subr.mxu0 0.0
          %3848 = vmatpush1.msra.mxu0 0.0
          %3849 = vmatprep.subr.mxu0 0.0
          %3850 = vmatpush1.msra.mxu0 0.0
          %3851 = vmatprep.subr.mxu0 0.0
          %3852 = vmatpush1.msra.mxu0 0.0
          %3853 = vmatprep.subr.mxu0 0.0
          %3854 = vmatpush1.msra.mxu0 0.0
          %3855 = vmatprep.subr.mxu0 0.0
          %3856 = vmatpush1.msra.mxu0 0.0
          %3857 = vmatprep.subr.mxu0 0.0
          %3858 = vmatpush1.msra.mxu0 0.0
          %3859 = vmatprep.subr.mxu0 0.0
          %3860 = vmatpush1.msra.mxu0 0.0
          %3861 = vmatprep.subr.mxu0 0.0
          %3862 = vmatpush1.msra.mxu0 0.0
          %3863 = vmatprep.subr.mxu0 0.0
          %3864 = vmatpush1.msra.mxu0 0.0
          %3865 = vmatprep.subr.mxu0 0.0
          %3866 = vmatpush1.msra.mxu0 0.0
          %3867 = vmatprep.subr.mxu0 0.0
          %3868 = vmatpush1.msra.mxu0 0.0
          %3869 = vmatprep.subr.mxu0 0.0
          %3870 = vmatpush1.msra.mxu0 0.0
          %3871 = vmatprep.subr.mxu0 0.0
          %3872 = vmatpush1.msra.mxu0 0.0
          %3873 = vmatprep.subr.mxu0 0.0
          %3874 = vmatpush1.msra.mxu0 0.0
          %3875 = vmatprep.mubr.f32.mxu0 0.0
          %3876 = vmatmul.mubr.f32.gmra.mrb[0].mxu0 %v3806
          %v3877 = vpop.f32.mrb[0].mxu0
          %v3878 = vadd.f32 0.0, %v3877
          %v3879 = vpop.f32.mrb[0].mxu0
          %3880 = vmatprep.mubr.f32.mxu0 0.0
          %3881 = vmatmul.mubr.f32.gmra.mrb[0].mxu0 %v3809
          %v3882 = vpop.f32.mrb[0].mxu0
          %v3883 = vadd.f32 0.0, %v3882
          %v3884 = vpop.f32.mrb[0].mxu0
          %3885 = vdwg.mxu0
          %3894 = vrot.lane.b32.xlu0 %v3617, 32
          %v3895 = vpop.permute.xlu0 %3894
          %3896 = vrot.lane.b32.xlu0 %v3622, 32
          %v3897 = vpop.permute.xlu0 %3896
          %3898 = vrot.lane.b32.xlu0 %v3704, 32
          %v3899 = vpop.permute.xlu0 %3898
          %3900 = vrot.lane.b32.xlu0 %v3709, 32
          %v3901 = vpop.permute.xlu0 %3900
          %3902 = vrot.lane.b32.xlu0 %v3791, 32
          %v3903 = vpop.permute.xlu0 %3902
          %3904 = vrot.lane.b32.xlu0 %v3796, 32
          %v3905 = vpop.permute.xlu0 %3904
          %3906 = vrot.lane.b32.xlu0 %v3878, 32
          %v3907 = vpop.permute.xlu0 %3906
          %3908 = vrot.lane.b32.xlu0 %v3883, 32
          %v3909 = vpop.permute.xlu0 %3908
          %vm3918 = vcmask 392448
          %3919 = vst.msk [vmem:[#allocation3] sm:$0xff] %vm3918, %v3895
          %3920 = vst.msk [vmem:[#allocation3 + $0x8] sm:$0xff] %vm3918, %v3897
          %3921 = vst.msk [vmem:[#allocation3 + $0x10] sm:$0xff] %vm3918, %v3899
          %3922 = vst.msk [vmem:[#allocation3 + $0x18] sm:$0xff] %vm3918, %v3901
          %3923 = vst.msk [vmem:[#allocation3 + $0x20] sm:$0xff] %vm3918, %v3903
          %3924 = vst.msk [vmem:[#allocation3 + $0x28] sm:$0xff] %vm3918, %v3905
          %3925 = vst.msk [vmem:[#allocation3 + $0x30] sm:$0xff] %vm3918, %v3907
          %3926 = vst.msk [vmem:[#allocation3 + $0x38] sm:$0xff] %vm3918, %v3909
          %3927 = vrot.lane.b32.xlu0 %v1178, 80
          %v3928 = vpop.permute.xlu0 %3927
          %3929 = vrot.lane.b32.xlu0 %v1181, 80
          %v3930 = vpop.permute.xlu0 %3929
          %3931 = vrot.lane.b32.xlu0 %v1282, 80
          %v3932 = vpop.permute.xlu0 %3931
          %3933 = vrot.lane.b32.xlu0 %v1285, 80
          %v3934 = vpop.permute.xlu0 %3933
          %v3935 = vsel %vm1420, %v3928, 0
          %v3937 = vsel %vm1420, %v3930, 0
          %v3939 = vsel %vm1420, %v3932, 0
          %v3941 = vsel %vm1420, %v3934, 0
          %3943 = vmatprep.subr.mxu0 0.0
          %3944 = vmatpush1.xpose.msra.mxu0 %v3939
          %3945 = vmatprep.subr.mxu0 0.0
          %3946 = vmatpush1.xpose.msra.mxu0 %v3941
          %3947 = vmatprep.subr.mxu0 0.0
          %3948 = vmatpush1.xpose.msra.mxu0 0.0
          %3949 = vmatprep.subr.mxu0 0.0
          %3950 = vmatpush1.xpose.msra.mxu0 0.0
          %3951 = vmatprep.subr.mxu0 0.0
          %3952 = vmatpush1.xpose.msra.mxu0 0.0
          %3953 = vmatprep.subr.mxu0 0.0
          %3954 = vmatpush1.xpose.msra.mxu0 0.0
          %3955 = vmatprep.subr.mxu0 0.0
          %3956 = vmatpush1.xpose.msra.mxu0 0.0
          %3957 = vmatprep.subr.mxu0 0.0
          %3958 = vmatpush1.xpose.msra.mxu0 0.0
          %3959 = vmatprep.subr.mxu0 0.0
          %3960 = vmatpush1.xpose.msra.mxu0 0.0
          %3961 = vmatprep.subr.mxu0 0.0
          %3962 = vmatpush1.xpose.msra.mxu0 0.0
          %3963 = vmatprep.subr.mxu0 0.0
          %3964 = vmatpush1.xpose.msra.mxu0 0.0
          %3965 = vmatprep.subr.mxu0 0.0
          %3966 = vmatpush1.xpose.msra.mxu0 0.0
          %3967 = vmatprep.subr.mxu0 0.0
          %3968 = vmatpush1.xpose.msra.mxu0 0.0
          %3969 = vmatprep.subr.mxu0 0.0
          %3970 = vmatpush1.xpose.msra.mxu0 0.0
          %3971 = vmatprep.subr.mxu0 0.0
          %3972 = vmatpush1.xpose.msra.mxu0 0.0
          %3973 = vmatprep.subr.mxu0 0.0
          %3974 = vmatpush1.xpose.msra.mxu0 0.0
          %3975 = vmatprep.subr.mxu0 0.0
          %3976 = vmatpush1.xpose.msra.mxu0 0.0
          %3977 = vmatprep.subr.mxu0 0.0
          %3978 = vmatpush1.xpose.msra.mxu0 0.0
          %3979 = vmatprep.subr.mxu0 0.0
          %3980 = vmatpush1.xpose.msra.mxu0 0.0
          %3981 = vmatprep.subr.mxu0 0.0
          %3982 = vmatpush1.xpose.msra.mxu0 0.0
          %3983 = vmatprep.subr.mxu0 0.0
          %3984 = vmatpush1.xpose.msra.mxu0 0.0
          %3985 = vmatprep.subr.mxu0 0.0
          %3986 = vmatpush1.xpose.msra.mxu0 0.0
          %3987 = vmatprep.subr.mxu0 0.0
          %3988 = vmatpush1.xpose.msra.mxu0 0.0
          %3989 = vmatprep.subr.mxu0 0.0
          %3990 = vmatpush1.xpose.msra.mxu0 0.0
          %3991 = vmatprep.subr.mxu0 0.0
          %3992 = vmatpush1.xpose.msra.mxu0 0.0
          %3993 = vmatprep.subr.mxu0 0.0
          %3994 = vmatpush1.xpose.msra.mxu0 0.0
          %3995 = vmatprep.subr.mxu0 0.0
          %3996 = vmatpush1.xpose.msra.mxu0 0.0
          %3997 = vmatprep.subr.mxu0 0.0
          %3998 = vmatpush1.xpose.msra.mxu0 0.0
          %3999 = vmatprep.subr.mxu0 0.0
          %4000 = vmatpush1.xpose.msra.mxu0 0.0
          %4001 = vmatprep.subr.mxu0 0.0
          %4002 = vmatpush1.xpose.msra.mxu0 0.0
          %4003 = vmatprep.subr.mxu0 0.0
          %4004 = vmatpush1.xpose.msra.mxu0 0.0
          %4005 = vmatprep.subr.mxu0 0.0
          %4006 = vmatpush1.xpose.msra.mxu0 0.0
          %4007 = vmatprep.mubr.f32.mxu0 0.0
          %4008 = vmatmul.mubr.f32.gmra.mrb[0].mxu0 %v3935
          %v4009 = vpop.f32.mrb[0].mxu0
          %v4010 = vadd.f32 0.0, %v4009
          %v4011 = vpop.f32.mrb[0].mxu0
          %4012 = vmatprep.mubr.f32.mxu0 0.0
          %4013 = vmatmul.mubr.f32.gmra.mrb[0].mxu0 %v3937
          %v4014 = vpop.f32.mrb[0].mxu0
          %v4015 = vadd.f32 0.0, %v4014
          %v4016 = vpop.f32.mrb[0].mxu0
          %4017 = vdwg.mxu0
          %4018 = vrot.lane.b32.xlu0 %v1186, 80
          %v4019 = vpop.permute.xlu0 %4018
          %4020 = vrot.lane.b32.xlu0 %v1189, 80
          %v4021 = vpop.permute.xlu0 %4020
          %4022 = vrot.lane.b32.xlu0 %v1290, 80
          %v4023 = vpop.permute.xlu0 %4022
          %4024 = vrot.lane.b32.xlu0 %v1293, 80
          %v4025 = vpop.permute.xlu0 %4024
          %v4026 = vsel %vm1420, %v4019, 0
          %v4028 = vsel %vm1420, %v4021, 0
          %v4030 = vsel %vm1420, %v4023, 0
          %v4032 = vsel %vm1420, %v4025, 0
          %4034 = vmatprep.subr.mxu0 0.0
          %4035 = vmatpush1.xpose.msra.mxu0 %v4030
          %4036 = vmatprep.subr.mxu0 0.0
          %4037 = vmatpush1.xpose.msra.mxu0 %v4032
          %4038 = vmatprep.subr.mxu0 0.0
          %4039 = vmatpush1.xpose.msra.mxu0 0.0
          %4040 = vmatprep.subr.mxu0 0.0
          %4041 = vmatpush1.xpose.msra.mxu0 0.0
          %4042 = vmatprep.subr.mxu0 0.0
          %4043 = vmatpush1.xpose.msra.mxu0 0.0
          %4044 = vmatprep.subr.mxu0 0.0
          %4045 = vmatpush1.xpose.msra.mxu0 0.0
          %4046 = vmatprep.subr.mxu0 0.0
          %4047 = vmatpush1.xpose.msra.mxu0 0.0
          %4048 = vmatprep.subr.mxu0 0.0
          %4049 = vmatpush1.xpose.msra.mxu0 0.0
          %4050 = vmatprep.subr.mxu0 0.0
          %4051 = vmatpush1.xpose.msra.mxu0 0.0
          %4052 = vmatprep.subr.mxu0 0.0
          %4053 = vmatpush1.xpose.msra.mxu0 0.0
          %4054 = vmatprep.subr.mxu0 0.0
          %4055 = vmatpush1.xpose.msra.mxu0 0.0
          %4056 = vmatprep.subr.mxu0 0.0
          %4057 = vmatpush1.xpose.msra.mxu0 0.0
          %4058 = vmatprep.subr.mxu0 0.0
          %4059 = vmatpush1.xpose.msra.mxu0 0.0
          %4060 = vmatprep.subr.mxu0 0.0
          %4061 = vmatpush1.xpose.msra.mxu0 0.0
          %4062 = vmatprep.subr.mxu0 0.0
          %4063 = vmatpush1.xpose.msra.mxu0 0.0
          %4064 = vmatprep.subr.mxu0 0.0
          %4065 = vmatpush1.xpose.msra.mxu0 0.0
          %4066 = vmatprep.subr.mxu0 0.0
          %4067 = vmatpush1.xpose.msra.mxu0 0.0
          %4068 = vmatprep.subr.mxu0 0.0
          %4069 = vmatpush1.xpose.msra.mxu0 0.0
          %4070 = vmatprep.subr.mxu0 0.0
          %4071 = vmatpush1.xpose.msra.mxu0 0.0
          %4072 = vmatprep.subr.mxu0 0.0
          %4073 = vmatpush1.xpose.msra.mxu0 0.0
          %4074 = vmatprep.subr.mxu0 0.0
          %4075 = vmatpush1.xpose.msra.mxu0 0.0
          %4076 = vmatprep.subr.mxu0 0.0
          %4077 = vmatpush1.xpose.msra.mxu0 0.0
          %4078 = vmatprep.subr.mxu0 0.0
          %4079 = vmatpush1.xpose.msra.mxu0 0.0
          %4080 = vmatprep.subr.mxu0 0.0
          %4081 = vmatpush1.xpose.msra.mxu0 0.0
          %4082 = vmatprep.subr.mxu0 0.0
          %4083 = vmatpush1.xpose.msra.mxu0 0.0
          %4084 = vmatprep.subr.mxu0 0.0
          %4085 = vmatpush1.xpose.msra.mxu0 0.0
          %4086 = vmatprep.subr.mxu0 0.0
          %4087 = vmatpush1.xpose.msra.mxu0 0.0
          %4088 = vmatprep.subr.mxu0 0.0
          %4089 = vmatpush1.xpose.msra.mxu0 0.0
          %4090 = vmatprep.subr.mxu0 0.0
          %4091 = vmatpush1.xpose.msra.mxu0 0.0
          %4092 = vmatprep.subr.mxu0 0.0
          %4093 = vmatpush1.xpose.msra.mxu0 0.0
          %4094 = vmatprep.subr.mxu0 0.0
          %4095 = vmatpush1.xpose.msra.mxu0 0.0
          %4096 = vmatprep.subr.mxu0 0.0
          %4097 = vmatpush1.xpose.msra.mxu0 0.0
          %4098 = vmatprep.mubr.f32.mxu0 0.0
          %4099 = vmatmul.mubr.f32.gmra.mrb[0].mxu0 %v4026
          %v4100 = vpop.f32.mrb[0].mxu0
          %v4101 = vadd.f32 0.0, %v4100
          %v4102 = vpop.f32.mrb[0].mxu0
          %4103 = vmatprep.mubr.f32.mxu0 0.0
          %4104 = vmatmul.mubr.f32.gmra.mrb[0].mxu0 %v4028
          %v4105 = vpop.f32.mrb[0].mxu0
          %v4106 = vadd.f32 0.0, %v4105
          %v4107 = vpop.f32.mrb[0].mxu0
          %4108 = vdwg.mxu0
          %4109 = vrot.lane.b32.xlu0 %v1194, 80
          %v4110 = vpop.permute.xlu0 %4109
          %4111 = vrot.lane.b32.xlu0 %v1197, 80
          %v4112 = vpop.permute.xlu0 %4111
          %4113 = vrot.lane.b32.xlu0 %v1298, 80
          %v4114 = vpop.permute.xlu0 %4113
          %4115 = vrot.lane.b32.xlu0 %v1301, 80
          %v4116 = vpop.permute.xlu0 %4115
          %v4117 = vsel %vm1420, %v4110, 0
          %v4119 = vsel %vm1420, %v4112, 0
          %v4121 = vsel %vm1420, %v4114, 0
          %v4123 = vsel %vm1420, %v4116, 0
          %4125 = vmatprep.subr.mxu0 0.0
          %4126 = vmatpush1.xpose.msra.mxu0 %v4121
          %4127 = vmatprep.subr.mxu0 0.0
          %4128 = vmatpush1.xpose.msra.mxu0 %v4123
          %4129 = vmatprep.subr.mxu0 0.0
          %4130 = vmatpush1.xpose.msra.mxu0 0.0
          %4131 = vmatprep.subr.mxu0 0.0
          %4132 = vmatpush1.xpose.msra.mxu0 0.0
          %4133 = vmatprep.subr.mxu0 0.0
          %4134 = vmatpush1.xpose.msra.mxu0 0.0
          %4135 = vmatprep.subr.mxu0 0.0
          %4136 = vmatpush1.xpose.msra.mxu0 0.0
          %4137 = vmatprep.subr.mxu0 0.0
          %4138 = vmatpush1.xpose.msra.mxu0 0.0
          %4139 = vmatprep.subr.mxu0 0.0
          %4140 = vmatpush1.xpose.msra.mxu0 0.0
          %4141 = vmatprep.subr.mxu0 0.0
          %4142 = vmatpush1.xpose.msra.mxu0 0.0
          %4143 = vmatprep.subr.mxu0 0.0
          %4144 = vmatpush1.xpose.msra.mxu0 0.0
          %4145 = vmatprep.subr.mxu0 0.0
          %4146 = vmatpush1.xpose.msra.mxu0 0.0
          %4147 = vmatprep.subr.mxu0 0.0
          %4148 = vmatpush1.xpose.msra.mxu0 0.0
          %4149 = vmatprep.subr.mxu0 0.0
          %4150 = vmatpush1.xpose.msra.mxu0 0.0
          %4151 = vmatprep.subr.mxu0 0.0
          %4152 = vmatpush1.xpose.msra.mxu0 0.0
          %4153 = vmatprep.subr.mxu0 0.0
          %4154 = vmatpush1.xpose.msra.mxu0 0.0
          %4155 = vmatprep.subr.mxu0 0.0
          %4156 = vmatpush1.xpose.msra.mxu0 0.0
          %4157 = vmatprep.subr.mxu0 0.0
          %4158 = vmatpush1.xpose.msra.mxu0 0.0
          %4159 = vmatprep.subr.mxu0 0.0
          %4160 = vmatpush1.xpose.msra.mxu0 0.0
          %4161 = vmatprep.subr.mxu0 0.0
          %4162 = vmatpush1.xpose.msra.mxu0 0.0
          %4163 = vmatprep.subr.mxu0 0.0
          %4164 = vmatpush1.xpose.msra.mxu0 0.0
          %4165 = vmatprep.subr.mxu0 0.0
          %4166 = vmatpush1.xpose.msra.mxu0 0.0
          %4167 = vmatprep.subr.mxu0 0.0
          %4168 = vmatpush1.xpose.msra.mxu0 0.0
          %4169 = vmatprep.subr.mxu0 0.0
          %4170 = vmatpush1.xpose.msra.mxu0 0.0
          %4171 = vmatprep.subr.mxu0 0.0
          %4172 = vmatpush1.xpose.msra.mxu0 0.0
          %4173 = vmatprep.subr.mxu0 0.0
          %4174 = vmatpush1.xpose.msra.mxu0 0.0
          %4175 = vmatprep.subr.mxu0 0.0
          %4176 = vmatpush1.xpose.msra.mxu0 0.0
          %4177 = vmatprep.subr.mxu0 0.0
          %4178 = vmatpush1.xpose.msra.mxu0 0.0
          %4179 = vmatprep.subr.mxu0 0.0
          %4180 = vmatpush1.xpose.msra.mxu0 0.0
          %4181 = vmatprep.subr.mxu0 0.0
          %4182 = vmatpush1.xpose.msra.mxu0 0.0
          %4183 = vmatprep.subr.mxu0 0.0
          %4184 = vmatpush1.xpose.msra.mxu0 0.0
          %4185 = vmatprep.subr.mxu0 0.0
          %4186 = vmatpush1.xpose.msra.mxu0 0.0
          %4187 = vmatprep.subr.mxu0 0.0
          %4188 = vmatpush1.xpose.msra.mxu0 0.0
          %4189 = vmatprep.mubr.f32.mxu0 0.0
          %4190 = vmatmul.mubr.f32.gmra.mrb[0].mxu0 %v4117
          %v4191 = vpop.f32.mrb[0].mxu0
          %v4192 = vadd.f32 0.0, %v4191
          %v4193 = vpop.f32.mrb[0].mxu0
          %4194 = vmatprep.mubr.f32.mxu0 0.0
          %4195 = vmatmul.mubr.f32.gmra.mrb[0].mxu0 %v4119
          %v4196 = vpop.f32.mrb[0].mxu0
          %v4197 = vadd.f32 0.0, %v4196
          %v4198 = vpop.f32.mrb[0].mxu0
          %4199 = vdwg.mxu0
          %4200 = vrot.lane.b32.xlu0 %v1202, 80
          %v4201 = vpop.permute.xlu0 %4200
          %4202 = vrot.lane.b32.xlu0 %v1205, 80
          %v4203 = vpop.permute.xlu0 %4202
          %4204 = vrot.lane.b32.xlu0 %v1306, 80
          %v4205 = vpop.permute.xlu0 %4204
          %4206 = vrot.lane.b32.xlu0 %v1309, 80
          %v4207 = vpop.permute.xlu0 %4206
          %v4208 = vsel %vm1420, %v4201, 0
          %v4210 = vsel %vm1420, %v4203, 0
          %v4212 = vsel %vm1420, %v4205, 0
          %v4214 = vsel %vm1420, %v4207, 0
          %4216 = vmatprep.subr.mxu0 0.0
          %4217 = vmatpush1.xpose.msra.mxu0 %v4212
          %4218 = vmatprep.subr.mxu0 0.0
          %4219 = vmatpush1.xpose.msra.mxu0 %v4214
          %4220 = vmatprep.subr.mxu0 0.0
          %4221 = vmatpush1.xpose.msra.mxu0 0.0
          %4222 = vmatprep.subr.mxu0 0.0
          %4223 = vmatpush1.xpose.msra.mxu0 0.0
          %4224 = vmatprep.subr.mxu0 0.0
          %4225 = vmatpush1.xpose.msra.mxu0 0.0
          %4226 = vmatprep.subr.mxu0 0.0
          %4227 = vmatpush1.xpose.msra.mxu0 0.0
          %4228 = vmatprep.subr.mxu0 0.0
          %4229 = vmatpush1.xpose.msra.mxu0 0.0
          %4230 = vmatprep.subr.mxu0 0.0
          %4231 = vmatpush1.xpose.msra.mxu0 0.0
          %4232 = vmatprep.subr.mxu0 0.0
          %4233 = vmatpush1.xpose.msra.mxu0 0.0
          %4234 = vmatprep.subr.mxu0 0.0
          %4235 = vmatpush1.xpose.msra.mxu0 0.0
          %4236 = vmatprep.subr.mxu0 0.0
          %4237 = vmatpush1.xpose.msra.mxu0 0.0
          %4238 = vmatprep.subr.mxu0 0.0
          %4239 = vmatpush1.xpose.msra.mxu0 0.0
          %4240 = vmatprep.subr.mxu0 0.0
          %4241 = vmatpush1.xpose.msra.mxu0 0.0
          %4242 = vmatprep.subr.mxu0 0.0
          %4243 = vmatpush1.xpose.msra.mxu0 0.0
          %4244 = vmatprep.subr.mxu0 0.0
          %4245 = vmatpush1.xpose.msra.mxu0 0.0
          %4246 = vmatprep.subr.mxu0 0.0
          %4247 = vmatpush1.xpose.msra.mxu0 0.0
          %4248 = vmatprep.subr.mxu0 0.0
          %4249 = vmatpush1.xpose.msra.mxu0 0.0
          %4250 = vmatprep.subr.mxu0 0.0
          %4251 = vmatpush1.xpose.msra.mxu0 0.0
          %4252 = vmatprep.subr.mxu0 0.0
          %4253 = vmatpush1.xpose.msra.mxu0 0.0
          %4254 = vmatprep.subr.mxu0 0.0
          %4255 = vmatpush1.xpose.msra.mxu0 0.0
          %4256 = vmatprep.subr.mxu0 0.0
          %4257 = vmatpush1.xpose.msra.mxu0 0.0
          %4258 = vmatprep.subr.mxu0 0.0
          %4259 = vmatpush1.xpose.msra.mxu0 0.0
          %4260 = vmatprep.subr.mxu0 0.0
          %4261 = vmatpush1.xpose.msra.mxu0 0.0
          %4262 = vmatprep.subr.mxu0 0.0
          %4263 = vmatpush1.xpose.msra.mxu0 0.0
          %4264 = vmatprep.subr.mxu0 0.0
          %4265 = vmatpush1.xpose.msra.mxu0 0.0
          %4266 = vmatprep.subr.mxu0 0.0
          %4267 = vmatpush1.xpose.msra.mxu0 0.0
          %4268 = vmatprep.subr.mxu0 0.0
          %4269 = vmatpush1.xpose.msra.mxu0 0.0
          %4270 = vmatprep.subr.mxu0 0.0
          %4271 = vmatpush1.xpose.msra.mxu0 0.0
          %4272 = vmatprep.subr.mxu0 0.0
          %4273 = vmatpush1.xpose.msra.mxu0 0.0
          %4274 = vmatprep.subr.mxu0 0.0
          %4275 = vmatpush1.xpose.msra.mxu0 0.0
          %4276 = vmatprep.subr.mxu0 0.0
          %4277 = vmatpush1.xpose.msra.mxu0 0.0
          %4278 = vmatprep.subr.mxu0 0.0
          %4279 = vmatpush1.xpose.msra.mxu0 0.0
          %4280 = vmatprep.mubr.f32.mxu0 0.0
          %4281 = vmatmul.mubr.f32.gmra.mrb[0].mxu0 %v4208
          %v4282 = vpop.f32.mrb[0].mxu0
          %v4283 = vadd.f32 0.0, %v4282
          %v4284 = vpop.f32.mrb[0].mxu0
          %4285 = vmatprep.mubr.f32.mxu0 0.0
          %4286 = vmatmul.mubr.f32.gmra.mrb[0].mxu0 %v4210
          %v4287 = vpop.f32.mrb[0].mxu0
          %v4288 = vadd.f32 0.0, %v4287
          %v4289 = vpop.f32.mrb[0].mxu0
          %4290 = vdwg.mxu0
          %v4291 = vmul.f32 %v4010, 0.25
          %v4292 = vmul.f32 %v4015, 0.25
          %v4293 = vmul.f32 %v4101, 0.25
          %v4294 = vmul.f32 %v4106, 0.25
          %v4295 = vmul.f32 %v4192, 0.25
          %v4296 = vmul.f32 %v4197, 0.25
          %v4297 = vmul.f32 %v4283, 0.25
          %v4298 = vmul.f32 %v4288, 0.25
          %v4299 = vadd.f32 %v4291, %v1419
          %v4300 = vadd.f32 %v4292, %v1419
          %v4301 = vadd.f32 %v4293, %v1419
          %v4302 = vadd.f32 %v4294, %v1419
          %v4303 = vadd.f32 %v4295, %v1419
          %v4304 = vadd.f32 %v4296, %v1419
          %v4305 = vadd.f32 %v4297, %v1419
          %v4306 = vadd.f32 %v4298, %v1419
          %v4307 = vsel %vm1420, %v4299, -inf
          %4308 = vmax.xlane.f32.xlu0 %v4307
          %v4309 = vpop.xlane.xlu0 %4308
          %v4310 = vsel %vm1420, %v4300, -inf
          %4311 = vmax.xlane.f32.xlu0 %v4310
          %v4312 = vpop.xlane.xlu0 %4311
          %v4313 = vsel %vm1420, %v4301, -inf
          %4314 = vmax.xlane.f32.xlu0 %v4313
          %v4315 = vpop.xlane.xlu0 %4314
          %v4316 = vsel %vm1420, %v4302, -inf
          %4317 = vmax.xlane.f32.xlu0 %v4316
          %v4318 = vpop.xlane.xlu0 %4317
          %v4319 = vsel %vm1420, %v4303, -inf
          %4320 = vmax.xlane.f32.xlu0 %v4319
          %v4321 = vpop.xlane.xlu0 %4320
          %v4322 = vsel %vm1420, %v4304, -inf
          %4323 = vmax.xlane.f32.xlu0 %v4322
          %v4324 = vpop.xlane.xlu0 %4323
          %v4325 = vsel %vm1420, %v4305, -inf
          %4326 = vmax.xlane.f32.xlu0 %v4325
          %v4327 = vpop.xlane.xlu0 %4326
          %v4328 = vsel %vm1420, %v4306, -inf
          %4329 = vmax.xlane.f32.xlu0 %v4328
          %v4330 = vpop.xlane.xlu0 %4329
          %v4331 = vsub.f32 %v4299, %v4309
          %v4332 = vsub.f32 %v4300, %v4312
          %v4333 = vsub.f32 %v4301, %v4315
          %v4334 = vsub.f32 %v4302, %v4318
          %v4335 = vsub.f32 %v4303, %v4321
          %v4336 = vsub.f32 %v4304, %v4324
          %v4337 = vsub.f32 %v4305, %v4327
          %v4338 = vsub.f32 %v4306, %v4330
          %v4339 = vmul.f32 %v4331, 1.442695
          %v4340 = vpow.pop %v4339
          %v4341 = vmul.f32 %v4332, 1.442695
          %v4342 = vpow.pop %v4341
          %v4343 = vmul.f32 %v4333, 1.442695
          %v4344 = vpow.pop %v4343
          %v4345 = vmul.f32 %v4334, 1.442695
          %v4346 = vpow.pop %v4345
          %v4347 = vmul.f32 %v4335, 1.442695
          %v4348 = vpow.pop %v4347
          %v4349 = vmul.f32 %v4336, 1.442695
          %v4350 = vpow.pop %v4349
          %v4351 = vmul.f32 %v4337, 1.442695
          %v4352 = vpow.pop %v4351
          %v4353 = vmul.f32 %v4338, 1.442695
          %v4354 = vpow.pop %v4353
          %v4355 = vsel %vm1420, %v4340, 0.0
          %4356 = vadd.xlane.f32.xlu0 %v4355
          %v4357 = vpop.xlane.xlu0 %4356
          %v4358 = vsel %vm1420, %v4342, 0.0
          %4359 = vadd.xlane.f32.xlu0 %v4358
          %v4360 = vpop.xlane.xlu0 %4359
          %v4361 = vsel %vm1420, %v4344, 0.0
          %4362 = vadd.xlane.f32.xlu0 %v4361
          %v4363 = vpop.xlane.xlu0 %4362
          %v4364 = vsel %vm1420, %v4346, 0.0
          %4365 = vadd.xlane.f32.xlu0 %v4364
          %v4366 = vpop.xlane.xlu0 %4365
          %v4367 = vsel %vm1420, %v4348, 0.0
          %4368 = vadd.xlane.f32.xlu0 %v4367
          %v4369 = vpop.xlane.xlu0 %4368
          %v4370 = vsel %vm1420, %v4350, 0.0
          %4371 = vadd.xlane.f32.xlu0 %v4370
          %v4372 = vpop.xlane.xlu0 %4371
          %v4373 = vsel %vm1420, %v4352, 0.0
          %4374 = vadd.xlane.f32.xlu0 %v4373
          %v4375 = vpop.xlane.xlu0 %4374
          %v4376 = vsel %vm1420, %v4354, 0.0
          %4377 = vadd.xlane.f32.xlu0 %v4376
          %v4378 = vpop.xlane.xlu0 %4377
          %v4379 = vrcp.pop %v4357
          %v4380 = vrcp.pop %v4360
          %v4381 = vrcp.pop %v4363
          %v4382 = vrcp.pop %v4366
          %v4383 = vrcp.pop %v4369
          %v4384 = vrcp.pop %v4372
          %v4385 = vrcp.pop %v4375
          %v4386 = vrcp.pop %v4378
          %v4387 = vmul.f32 %v4340, %v4379
          %v4388 = vmul.f32 %v4342, %v4380
          %v4389 = vmul.f32 %v4344, %v4381
          %v4390 = vmul.f32 %v4346, %v4382
          %v4391 = vmul.f32 %v4348, %v4383
          %v4392 = vmul.f32 %v4350, %v4384
          %v4393 = vmul.f32 %v4352, %v4385
          %v4394 = vmul.f32 %v4354, %v4386
          %4395 = vrot.lane.b32.xlu0 %v1386, 80
          %v4396 = vpop.permute.xlu0 %4395
          %4397 = vrot.lane.b32.xlu0 %v1389, 80
          %v4398 = vpop.permute.xlu0 %4397
          %v4402 = vsel %vm1420, %v4387, 0
          %v4405 = vsel %vm1420, %v4388, 0
          %4407 = vmatprep.subr.mxu0 0.0
          %4408 = vmatpush1.msra.mxu0 %v4396
          %4409 = vmatprep.subr.mxu0 0.0
          %4410 = vmatpush1.msra.mxu0 %v4398
          %4411 = vmatprep.subr.mxu0 0.0
          %4412 = vmatpush1.msra.mxu0 0.0
          %4413 = vmatprep.subr.mxu0 0.0
          %4414 = vmatpush1.msra.mxu0 0.0
          %4415 = vmatprep.subr.mxu0 0.0
          %4416 = vmatpush1.msra.mxu0 0.0
          %4417 = vmatprep.subr.mxu0 0.0
          %4418 = vmatpush1.msra.mxu0 0.0
          %4419 = vmatprep.subr.mxu0 0.0
          %4420 = vmatpush1.msra.mxu0 0.0
          %4421 = vmatprep.subr.mxu0 0.0
          %4422 = vmatpush1.msra.mxu0 0.0
          %4423 = vmatprep.subr.mxu0 0.0
          %4424 = vmatpush1.msra.mxu0 0.0
          %4425 = vmatprep.subr.mxu0 0.0
          %4426 = vmatpush1.msra.mxu0 0.0
          %4427 = vmatprep.subr.mxu0 0.0
          %4428 = vmatpush1.msra.mxu0 0.0
          %4429 = vmatprep.subr.mxu0 0.0
          %4430 = vmatpush1.msra.mxu0 0.0
          %4431 = vmatprep.subr.mxu0 0.0
          %4432 = vmatpush1.msra.mxu0 0.0
          %4433 = vmatprep.subr.mxu0 0.0
          %4434 = vmatpush1.msra.mxu0 0.0
          %4435 = vmatprep.subr.mxu0 0.0
          %4436 = vmatpush1.msra.mxu0 0.0
          %4437 = vmatprep.subr.mxu0 0.0
          %4438 = vmatpush1.msra.mxu0 0.0
          %4439 = vmatprep.subr.mxu0 0.0
          %4440 = vmatpush1.msra.mxu0 0.0
          %4441 = vmatprep.subr.mxu0 0.0
          %4442 = vmatpush1.msra.mxu0 0.0
          %4443 = vmatprep.subr.mxu0 0.0
          %4444 = vmatpush1.msra.mxu0 0.0
          %4445 = vmatprep.subr.mxu0 0.0
          %4446 = vmatpush1.msra.mxu0 0.0
          %4447 = vmatprep.subr.mxu0 0.0
          %4448 = vmatpush1.msra.mxu0 0.0
          %4449 = vmatprep.subr.mxu0 0.0
          %4450 = vmatpush1.msra.mxu0 0.0
          %4451 = vmatprep.subr.mxu0 0.0
          %4452 = vmatpush1.msra.mxu0 0.0
          %4453 = vmatprep.subr.mxu0 0.0
          %4454 = vmatpush1.msra.mxu0 0.0
          %4455 = vmatprep.subr.mxu0 0.0
          %4456 = vmatpush1.msra.mxu0 0.0
          %4457 = vmatprep.subr.mxu0 0.0
          %4458 = vmatpush1.msra.mxu0 0.0
          %4459 = vmatprep.subr.mxu0 0.0
          %4460 = vmatpush1.msra.mxu0 0.0
          %4461 = vmatprep.subr.mxu0 0.0
          %4462 = vmatpush1.msra.mxu0 0.0
          %4463 = vmatprep.subr.mxu0 0.0
          %4464 = vmatpush1.msra.mxu0 0.0
          %4465 = vmatprep.subr.mxu0 0.0
          %4466 = vmatpush1.msra.mxu0 0.0
          %4467 = vmatprep.subr.mxu0 0.0
          %4468 = vmatpush1.msra.mxu0 0.0
          %4469 = vmatprep.subr.mxu0 0.0
          %4470 = vmatpush1.msra.mxu0 0.0
          %4471 = vmatprep.mubr.f32.mxu0 0.0
          %4472 = vmatmul.mubr.f32.gmra.mrb[0].mxu0 %v4402
          %v4473 = vpop.f32.mrb[0].mxu0
          %v4474 = vadd.f32 0.0, %v4473
          %v4475 = vpop.f32.mrb[0].mxu0
          %4476 = vmatprep.mubr.f32.mxu0 0.0
          %4477 = vmatmul.mubr.f32.gmra.mrb[0].mxu0 %v4405
          %v4478 = vpop.f32.mrb[0].mxu0
          %v4479 = vadd.f32 0.0, %v4478
          %v4480 = vpop.f32.mrb[0].mxu0
          %4481 = vdwg.mxu0
          %4482 = vrot.lane.b32.xlu0 %v1394, 80
          %v4483 = vpop.permute.xlu0 %4482
          %4484 = vrot.lane.b32.xlu0 %v1397, 80
          %v4485 = vpop.permute.xlu0 %4484
          %v4489 = vsel %vm1420, %v4389, 0
          %v4492 = vsel %vm1420, %v4390, 0
          %4494 = vmatprep.subr.mxu0 0.0
          %4495 = vmatpush1.msra.mxu0 %v4483
          %4496 = vmatprep.subr.mxu0 0.0
          %4497 = vmatpush1.msra.mxu0 %v4485
          %4498 = vmatprep.subr.mxu0 0.0
          %4499 = vmatpush1.msra.mxu0 0.0
          %4500 = vmatprep.subr.mxu0 0.0
          %4501 = vmatpush1.msra.mxu0 0.0
          %4502 = vmatprep.subr.mxu0 0.0
          %4503 = vmatpush1.msra.mxu0 0.0
          %4504 = vmatprep.subr.mxu0 0.0
          %4505 = vmatpush1.msra.mxu0 0.0
          %4506 = vmatprep.subr.mxu0 0.0
          %4507 = vmatpush1.msra.mxu0 0.0
          %4508 = vmatprep.subr.mxu0 0.0
          %4509 = vmatpush1.msra.mxu0 0.0
          %4510 = vmatprep.subr.mxu0 0.0
          %4511 = vmatpush1.msra.mxu0 0.0
          %4512 = vmatprep.subr.mxu0 0.0
          %4513 = vmatpush1.msra.mxu0 0.0
          %4514 = vmatprep.subr.mxu0 0.0
          %4515 = vmatpush1.msra.mxu0 0.0
          %4516 = vmatprep.subr.mxu0 0.0
          %4517 = vmatpush1.msra.mxu0 0.0
          %4518 = vmatprep.subr.mxu0 0.0
          %4519 = vmatpush1.msra.mxu0 0.0
          %4520 = vmatprep.subr.mxu0 0.0
          %4521 = vmatpush1.msra.mxu0 0.0
          %4522 = vmatprep.subr.mxu0 0.0
          %4523 = vmatpush1.msra.mxu0 0.0
          %4524 = vmatprep.subr.mxu0 0.0
          %4525 = vmatpush1.msra.mxu0 0.0
          %4526 = vmatprep.subr.mxu0 0.0
          %4527 = vmatpush1.msra.mxu0 0.0
          %4528 = vmatprep.subr.mxu0 0.0
          %4529 = vmatpush1.msra.mxu0 0.0
          %4530 = vmatprep.subr.mxu0 0.0
          %4531 = vmatpush1.msra.mxu0 0.0
          %4532 = vmatprep.subr.mxu0 0.0
          %4533 = vmatpush1.msra.mxu0 0.0
          %4534 = vmatprep.subr.mxu0 0.0
          %4535 = vmatpush1.msra.mxu0 0.0
          %4536 = vmatprep.subr.mxu0 0.0
          %4537 = vmatpush1.msra.mxu0 0.0
          %4538 = vmatprep.subr.mxu0 0.0
          %4539 = vmatpush1.msra.mxu0 0.0
          %4540 = vmatprep.subr.mxu0 0.0
          %4541 = vmatpush1.msra.mxu0 0.0
          %4542 = vmatprep.subr.mxu0 0.0
          %4543 = vmatpush1.msra.mxu0 0.0
          %4544 = vmatprep.subr.mxu0 0.0
          %4545 = vmatpush1.msra.mxu0 0.0
          %4546 = vmatprep.subr.mxu0 0.0
          %4547 = vmatpush1.msra.mxu0 0.0
          %4548 = vmatprep.subr.mxu0 0.0
          %4549 = vmatpush1.msra.mxu0 0.0
          %4550 = vmatprep.subr.mxu0 0.0
          %4551 = vmatpush1.msra.mxu0 0.0
          %4552 = vmatprep.subr.mxu0 0.0
          %4553 = vmatpush1.msra.mxu0 0.0
          %4554 = vmatprep.subr.mxu0 0.0
          %4555 = vmatpush1.msra.mxu0 0.0
          %4556 = vmatprep.subr.mxu0 0.0
          %4557 = vmatpush1.msra.mxu0 0.0
          %4558 = vmatprep.mubr.f32.mxu0 0.0
          %4559 = vmatmul.mubr.f32.gmra.mrb[0].mxu0 %v4489
          %v4560 = vpop.f32.mrb[0].mxu0
          %v4561 = vadd.f32 0.0, %v4560
          %v4562 = vpop.f32.mrb[0].mxu0
          %4563 = vmatprep.mubr.f32.mxu0 0.0
          %4564 = vmatmul.mubr.f32.gmra.mrb[0].mxu0 %v4492
          %v4565 = vpop.f32.mrb[0].mxu0
          %v4566 = vadd.f32 0.0, %v4565
          %v4567 = vpop.f32.mrb[0].mxu0
          %4568 = vdwg.mxu0
          %4569 = vrot.lane.b32.xlu0 %v1402, 80
          %v4570 = vpop.permute.xlu0 %4569
          %4571 = vrot.lane.b32.xlu0 %v1405, 80
          %v4572 = vpop.permute.xlu0 %4571
          %v4576 = vsel %vm1420, %v4391, 0
          %v4579 = vsel %vm1420, %v4392, 0
          %4581 = vmatprep.subr.mxu0 0.0
          %4582 = vmatpush1.msra.mxu0 %v4570
          %4583 = vmatprep.subr.mxu0 0.0
          %4584 = vmatpush1.msra.mxu0 %v4572
          %4585 = vmatprep.subr.mxu0 0.0
          %4586 = vmatpush1.msra.mxu0 0.0
          %4587 = vmatprep.subr.mxu0 0.0
          %4588 = vmatpush1.msra.mxu0 0.0
          %4589 = vmatprep.subr.mxu0 0.0
          %4590 = vmatpush1.msra.mxu0 0.0
          %4591 = vmatprep.subr.mxu0 0.0
          %4592 = vmatpush1.msra.mxu0 0.0
          %4593 = vmatprep.subr.mxu0 0.0
          %4594 = vmatpush1.msra.mxu0 0.0
          %4595 = vmatprep.subr.mxu0 0.0
          %4596 = vmatpush1.msra.mxu0 0.0
          %4597 = vmatprep.subr.mxu0 0.0
          %4598 = vmatpush1.msra.mxu0 0.0
          %4599 = vmatprep.subr.mxu0 0.0
          %4600 = vmatpush1.msra.mxu0 0.0
          %4601 = vmatprep.subr.mxu0 0.0
          %4602 = vmatpush1.msra.mxu0 0.0
          %4603 = vmatprep.subr.mxu0 0.0
          %4604 = vmatpush1.msra.mxu0 0.0
          %4605 = vmatprep.subr.mxu0 0.0
          %4606 = vmatpush1.msra.mxu0 0.0
          %4607 = vmatprep.subr.mxu0 0.0
          %4608 = vmatpush1.msra.mxu0 0.0
          %4609 = vmatprep.subr.mxu0 0.0
          %4610 = vmatpush1.msra.mxu0 0.0
          %4611 = vmatprep.subr.mxu0 0.0
          %4612 = vmatpush1.msra.mxu0 0.0
          %4613 = vmatprep.subr.mxu0 0.0
          %4614 = vmatpush1.msra.mxu0 0.0
          %4615 = vmatprep.subr.mxu0 0.0
          %4616 = vmatpush1.msra.mxu0 0.0
          %4617 = vmatprep.subr.mxu0 0.0
          %4618 = vmatpush1.msra.mxu0 0.0
          %4619 = vmatprep.subr.mxu0 0.0
          %4620 = vmatpush1.msra.mxu0 0.0
          %4621 = vmatprep.subr.mxu0 0.0
          %4622 = vmatpush1.msra.mxu0 0.0
          %4623 = vmatprep.subr.mxu0 0.0
          %4624 = vmatpush1.msra.mxu0 0.0
          %4625 = vmatprep.subr.mxu0 0.0
          %4626 = vmatpush1.msra.mxu0 0.0
          %4627 = vmatprep.subr.mxu0 0.0
          %4628 = vmatpush1.msra.mxu0 0.0
          %4629 = vmatprep.subr.mxu0 0.0
          %4630 = vmatpush1.msra.mxu0 0.0
          %4631 = vmatprep.subr.mxu0 0.0
          %4632 = vmatpush1.msra.mxu0 0.0
          %4633 = vmatprep.subr.mxu0 0.0
          %4634 = vmatpush1.msra.mxu0 0.0
          %4635 = vmatprep.subr.mxu0 0.0
          %4636 = vmatpush1.msra.mxu0 0.0
          %4637 = vmatprep.subr.mxu0 0.0
          %4638 = vmatpush1.msra.mxu0 0.0
          %4639 = vmatprep.subr.mxu0 0.0
          %4640 = vmatpush1.msra.mxu0 0.0
          %4641 = vmatprep.subr.mxu0 0.0
          %4642 = vmatpush1.msra.mxu0 0.0
          %4643 = vmatprep.subr.mxu0 0.0
          %4644 = vmatpush1.msra.mxu0 0.0
          %4645 = vmatprep.mubr.f32.mxu0 0.0
          %4646 = vmatmul.mubr.f32.gmra.mrb[0].mxu0 %v4576
          %v4647 = vpop.f32.mrb[0].mxu0
          %v4648 = vadd.f32 0.0, %v4647
          %v4649 = vpop.f32.mrb[0].mxu0
          %4650 = vmatprep.mubr.f32.mxu0 0.0
          %4651 = vmatmul.mubr.f32.gmra.mrb[0].mxu0 %v4579
          %v4652 = vpop.f32.mrb[0].mxu0
          %v4653 = vadd.f32 0.0, %v4652
          %v4654 = vpop.f32.mrb[0].mxu0
          %4655 = vdwg.mxu0
          %4656 = vrot.lane.b32.xlu0 %v1410, 80
          %v4657 = vpop.permute.xlu0 %4656
          %4658 = vrot.lane.b32.xlu0 %v1413, 80
          %v4659 = vpop.permute.xlu0 %4658
          %v4663 = vsel %vm1420, %v4393, 0
          %v4666 = vsel %vm1420, %v4394, 0
          %4668 = vmatprep.subr.mxu0 0.0
          %4669 = vmatpush1.msra.mxu0 %v4657
          %4670 = vmatprep.subr.mxu0 0.0
          %4671 = vmatpush1.msra.mxu0 %v4659
          %4672 = vmatprep.subr.mxu0 0.0
          %4673 = vmatpush1.msra.mxu0 0.0
          %4674 = vmatprep.subr.mxu0 0.0
          %4675 = vmatpush1.msra.mxu0 0.0
          %4676 = vmatprep.subr.mxu0 0.0
          %4677 = vmatpush1.msra.mxu0 0.0
          %4678 = vmatprep.subr.mxu0 0.0
          %4679 = vmatpush1.msra.mxu0 0.0
          %4680 = vmatprep.subr.mxu0 0.0
          %4681 = vmatpush1.msra.mxu0 0.0
          %4682 = vmatprep.subr.mxu0 0.0
          %4683 = vmatpush1.msra.mxu0 0.0
          %4684 = vmatprep.subr.mxu0 0.0
          %4685 = vmatpush1.msra.mxu0 0.0
          %4686 = vmatprep.subr.mxu0 0.0
          %4687 = vmatpush1.msra.mxu0 0.0
          %4688 = vmatprep.subr.mxu0 0.0
          %4689 = vmatpush1.msra.mxu0 0.0
          %4690 = vmatprep.subr.mxu0 0.0
          %4691 = vmatpush1.msra.mxu0 0.0
          %4692 = vmatprep.subr.mxu0 0.0
          %4693 = vmatpush1.msra.mxu0 0.0
          %4694 = vmatprep.subr.mxu0 0.0
          %4695 = vmatpush1.msra.mxu0 0.0
          %4696 = vmatprep.subr.mxu0 0.0
          %4697 = vmatpush1.msra.mxu0 0.0
          %4698 = vmatprep.subr.mxu0 0.0
          %4699 = vmatpush1.msra.mxu0 0.0
          %4700 = vmatprep.subr.mxu0 0.0
          %4701 = vmatpush1.msra.mxu0 0.0
          %4702 = vmatprep.subr.mxu0 0.0
          %4703 = vmatpush1.msra.mxu0 0.0
          %4704 = vmatprep.subr.mxu0 0.0
          %4705 = vmatpush1.msra.mxu0 0.0
          %4706 = vmatprep.subr.mxu0 0.0
          %4707 = vmatpush1.msra.mxu0 0.0
          %4708 = vmatprep.subr.mxu0 0.0
          %4709 = vmatpush1.msra.mxu0 0.0
          %4710 = vmatprep.subr.mxu0 0.0
          %4711 = vmatpush1.msra.mxu0 0.0
          %4712 = vmatprep.subr.mxu0 0.0
          %4713 = vmatpush1.msra.mxu0 0.0
          %4714 = vmatprep.subr.mxu0 0.0
          %4715 = vmatpush1.msra.mxu0 0.0
          %4716 = vmatprep.subr.mxu0 0.0
          %4717 = vmatpush1.msra.mxu0 0.0
          %4718 = vmatprep.subr.mxu0 0.0
          %4719 = vmatpush1.msra.mxu0 0.0
          %4720 = vmatprep.subr.mxu0 0.0
          %4721 = vmatpush1.msra.mxu0 0.0
          %4722 = vmatprep.subr.mxu0 0.0
          %4723 = vmatpush1.msra.mxu0 0.0
          %4724 = vmatprep.subr.mxu0 0.0
          %4725 = vmatpush1.msra.mxu0 0.0
          %4726 = vmatprep.subr.mxu0 0.0
          %4727 = vmatpush1.msra.mxu0 0.0
          %4728 = vmatprep.subr.mxu0 0.0
          %4729 = vmatpush1.msra.mxu0 0.0
          %4730 = vmatprep.subr.mxu0 0.0
          %4731 = vmatpush1.msra.mxu0 0.0
          %4732 = vmatprep.mubr.f32.mxu0 0.0
          %4733 = vmatmul.mubr.f32.gmra.mrb[0].mxu0 %v4663
          %v4734 = vpop.f32.mrb[0].mxu0
          %v4735 = vadd.f32 0.0, %v4734
          %v4736 = vpop.f32.mrb[0].mxu0
          %4737 = vmatprep.mubr.f32.mxu0 0.0
          %4738 = vmatmul.mubr.f32.gmra.mrb[0].mxu0 %v4666
          %v4739 = vpop.f32.mrb[0].mxu0
          %v4740 = vadd.f32 0.0, %v4739
          %v4741 = vpop.f32.mrb[0].mxu0
          %4742 = vdwg.mxu0
          %4751 = vrot.lane.b32.xlu0 %v4474, 48
          %v4752 = vpop.permute.xlu0 %4751
          %4753 = vrot.lane.b32.xlu0 %v4479, 48
          %v4754 = vpop.permute.xlu0 %4753
          %4755 = vrot.lane.b32.xlu0 %v4561, 48
          %v4756 = vpop.permute.xlu0 %4755
          %4757 = vrot.lane.b32.xlu0 %v4566, 48
          %v4758 = vpop.permute.xlu0 %4757
          %4759 = vrot.lane.b32.xlu0 %v4648, 48
          %v4760 = vpop.permute.xlu0 %4759
          %4761 = vrot.lane.b32.xlu0 %v4653, 48
          %v4762 = vpop.permute.xlu0 %4761
          %4763 = vrot.lane.b32.xlu0 %v4735, 48
          %v4764 = vpop.permute.xlu0 %4763
          %4765 = vrot.lane.b32.xlu0 %v4740, 48
          %v4766 = vpop.permute.xlu0 %4765
          %vm4775 = vcmask 523648
          %4776 = vst.msk [vmem:[#allocation3] sm:$0xff] %vm4775, %v4752
          %4777 = vst.msk [vmem:[#allocation3 + $0x8] sm:$0xff] %vm4775, %v4754
          %4778 = vst.msk [vmem:[#allocation3 + $0x10] sm:$0xff] %vm4775, %v4756
          %4779 = vst.msk [vmem:[#allocation3 + $0x18] sm:$0xff] %vm4775, %v4758
          %4780 = vst.msk [vmem:[#allocation3 + $0x20] sm:$0xff] %vm4775, %v4760
          %4781 = vst.msk [vmem:[#allocation3 + $0x28] sm:$0xff] %vm4775, %v4762
          %4782 = vst.msk [vmem:[#allocation3 + $0x30] sm:$0xff] %vm4775, %v4764
          %4783 = vst.msk [vmem:[#allocation3 + $0x38] sm:$0xff] %vm4775, %v4766
          %v4784 = vld [vmem:[#allocation3] sm:$0xff]
          %v4785 = vld [vmem:[#allocation3 + $0x8] sm:$0xff]
          %v4786 = vld [vmem:[#allocation3 + $0x10] sm:$0xff]
          %v4787 = vld [vmem:[#allocation3 + $0x18] sm:$0xff]
          %v4788 = vld [vmem:[#allocation3 + $0x20] sm:$0xff]
          %v4789 = vld [vmem:[#allocation3 + $0x28] sm:$0xff]
          %v4790 = vld [vmem:[#allocation3 + $0x30] sm:$0xff]
          %v4791 = vld [vmem:[#allocation3 + $0x38] sm:$0xff]
          %v4792 = vpack.c.bf16 %v4785, %v4784
          %v4793 = vpack.c.bf16 %v4787, %v4786
          %v4794 = vpack.c.bf16 %v4789, %v4788
          %v4795 = vpack.c.bf16 %v4791, %v4790
          %v4796 = vld [vmem:[#allocation19] sm:$0xf]
          %v4797 = vld [vmem:[#allocation19 + $0x4] sm:$0xf]
          %v4798 = vld [vmem:[#allocation19 + $0x8] sm:$0xf]
          %v4799 = vld [vmem:[#allocation19 + $0xc] sm:$0xf]
          %v4800 = vld [vmem:[#allocation19 + $0x10] sm:$0xf]
          %v4801 = vld [vmem:[#allocation19 + $0x14] sm:$0xf]
          %v4802 = vld [vmem:[#allocation19 + $0x18] sm:$0xf]
          %v4803 = vld [vmem:[#allocation19 + $0x1c] sm:$0xf]
          %v4804 = vld [vmem:[#allocation21] sm:$0x1]
          %v4806 = vlaneseq
          %v4807 = vshrl.u32 %v4806, 7
          %v4808 = vsub.s32 0, %v4807
          %v4809 = vrot.slane %v4804, %v4808
          %v4819 = vunpack.c.l.b16 %v4796
          %v4820 = vunpack.c.l.b16 %v4797
          %v4821 = vunpack.c.l.b16 %v4798
          %v4822 = vunpack.c.l.b16 %v4799
          %v4823 = vunpack.c.l.b16 %v4800
          %v4824 = vunpack.c.l.b16 %v4801
          %v4825 = vunpack.c.l.b16 %v4802
          %v4826 = vunpack.c.l.b16 %v4803
          %v4827 = vpack.c.b16 %v4820, %v4819
          %v4828 = vpack.c.b16 %v4822, %v4821
          %v4829 = vpack.c.b16 %v4824, %v4823
          %v4830 = vpack.c.b16 %v4826, %v4825
          %v4836 = vsel %vm1045, %v4792, 0
          %v4839 = vsel %vm1045, %v4793, 0
          %v4842 = vsel %vm1045, %v4794, 0
          %v4845 = vsel %vm1045, %v4795, 0
          %4847 = vmatprep.subr.bf16.mxu0 0
          %4848 = vmatpush1.bf16.msra.mxu0 %v4827
          %4849 = vmatprep.subr.bf16.mxu0 0
          %4850 = vmatpush1.bf16.msra.mxu0 %v4828
          %4851 = vmatprep.subr.bf16.mxu0 0
          %4852 = vmatpush1.bf16.msra.mxu0 %v4829
          %4853 = vmatprep.subr.bf16.mxu0 0
          %4854 = vmatpush1.bf16.msra.mxu0 %v4830
          %4855 = vmatprep.subr.bf16.mxu0 0
          %4856 = vmatpush1.bf16.msra.mxu0 0
          %4857 = vmatprep.subr.bf16.mxu0 0
          %4858 = vmatpush1.bf16.msra.mxu0 0
          %4859 = vmatprep.subr.bf16.mxu0 0
          %4860 = vmatpush1.bf16.msra.mxu0 0
          %4861 = vmatprep.subr.bf16.mxu0 0
          %4862 = vmatpush1.bf16.msra.mxu0 0
          %4863 = vmatprep.subr.bf16.mxu0 0
          %4864 = vmatpush1.bf16.msra.mxu0 0
          %4865 = vmatprep.subr.bf16.mxu0 0
          %4866 = vmatpush1.bf16.msra.mxu0 0
          %4867 = vmatprep.subr.bf16.mxu0 0
          %4868 = vmatpush1.bf16.msra.mxu0 0
          %4869 = vmatprep.subr.bf16.mxu0 0
          %4870 = vmatpush1.bf16.msra.mxu0 0
          %4871 = vmatprep.subr.bf16.mxu0 0
          %4872 = vmatpush1.bf16.msra.mxu0 0
          %4873 = vmatprep.subr.bf16.mxu0 0
          %4874 = vmatpush1.bf16.msra.mxu0 0
          %4875 = vmatprep.subr.bf16.mxu0 0
          %4876 = vmatpush1.bf16.msra.mxu0 0
          %4877 = vmatprep.subr.bf16.mxu0 0
          %4878 = vmatpush1.bf16.msra.mxu0 0
          %4879 = vmatprep.mubr.bf16.mxu0 0
          %4880 = vmatmul.mubr.bf16.gmra.mrb[0].mxu0 %v4836
          %v4881 = vpop.f32.mrb[0].mxu0
          %v4882 = vadd.f32 %v4809, %v4881
          %v4883 = vpop.f32.mrb[0].mxu0
          %v4884 = vpop.f32.mrb[0].mxu0
          %v4885 = vadd.f32 %v4809, %v4884
          %v4886 = vpop.f32.mrb[0].mxu0
          %4887 = vmatprep.mubr.bf16.mxu0 0
          %4888 = vmatmul.mubr.bf16.gmra.mrb[0].mxu0 %v4839
          %v4889 = vpop.f32.mrb[0].mxu0
          %v4890 = vadd.f32 %v4809, %v4889
          %v4891 = vpop.f32.mrb[0].mxu0
          %v4892 = vpop.f32.mrb[0].mxu0
          %v4893 = vadd.f32 %v4809, %v4892
          %v4894 = vpop.f32.mrb[0].mxu0
          %4895 = vmatprep.mubr.bf16.mxu0 0
          %4896 = vmatmul.mubr.bf16.gmra.mrb[0].mxu0 %v4842
          %v4897 = vpop.f32.mrb[0].mxu0
          %v4898 = vadd.f32 %v4809, %v4897
          %v4899 = vpop.f32.mrb[0].mxu0
          %v4900 = vpop.f32.mrb[0].mxu0
          %v4901 = vadd.f32 %v4809, %v4900
          %v4902 = vpop.f32.mrb[0].mxu0
          %4903 = vmatprep.mubr.bf16.mxu0 0
          %4904 = vmatmul.mubr.bf16.gmra.mrb[0].mxu0 %v4845
          %v4905 = vpop.f32.mrb[0].mxu0
          %v4906 = vadd.f32 %v4809, %v4905
          %v4907 = vpop.f32.mrb[0].mxu0
          %v4908 = vpop.f32.mrb[0].mxu0
          %v4909 = vadd.f32 %v4809, %v4908
          %v4910 = vpop.f32.mrb[0].mxu0
          %4911 = vdwg.mxu0
          %v4912 = vadd.f32 %v1080, %v4882
          %v4913 = vadd.f32 %v1081, %v4885
          %v4914 = vadd.f32 %v1082, %v4890
          %v4915 = vadd.f32 %v1083, %v4893
          %v4916 = vadd.f32 %v1084, %v4898
          %v4917 = vadd.f32 %v1085, %v4901
          %v4918 = vadd.f32 %v1086, %v4906
          %v4919 = vadd.f32 %v1087, %v4909
          %v4920 = vld [vmem:[#allocation22] sm:$0x1]
          %v4921 = vld [vmem:[#allocation24] sm:$0x1]
          %v4922 = vsel %vm1045, %v4912, 0.0
          %4923 = vadd.xlane.f32.xlu0 %v4922
          %v4924 = vpop.xlane.xlu0 %4923
          %v4925 = vsel %vm1045, %v4913, 0.0
          %4926 = vadd.xlane.f32.xlu0 %v4925
          %v4927 = vpop.xlane.xlu0 %4926
          %v4928 = vsel %vm1045, %v4914, 0.0
          %4929 = vadd.xlane.f32.xlu0 %v4928
          %v4930 = vpop.xlane.xlu0 %4929
          %v4931 = vsel %vm1045, %v4915, 0.0
          %4932 = vadd.xlane.f32.xlu0 %v4931
          %v4933 = vpop.xlane.xlu0 %4932
          %v4934 = vsel %vm1045, %v4916, 0.0
          %4935 = vadd.xlane.f32.xlu0 %v4934
          %v4936 = vpop.xlane.xlu0 %4935
          %v4937 = vsel %vm1045, %v4917, 0.0
          %4938 = vadd.xlane.f32.xlu0 %v4937
          %v4939 = vpop.xlane.xlu0 %4938
          %v4940 = vsel %vm1045, %v4918, 0.0
          %4941 = vadd.xlane.f32.xlu0 %v4940
          %v4942 = vpop.xlane.xlu0 %4941
          %v4943 = vsel %vm1045, %v4919, 0.0
          %4944 = vadd.xlane.f32.xlu0 %v4943
          %v4945 = vpop.xlane.xlu0 %4944
          %v4946 = vrcp.pop 64.0
          %v4947 = vmul.f32 %v4924, %v4946
          %v4948 = vmul.f32 %v4927, %v4946
          %v4949 = vmul.f32 %v4930, %v4946
          %v4950 = vmul.f32 %v4933, %v4946
          %v4951 = vmul.f32 %v4936, %v4946
          %v4952 = vmul.f32 %v4939, %v4946
          %v4953 = vmul.f32 %v4942, %v4946
          %v4954 = vmul.f32 %v4945, %v4946
          %v4955 = vsub.f32 %v4912, %v4947
          %v4956 = vsub.f32 %v4913, %v4948
          %v4957 = vsub.f32 %v4914, %v4949
          %v4958 = vsub.f32 %v4915, %v4950
          %v4959 = vsub.f32 %v4916, %v4951
          %v4960 = vsub.f32 %v4917, %v4952
          %v4961 = vsub.f32 %v4918, %v4953
          %v4962 = vsub.f32 %v4919, %v4954
          %v4963 = vmul.f32 %v4955, %v4955
          %v4964 = vmul.f32 %v4956, %v4956
          %v4965 = vmul.f32 %v4957, %v4957
          %v4966 = vmul.f32 %v4958, %v4958
          %v4967 = vmul.f32 %v4959, %v4959
          %v4968 = vmul.f32 %v4960, %v4960
          %v4969 = vmul.f32 %v4961, %v4961
          %v4970 = vmul.f32 %v4962, %v4962
          %v4971 = vsel %vm1045, %v4963, 0.0
          %4972 = vadd.xlane.f32.xlu0 %v4971
          %v4973 = vpop.xlane.xlu0 %4972
          %v4974 = vsel %vm1045, %v4964, 0.0
          %4975 = vadd.xlane.f32.xlu0 %v4974
          %v4976 = vpop.xlane.xlu0 %4975
          %v4977 = vsel %vm1045, %v4965, 0.0
          %4978 = vadd.xlane.f32.xlu0 %v4977
          %v4979 = vpop.xlane.xlu0 %4978
          %v4980 = vsel %vm1045, %v4966, 0.0
          %4981 = vadd.xlane.f32.xlu0 %v4980
          %v4982 = vpop.xlane.xlu0 %4981
          %v4983 = vsel %vm1045, %v4967, 0.0
          %4984 = vadd.xlane.f32.xlu0 %v4983
          %v4985 = vpop.xlane.xlu0 %4984
          %v4986 = vsel %vm1045, %v4968, 0.0
          %4987 = vadd.xlane.f32.xlu0 %v4986
          %v4988 = vpop.xlane.xlu0 %4987
          %v4989 = vsel %vm1045, %v4969, 0.0
          %4990 = vadd.xlane.f32.xlu0 %v4989
          %v4991 = vpop.xlane.xlu0 %4990
          %v4992 = vsel %vm1045, %v4970, 0.0
          %4993 = vadd.xlane.f32.xlu0 %v4992
          %v4994 = vpop.xlane.xlu0 %4993
          %v4995 = vmul.f32 %v4973, %v4946
          %v4996 = vmul.f32 %v4976, %v4946
          %v4997 = vmul.f32 %v4979, %v4946
          %v4998 = vmul.f32 %v4982, %v4946
          %v4999 = vmul.f32 %v4985, %v4946
          %v5000 = vmul.f32 %v4988, %v4946
          %v5001 = vmul.f32 %v4991, %v4946
          %v5002 = vmul.f32 %v4994, %v4946
          %v5003 = vadd.f32 %v4995, 1e-05
          %v5004 = vadd.f32 %v4996, 1e-05
          %v5005 = vadd.f32 %v4997, 1e-05
          %v5006 = vadd.f32 %v4998, 1e-05
          %v5007 = vadd.f32 %v4999, 1e-05
          %v5008 = vadd.f32 %v5000, 1e-05
          %v5009 = vadd.f32 %v5001, 1e-05
          %v5010 = vadd.f32 %v5002, 1e-05
          %v5011 = vrsqrt.pop %v5003
          %v5012 = vrsqrt.pop %v5004
          %v5013 = vrsqrt.pop %v5005
          %v5014 = vrsqrt.pop %v5006
          %v5015 = vrsqrt.pop %v5007
          %v5016 = vrsqrt.pop %v5008
          %v5017 = vrsqrt.pop %v5009
          %v5018 = vrsqrt.pop %v5010
          %v5019 = vmul.f32 %v4955, %v5011
          %v5020 = vmul.f32 %v4956, %v5012
          %v5021 = vmul.f32 %v4957, %v5013
          %v5022 = vmul.f32 %v4958, %v5014
          %v5023 = vmul.f32 %v4959, %v5015
          %v5024 = vmul.f32 %v4960, %v5016
          %v5025 = vmul.f32 %v4961, %v5017
          %v5026 = vmul.f32 %v4962, %v5018
          %v5028 = vlaneseq
          %v5029 = vshrl.u32 %v5028, 7
          %v5030 = vsub.s32 0, %v5029
          %v5031 = vrot.slane %v4920, %v5030
          %v5033 = vmul.f32 %v5019, %v5031
          %v5034 = vmul.f32 %v5020, %v5031
          %v5035 = vmul.f32 %v5021, %v5031
          %v5036 = vmul.f32 %v5022, %v5031
          %v5037 = vmul.f32 %v5023, %v5031
          %v5038 = vmul.f32 %v5024, %v5031
          %v5039 = vmul.f32 %v5025, %v5031
          %v5040 = vmul.f32 %v5026, %v5031
          %v5042 = vlaneseq
          %v5043 = vshrl.u32 %v5042, 7
          %v5044 = vsub.s32 0, %v5043
          %v5045 = vrot.slane %v4921, %v5044
          %v5047 = vadd.f32 %v5033, %v5045
          %v5048 = vadd.f32 %v5034, %v5045
          %v5049 = vadd.f32 %v5035, %v5045
          %v5050 = vadd.f32 %v5036, %v5045
          %v5051 = vadd.f32 %v5037, %v5045
          %v5052 = vadd.f32 %v5038, %v5045
          %v5053 = vadd.f32 %v5039, %v5045
          %v5054 = vadd.f32 %v5040, %v5045
          %v5055 = vpack.c.bf16 %v5048, %v5047
          %v5056 = vpack.c.bf16 %v5050, %v5049
          %v5057 = vpack.c.bf16 %v5052, %v5051
          %v5058 = vpack.c.bf16 %v5054, %v5053
          %v5059 = vld [vmem:[#allocation25] sm:$0xf]
          %v5060 = vld [vmem:[#allocation25 + $0x4] sm:$0xf]
          %v5061 = vld [vmem:[#allocation25 + $0x8] sm:$0xf]
          %v5062 = vld [vmem:[#allocation25 + $0xc] sm:$0xf]
          %v5063 = vld [vmem:[#allocation25 + $0x10] sm:$0xf]
          %v5064 = vld [vmem:[#allocation25 + $0x14] sm:$0xf]
          %v5065 = vld [vmem:[#allocation25 + $0x18] sm:$0xf]
          %v5066 = vld [vmem:[#allocation25 + $0x1c] sm:$0xf]
          %v5067 = vld [vmem:[#allocation27] sm:$0x1]
          %v5069 = vlaneseq
          %v5070 = vshrl.u32 %v5069, 7
          %v5071 = vsub.s32 0, %v5070
          %v5072 = vrot.slane %v5067, %v5071
          %v5082 = vunpack.c.l.b16 %v5059
          %v5083 = vunpack.c.l.b16 %v5060
          %v5084 = vunpack.c.l.b16 %v5061
          %v5085 = vunpack.c.l.b16 %v5062
          %v5086 = vunpack.c.l.b16 %v5063
          %v5087 = vunpack.c.l.b16 %v5064
          %v5088 = vunpack.c.l.b16 %v5065
          %v5089 = vunpack.c.l.b16 %v5066
          %v5090 = vpack.c.b16 %v5083, %v5082
          %v5091 = vpack.c.b16 %v5085, %v5084
          %v5092 = vpack.c.b16 %v5087, %v5086
          %v5093 = vpack.c.b16 %v5089, %v5088
          %v5099 = vsel %vm1045, %v5055, 0
          %v5102 = vsel %vm1045, %v5056, 0
          %v5105 = vsel %vm1045, %v5057, 0
          %v5108 = vsel %vm1045, %v5058, 0
          %5110 = vmatprep.subr.bf16.mxu0 0
          %5111 = vmatpush1.bf16.msra.mxu0 %v5090
          %5112 = vmatprep.subr.bf16.mxu0 0
          %5113 = vmatpush1.bf16.msra.mxu0 %v5091
          %5114 = vmatprep.subr.bf16.mxu0 0
          %5115 = vmatpush1.bf16.msra.mxu0 %v5092
          %5116 = vmatprep.subr.bf16.mxu0 0
          %5117 = vmatpush1.bf16.msra.mxu0 %v5093
          %5118 = vmatprep.subr.bf16.mxu0 0
          %5119 = vmatpush1.bf16.msra.mxu0 0
          %5120 = vmatprep.subr.bf16.mxu0 0
          %5121 = vmatpush1.bf16.msra.mxu0 0
          %5122 = vmatprep.subr.bf16.mxu0 0
          %5123 = vmatpush1.bf16.msra.mxu0 0
          %5124 = vmatprep.subr.bf16.mxu0 0
          %5125 = vmatpush1.bf16.msra.mxu0 0
          %5126 = vmatprep.subr.bf16.mxu0 0
          %5127 = vmatpush1.bf16.msra.mxu0 0
          %5128 = vmatprep.subr.bf16.mxu0 0
          %5129 = vmatpush1.bf16.msra.mxu0 0
          %5130 = vmatprep.subr.bf16.mxu0 0
          %5131 = vmatpush1.bf16.msra.mxu0 0
          %5132 = vmatprep.subr.bf16.mxu0 0
          %5133 = vmatpush1.bf16.msra.mxu0 0
          %5134 = vmatprep.subr.bf16.mxu0 0
          %5135 = vmatpush1.bf16.msra.mxu0 0
          %5136 = vmatprep.subr.bf16.mxu0 0
          %5137 = vmatpush1.bf16.msra.mxu0 0
          %5138 = vmatprep.subr.bf16.mxu0 0
          %5139 = vmatpush1.bf16.msra.mxu0 0
          %5140 = vmatprep.subr.bf16.mxu0 0
          %5141 = vmatpush1.bf16.msra.mxu0 0
          %5142 = vmatprep.mubr.bf16.mxu0 0
          %5143 = vmatmul.mubr.bf16.gmra.mrb[0].mxu0 %v5099
          %v5144 = vpop.f32.mrb[0].mxu0
          %v5145 = vadd.f32 %v5072, %v5144
          %v5146 = vpop.f32.mrb[0].mxu0
          %v5147 = vpop.f32.mrb[0].mxu0
          %v5148 = vadd.f32 %v5072, %v5147
          %v5149 = vpop.f32.mrb[0].mxu0
          %5150 = vmatprep.mubr.bf16.mxu0 0
          %5151 = vmatmul.mubr.bf16.gmra.mrb[0].mxu0 %v5102
          %v5152 = vpop.f32.mrb[0].mxu0
          %v5153 = vadd.f32 %v5072, %v5152
          %v5154 = vpop.f32.mrb[0].mxu0
          %v5155 = vpop.f32.mrb[0].mxu0
          %v5156 = vadd.f32 %v5072, %v5155
          %v5157 = vpop.f32.mrb[0].mxu0
          %5158 = vmatprep.mubr.bf16.mxu0 0
          %5159 = vmatmul.mubr.bf16.gmra.mrb[0].mxu0 %v5105
          %v5160 = vpop.f32.mrb[0].mxu0
          %v5161 = vadd.f32 %v5072, %v5160
          %v5162 = vpop.f32.mrb[0].mxu0
          %v5163 = vpop.f32.mrb[0].mxu0
          %v5164 = vadd.f32 %v5072, %v5163
          %v5165 = vpop.f32.mrb[0].mxu0
          %5166 = vmatprep.mubr.bf16.mxu0 0
          %5167 = vmatmul.mubr.bf16.gmra.mrb[0].mxu0 %v5108
          %v5168 = vpop.f32.mrb[0].mxu0
          %v5169 = vadd.f32 %v5072, %v5168
          %v5170 = vpop.f32.mrb[0].mxu0
          %v5171 = vpop.f32.mrb[0].mxu0
          %v5172 = vadd.f32 %v5072, %v5171
          %v5173 = vpop.f32.mrb[0].mxu0
          %5174 = vdwg.mxu0
          %v5175 = vmax.f32 %v5145, 0.0
          %v5176 = vmax.f32 %v5148, 0.0
          %v5177 = vmax.f32 %v5153, 0.0
          %v5178 = vmax.f32 %v5156, 0.0
          %v5179 = vmax.f32 %v5161, 0.0
          %v5180 = vmax.f32 %v5164, 0.0
          %v5181 = vmax.f32 %v5169, 0.0
          %v5182 = vmax.f32 %v5172, 0.0
          %v5183 = vpack.c.bf16 %v5176, %v5175
          %v5184 = vpack.c.bf16 %v5178, %v5177
          %v5185 = vpack.c.bf16 %v5180, %v5179
          %v5186 = vpack.c.bf16 %v5182, %v5181
          %v5187 = vld [vmem:[#allocation28] sm:$0xf]
          %v5188 = vld [vmem:[#allocation28 + $0x4] sm:$0xf]
          %v5189 = vld [vmem:[#allocation28 + $0x8] sm:$0xf]
          %v5190 = vld [vmem:[#allocation28 + $0xc] sm:$0xf]
          %v5191 = vld [vmem:[#allocation28 + $0x10] sm:$0xf]
          %v5192 = vld [vmem:[#allocation28 + $0x14] sm:$0xf]
          %v5193 = vld [vmem:[#allocation28 + $0x18] sm:$0xf]
          %v5194 = vld [vmem:[#allocation28 + $0x1c] sm:$0xf]
          %v5195 = vld [vmem:[#allocation28 + $0x20] sm:$0xf]
          %v5196 = vld [vmem:[#allocation28 + $0x24] sm:$0xf]
          %v5197 = vld [vmem:[#allocation28 + $0x28] sm:$0xf]
          %v5198 = vld [vmem:[#allocation28 + $0x2c] sm:$0xf]
          %v5199 = vld [vmem:[#allocation28 + $0x30] sm:$0xf]
          %v5200 = vld [vmem:[#allocation28 + $0x34] sm:$0xf]
          %v5201 = vld [vmem:[#allocation28 + $0x38] sm:$0xf]
          %v5202 = vld [vmem:[#allocation28 + $0x3c] sm:$0xf]
          %v5203 = vld [vmem:[#allocation30] sm:$0x1]
          %v5205 = vlaneseq
          %v5206 = vshrl.u32 %v5205, 7
          %v5207 = vsub.s32 0, %v5206
          %v5208 = vrot.slane %v5203, %v5207
          %v5226 = vunpack.c.l.b16 %v5187
          %v5227 = vunpack.c.l.b16 %v5188
          %v5228 = vunpack.c.l.b16 %v5189
          %v5229 = vunpack.c.l.b16 %v5190
          %v5230 = vunpack.c.l.b16 %v5191
          %v5231 = vunpack.c.l.b16 %v5192
          %v5232 = vunpack.c.l.b16 %v5193
          %v5233 = vunpack.c.l.b16 %v5194
          %v5234 = vunpack.c.l.b16 %v5195
          %v5235 = vunpack.c.l.b16 %v5196
          %v5236 = vunpack.c.l.b16 %v5197
          %v5237 = vunpack.c.l.b16 %v5198
          %v5238 = vunpack.c.l.b16 %v5199
          %v5239 = vunpack.c.l.b16 %v5200
          %v5240 = vunpack.c.l.b16 %v5201
          %v5241 = vunpack.c.l.b16 %v5202
          %v5242 = vpack.c.b16 %v5227, %v5226
          %v5243 = vpack.c.b16 %v5229, %v5228
          %v5244 = vpack.c.b16 %v5231, %v5230
          %v5245 = vpack.c.b16 %v5233, %v5232
          %v5246 = vpack.c.b16 %v5235, %v5234
          %v5247 = vpack.c.b16 %v5237, %v5236
          %v5248 = vpack.c.b16 %v5239, %v5238
          %v5249 = vpack.c.b16 %v5241, %v5240
          %5258 = vmatprep.subr.bf16.mxu0 0
          %5259 = vmatpush1.bf16.msra.mxu0 %v5242
          %5260 = vmatprep.subr.bf16.mxu0 0
          %5261 = vmatpush1.bf16.msra.mxu0 %v5243
          %5262 = vmatprep.subr.bf16.mxu0 0
          %5263 = vmatpush1.bf16.msra.mxu0 %v5244
          %5264 = vmatprep.subr.bf16.mxu0 0
          %5265 = vmatpush1.bf16.msra.mxu0 %v5245
          %5266 = vmatprep.subr.bf16.mxu0 0
          %5267 = vmatpush1.bf16.msra.mxu0 %v5246
          %5268 = vmatprep.subr.bf16.mxu0 0
          %5269 = vmatpush1.bf16.msra.mxu0 %v5247
          %5270 = vmatprep.subr.bf16.mxu0 0
          %5271 = vmatpush1.bf16.msra.mxu0 %v5248
          %5272 = vmatprep.subr.bf16.mxu0 0
          %5273 = vmatpush1.bf16.msra.mxu0 %v5249
          %5274 = vmatprep.subr.bf16.mxu0 0
          %5275 = vmatpush1.bf16.msra.mxu0 0
          %5276 = vmatprep.subr.bf16.mxu0 0
          %5277 = vmatpush1.bf16.msra.mxu0 0
          %5278 = vmatprep.subr.bf16.mxu0 0
          %5279 = vmatpush1.bf16.msra.mxu0 0
          %5280 = vmatprep.subr.bf16.mxu0 0
          %5281 = vmatpush1.bf16.msra.mxu0 0
          %5282 = vmatprep.subr.bf16.mxu0 0
          %5283 = vmatpush1.bf16.msra.mxu0 0
          %5284 = vmatprep.subr.bf16.mxu0 0
          %5285 = vmatpush1.bf16.msra.mxu0 0
          %5286 = vmatprep.subr.bf16.mxu0 0
          %5287 = vmatpush1.bf16.msra.mxu0 0
          %5288 = vmatprep.subr.bf16.mxu0 0
          %5289 = vmatpush1.bf16.msra.mxu0 0
          %5290 = vmatprep.mubr.bf16.mxu0 0
          %5291 = vmatmul.mubr.bf16.gmra.mrb[0].mxu0 %v5183
          %v5292 = vpop.f32.mrb[0].mxu0
          %v5293 = vpop.f32.mrb[0].mxu0
          %v5294 = vpop.f32.mrb[0].mxu0
          %v5295 = vadd.f32 %v5208, %v5294
          %v5296 = vpop.f32.mrb[0].mxu0
          %5297 = vmatprep.mubr.bf16.mxu0 0
          %5298 = vmatmul.mubr.bf16.gmra.mrb[0].mxu0 %v5184
          %v5299 = vpop.f32.mrb[0].mxu0
          %v5300 = vpop.f32.mrb[0].mxu0
          %v5301 = vpop.f32.mrb[0].mxu0
          %v5302 = vadd.f32 %v5208, %v5301
          %v5303 = vpop.f32.mrb[0].mxu0
          %5304 = vmatprep.mubr.bf16.mxu0 0
          %5305 = vmatmul.mubr.bf16.gmra.mrb[0].mxu0 %v5185
          %v5306 = vpop.f32.mrb[0].mxu0
          %v5307 = vpop.f32.mrb[0].mxu0
          %v5308 = vpop.f32.mrb[0].mxu0
          %v5309 = vadd.f32 %v5208, %v5308
          %v5310 = vpop.f32.mrb[0].mxu0
          %5311 = vmatprep.mubr.bf16.mxu0 0
          %5312 = vmatmul.mubr.bf16.gmra.mrb[0].mxu0 %v5186
          %v5313 = vpop.f32.mrb[0].mxu0
          %v5314 = vpop.f32.mrb[0].mxu0
          %v5315 = vpop.f32.mrb[0].mxu0
          %v5316 = vadd.f32 %v5208, %v5315
          %v5317 = vpop.f32.mrb[0].mxu0
          %5318 = vdwg.mxu0
          %v5319 = vadd.f32 %v5048, %v5295
          %v5320 = vadd.f32 %v5050, %v5302
          %v5321 = vadd.f32 %v5052, %v5309
          %v5322 = vadd.f32 %v5054, %v5316
          %v5323 = vld [vmem:[#allocation31] sm:$0x1]
          %v5324 = vld [vmem:[#allocation33] sm:$0x1]
          %v5325 = vsel %vm1045, %v5319, 0.0
          %5326 = vadd.xlane.f32.xlu0 %v5325
          %v5327 = vpop.xlane.xlu0 %5326
          %v5328 = vsel %vm1045, %v5320, 0.0
          %5329 = vadd.xlane.f32.xlu0 %v5328
          %v5330 = vpop.xlane.xlu0 %5329
          %v5331 = vsel %vm1045, %v5321, 0.0
          %5332 = vadd.xlane.f32.xlu0 %v5331
          %v5333 = vpop.xlane.xlu0 %5332
          %v5334 = vsel %vm1045, %v5322, 0.0
          %5335 = vadd.xlane.f32.xlu0 %v5334
          %v5336 = vpop.xlane.xlu0 %5335
          %v5337 = vmul.f32 %v5327, %v4946
          %v5338 = vmul.f32 %v5330, %v4946
          %v5339 = vmul.f32 %v5333, %v4946
          %v5340 = vmul.f32 %v5336, %v4946
          %v5341 = vsub.f32 %v5319, %v5337
          %v5342 = vsub.f32 %v5320, %v5338
          %v5343 = vsub.f32 %v5321, %v5339
          %v5344 = vsub.f32 %v5322, %v5340
          %v5345 = vmul.f32 %v5341, %v5341
          %v5346 = vmul.f32 %v5342, %v5342
          %v5347 = vmul.f32 %v5343, %v5343
          %v5348 = vmul.f32 %v5344, %v5344
          %v5349 = vsel %vm1045, %v5345, 0.0
          %5350 = vadd.xlane.f32.xlu0 %v5349
          %v5351 = vpop.xlane.xlu0 %5350
          %v5352 = vsel %vm1045, %v5346, 0.0
          %5353 = vadd.xlane.f32.xlu0 %v5352
          %v5354 = vpop.xlane.xlu0 %5353
          %v5355 = vsel %vm1045, %v5347, 0.0
          %5356 = vadd.xlane.f32.xlu0 %v5355
          %v5357 = vpop.xlane.xlu0 %5356
          %v5358 = vsel %vm1045, %v5348, 0.0
          %5359 = vadd.xlane.f32.xlu0 %v5358
          %v5360 = vpop.xlane.xlu0 %5359
          %v5361 = vmul.f32 %v5351, %v4946
          %v5362 = vmul.f32 %v5354, %v4946
          %v5363 = vmul.f32 %v5357, %v4946
          %v5364 = vmul.f32 %v5360, %v4946
          %v5365 = vadd.f32 %v5361, 1e-05
          %v5366 = vadd.f32 %v5362, 1e-05
          %v5367 = vadd.f32 %v5363, 1e-05
          %v5368 = vadd.f32 %v5364, 1e-05
          %v5369 = vrsqrt.pop %v5365
          %v5370 = vrsqrt.pop %v5366
          %v5371 = vrsqrt.pop %v5367
          %v5372 = vrsqrt.pop %v5368
          %v5373 = vmul.f32 %v5341, %v5369
          %v5374 = vmul.f32 %v5342, %v5370
          %v5375 = vmul.f32 %v5343, %v5371
          %v5376 = vmul.f32 %v5344, %v5372
          %v5378 = vlaneseq
          %v5379 = vshrl.u32 %v5378, 7
          %v5380 = vsub.s32 0, %v5379
          %v5381 = vrot.slane %v5323, %v5380
          %v5383 = vmul.f32 %v5373, %v5381
          %v5384 = vmul.f32 %v5374, %v5381
          %v5385 = vmul.f32 %v5375, %v5381
          %v5386 = vmul.f32 %v5376, %v5381
          %v5388 = vlaneseq
          %v5389 = vshrl.u32 %v5388, 7
          %v5390 = vsub.s32 0, %v5389
          %v5391 = vrot.slane %v5324, %v5390
          %v5393 = vadd.f32 %v5383, %v5391
          %v5394 = vadd.f32 %v5384, %v5391
          %v5395 = vadd.f32 %v5385, %v5391
          %v5396 = vadd.f32 %v5386, %v5391
          %vm5397 = vcmask 516096
          %5398 = vst.msk [vmem:[%s900] sm:$0x1] %vm5397, %v5393
          %5399 = vst.msk [vmem:[%s900 + $0x1] sm:$0x1] %vm5397, %v5394
          %5400 = vst.msk [vmem:[%s900 + $0x2] sm:$0x1] %vm5397, %v5395
          %5401 = vst.msk [vmem:[%s900 + $0x3] sm:$0x1] %vm5397, %v5396
        $region180: #{tpu_custom_call.1} parent=95 // pred_fallthru
          _
        %s5402 = sand.u32 %s478, 1
        %s5403 = scalar_lea.sflag [#allocation6], %s5402
        %s5404 = sand.u32 %s478, 1
        %s5405 = smul.addr %s5404, 4
        %s5406 = scalar_lea.vmem [#allocation34], %s5405
        // Predicated region
        $region181: #{tpu_custom_call.1} parent=95 // pred_check
          %p5407 = pneg %p488
        $region182: #{tpu_custom_call.1} parent=95 // pred_check_branch
          %5409 = sbr.rel (%p5407) target = $region184
        $region183: #{tpu_custom_call.1} parent=95 // pred_region
          %s5410 = smul.u32 4, %s51
          %s5412 = ssub.s32 64, 64
          %5413 = vsyncadd %s5403, %s5412
          %s5414 = smul.addr %s5410, 16
          %s5415 = scalar_lea.hbm %s19, %s5414
          %s5416 = sshll.u32 %s5406, 4
          %s5417 = int_to_ptr.vmem [resolvable:$true] %s5416
          %5422 = dma.vmem_to_hbm [thread:$0]  %s5417, 64, %s5415, %s5403, 16, 16, 1
        $region184: #{tpu_custom_call.1} parent=95 // pred_fallthru
          _
      $region96: #{tpu_custom_call.1} parent=5 // pred_fallthru
        _
      %p5423 = scmp.le.s32.totalorder 2, %s42
      // Predicated region
      $region185: #{tpu_custom_call.1} parent=5 // pred_check
        %p5424 = pneg %p5423
      $region186: #{tpu_custom_call.1} parent=5 // pred_check_branch
        %5426 = sbr.rel (%p5424) target = $region188
      $region187: #{tpu_custom_call.1} parent=5 // pred_region
        %s5427 = ssub.s32 %s42, 2
        // Predicated region
        $region189: #{tpu_custom_call.1} parent=187 // pred_check
          %p5428 = pneg %p494
        $region190: #{tpu_custom_call.1} parent=187 // pred_check_branch
          %5430 = sbr.rel (%p5428) target = $region192
        $region191: #{tpu_custom_call.1} parent=187 // pred_region
          %s5431 = sand.u32 %s479, 1
          %s5432 = scalar_lea.sflag [#allocation6], %s5431
          %s5433 = sand.u32 %s479, 1
          %s5434 = smul.addr %s5433, 4
          %s5435 = scalar_lea.vmem [#allocation34], %s5434
          %5436 = dma.done %s5432, 64
        $region192: #{tpu_custom_call.1} parent=187 // pred_fallthru
          _
      $region188: #{tpu_custom_call.1} parent=5 // pred_fallthru
        _
    $region6: #{tpu_custom_call.1} parent=1 // loop_footer
      %s46 = sadd.s32 1, %s42
    $region7: #{tpu_custom_call.1} parent=1 // loop_footer_branch
      %41 = sbr.rel target = $region3
    $region8: #{tpu_custom_call.1} parent=1 // loop_exit
      _
    %5437 = vsyncpa [#allocation5], 1
    %s5438 = scalar_lea.sflag [#allocation5], 1
    %5439 = vsyncpa %s5438, 1
    %5440 = vsyncpa [#allocation8], 1
    %s5441 = scalar_lea.sflag [#allocation8], 1
    %5442 = vsyncpa %s5441, 1
    %5443 = vsyncpa [#allocation11], 1
    %5444 = vsyncpa [#allocation14], 1
    %5445 = vsyncpa [#allocation17], 1
    %5446 = vsyncpa [#allocation20], 1
    %5447 = vsyncpa [#allocation23], 1
    %5448 = vsyncpa [#allocation26], 1
    %5449 = vsyncpa [#allocation29], 1
    %5450 = vsyncpa [#allocation32], 1
    %5451 = vsyncpa [#allocation6], 1
    %s5452 = scalar_lea.sflag [#allocation6], 1
    %5453 = vsyncpa %s5452, 1

</llo_original>
